<compile_context>
chip_gen: v7x
topology: tpu7x:2x2x1
jax: 0.10.0
libtpu: 0.0.40
codegen_flags: <defaults>
</compile_context>

<pallas_src>
import functools

import jax
import jax.numpy as jnp
from jax.experimental import pallas as pl
from jax.experimental.pallas import tpu as pltpu


def _round_up(x, m):
    return ((x + m - 1) // m) * m


@functools.lru_cache(maxsize=None)
def _vmem_budget_and_limit():
    """Per-generation VMEM sizing: ~50% of physical VMEM as the tile budget,
    ~75% as the Mosaic scoped limit (=> ~96 MiB on 128 MiB v5e/v6e, ~48 MiB on
    64 MiB v7x)."""
    cap = 64 * 1024 * 1024  # conservative default = v7x physical VMEM
    try:
        info = pltpu.get_tpu_info()
        cap = int(getattr(info, "vmem_capacity_bytes", cap) or cap)
    except Exception:
        pass
    return cap // 2, (cap * 3) // 4


# ----------------------------------------------------------------------------
# Linear kernels: 3-D tiled GEMM (rows x cols x K), optional f32 bias
# ----------------------------------------------------------------------------
def _matmul_kernel(x_ref, w_ref, o_ref):
    o_ref[...] = jnp.dot(x_ref[...], w_ref[...],
                         preferred_element_type=jnp.float32).astype(o_ref.dtype)


def _matmul_bias_kernel(x_ref, w_ref, b_ref, o_ref):
    acc = jnp.dot(x_ref[...], w_ref[...], preferred_element_type=jnp.float32)
    o_ref[...] = (acc + b_ref[...]).astype(o_ref.dtype)


def _matmul_acc_kernel(x_ref, w_ref, o_ref, acc_ref):
    @pl.when(pl.program_id(2) == 0)
    def _():
        acc_ref[...] = jnp.zeros_like(acc_ref)

    acc_ref[...] += jnp.dot(x_ref[...], w_ref[...],
                            preferred_element_type=jnp.float32)

    @pl.when(pl.program_id(2) == pl.num_programs(2) - 1)
    def _():
        o_ref[...] = acc_ref[...].astype(o_ref.dtype)


def _matmul_acc_bias_kernel(x_ref, w_ref, b_ref, o_ref, acc_ref):
    @pl.when(pl.program_id(2) == 0)
    def _():
        acc_ref[...] = jnp.zeros_like(acc_ref)

    acc_ref[...] += jnp.dot(x_ref[...], w_ref[...],
                            preferred_element_type=jnp.float32)

    @pl.when(pl.program_id(2) == pl.num_programs(2) - 1)
    def _():
        o_ref[...] = (acc_ref[...] + b_ref[...]).astype(o_ref.dtype)


def _choose_linear_tiles(M, K, Nout, in_dtype, out_dtype, budget):
    """Pick (tm, tn, tk).  tn is 128/256-aligned (or full Nout), tk divides K
    exactly (ragged K would corrupt the accumulation), tm is as large as the
    per-generation VMEM budget allows.  x/w/out tiles are double-buffered by
    the pipeline; the f32 accumulator and bias are single residents."""
    in_sz = jnp.dtype(in_dtype).itemsize
    out_sz = jnp.dtype(out_dtype).itemsize

    if Nout % 128 == 0:
        tn = min(Nout, 512)          # multiple of 256 (v6e/v7x MXU), 128-ok on v5e
    else:
        tn = Nout                    # full extent satisfies the (8,128) rule

    if K <= 2048:
        tk = K
    else:
        tk = K
        for cand in (2048, 1024, 512, 256, 128):
            if K % cand == 0:
                tk = cand
                break

    def footprint(tm_, tn_, tk_):
        return (2 * (tm_ * tk_ * in_sz + tk_ * tn_ * in_sz + tm_ * tn_ * out_sz)
                + tm_ * tn_ * 4 + 2 * tn_ * 4)

    tm = min(512, _round_up(M, 8))
    while tm > 8 and footprint(tm, tn, tk) > budget:
        tm = _round_up(max(tm // 2, 8), 8)
    while tn > 128 and tn % 128 == 0 and footprint(tm, tn, tk) > budget:
        tn = max(tn // 2, 128)
    return tm, tn, tk


def pallas_linear(x2d, w, bias=None, out_dtype=None):
    """x2d: (M, K); w: (K, Nout) in (in, out) layout; bias: (Nout,) f32 or None."""
    M, K = x2d.shape
    Kw, Nout = w.shape
    assert K == Kw
    out_dtype = out_dtype or x2d.dtype
    budget, limit = _vmem_budget_and_limit()
    tm, tn, tk = _choose_linear_tiles(M, K, Nout, x2d.dtype, out_dtype, budget)
    mt, nt, kt = pl.cdiv(M, tm), pl.cdiv(Nout, tn), K // tk

    in_specs = [
        pl.BlockSpec((tm, tk), lambda i, j, k: (i, k)),
        pl.BlockSpec((tk, tn), lambda i, j, k: (k, j)),
    ]
    args = [x2d, w]
    if bias is not None:
        in_specs.append(pl.BlockSpec((1, tn), lambda i, j, k: (0, j)))
        args.append(bias.reshape(1, Nout).astype(jnp.float32))   # bias stays f32

    if kt == 1:   # single K step: skip the accumulator round-trip
        kernel = _matmul_kernel if bias is None else _matmul_bias_kernel
        scratch = []
    else:
        kernel = _matmul_acc_kernel if bias is None else _matmul_acc_bias_kernel
        scratch = [pltpu.VMEM((tm, tn), jnp.float32)]

    return pl.pallas_call(
        kernel,
        out_shape=jax.ShapeDtypeStruct((M, Nout), out_dtype),
        grid_spec=pltpu.PrefetchScalarGridSpec(
            num_scalar_prefetch=0,
            grid=(mt, nt, kt),
            in_specs=in_specs,
            out_specs=pl.BlockSpec((tm, tn), lambda i, j, k: (i, j)),
            scratch_shapes=scratch,
        ),
        compiler_params=pltpu.CompilerParams(
            dimension_semantics=("parallel", "parallel", "arbitrary"),
            vmem_limit_bytes=limit,
        ),
    )(*args)


# ----------------------------------------------------------------------------
# Dual-branch chunked attention: one grid step = one (batch, chunk), all heads
# Lane-dense I/O: input slab (Nc, 3C), output slab (Nc, C); heads are split
# with static lane slices inside the kernel (no HBM transposes).
# ----------------------------------------------------------------------------
def _dual_attn_kernel(qkv_ref, ksum_ref, o_ref, *, B, H, hd):
    C = H * hd
    blk = qkv_ref[0]                       # (Nc, 3C) bf16, lane-dense load
    b = pl.program_id(0)

    def softmax_pv(s, v):
        # Normalize AFTER the PV matmul (Nc*hd multiplies instead of Nc*Nc).
        s = s - jnp.max(s, axis=-1, keepdims=True)
        p = jnp.exp(s)
        l = jnp.sum(p, axis=-1, keepdims=True)
        o = jnp.dot(p.astype(v.dtype), v, preferred_element_type=jnp.float32)
        return o * pl.reciprocal(l, approx=True)

    @pl.when(b < B)
    def _():
        # x1 branch: per-(batch, head) K.  scale is folded into the q columns
        # of the fused reduce+qkv weight.
        for h in range(H):
            q = blk[:, h * hd:(h + 1) * hd]
            k = blk[:, C + h * hd:C + (h + 1) * hd]
            v = blk[:, 2 * C + h * hd:2 * C + (h + 1) * hd]
            s = jnp.einsum("qd,kd->qk", q, k, preferred_element_type=jnp.float32)
            o_ref[0, :, h * hd:(h + 1) * hd] = softmax_pv(s, v).astype(o_ref.dtype)

    @pl.when(b >= B)
    def _():
        # x2 branch: K is summed over batch AND heads ('mnop,ijpk->mnok'); the
        # single summed (Nc, hd) K block is shared by every head (no in-kernel
        # broadcast materialization).
        k = ksum_ref[0]                    # (Nc, hd)
        for h in range(H):
            q = blk[:, h * hd:(h + 1) * hd]
            v = blk[:, 2 * C + h * hd:2 * C + (h + 1) * hd]
            s = jnp.einsum("qd,kd->qk", q, k, preferred_element_type=jnp.float32)
            o_ref[0, :, h * hd:(h + 1) * hd] = softmax_pv(s, v).astype(o_ref.dtype)


def pallas_dual_attention(qkv, ksum, B, chunks, Nc, H, hd, out_dtype):
    """qkv: (2*B*chunks, Nc, 3C); rows [0, B*chunks) = x1 branch, rows
    [B*chunks, 2*B*chunks) = x2 branch.  ksum: (chunks, Nc, hd)."""
    C = H * hd
    G = qkv.shape[0]
    assert G == 2 * B * chunks
    _, limit = _vmem_budget_and_limit()

    kernel = functools.partial(_dual_attn_kernel, B=B, H=H, hd=hd)
    qkv_spec = pl.BlockSpec((1, Nc, 3 * C), lambda b, c: (b * chunks + c, 0, 0))
    ksum_spec = pl.BlockSpec((1, Nc, hd), lambda b, c: (c, 0, 0))
    out_spec = pl.BlockSpec((1, Nc, C), lambda b, c: (b * chunks + c, 0, 0))

    return pl.pallas_call(
        kernel,
        out_shape=jax.ShapeDtypeStruct((G, Nc, C), out_dtype),
        grid_spec=pltpu.PrefetchScalarGridSpec(
            num_scalar_prefetch=0,
            grid=(2 * B, chunks),
            in_specs=[qkv_spec, ksum_spec],
            out_specs=out_spec,
        ),
        compiler_params=pltpu.CompilerParams(
            dimension_semantics=("parallel", "parallel"),
            vmem_limit_bytes=limit,
        ),
    )(qkv, ksum)


# ----------------------------------------------------------------------------
# Parameters
# ----------------------------------------------------------------------------
def init_params(key, dim):
    """PyTorch-style parameters: weight layout (out_features, in_features)."""
    C = dim // 2
    k1, k2, k3, k4 = jax.random.split(key, 4)
    return {
        "reduce_w": 0.02 * jax.random.normal(k1, (C, dim), jnp.float32),
        "qkv_w": 0.02 * jax.random.normal(k2, (3 * C, C), jnp.float32),
        "proj_w": 0.02 * jax.random.normal(k3, (dim, C), jnp.float32),
        "proj_b": 0.02 * jax.random.normal(k4, (dim,), jnp.float32),
    }


def prepare_params(torch_params, num_heads=8):
    """One-time prep outside the hot path:
      - fuse the two bias-free projections: qkv(x) = x @ (reduce_w.T @ qkv_w.T)
      - fold the attention scale into the q output columns of the fused weight
      - transpose weights to (in, out) layout and cast to bf16
      - keep the proj bias in f32."""
    rw = jnp.asarray(torch_params["reduce_w"], jnp.float32)   # (C, dim)
    qw = jnp.asarray(torch_params["qkv_w"], jnp.float32)      # (3C, C)
    pw = jnp.asarray(torch_params["proj_w"], jnp.float32)     # (dim, C)
    C, dim = rw.shape
    scale = float(dim // num_heads) ** (-0.5)                 # PyTorch __init__ scale
    w_rq = rw.T @ qw.T                                        # (dim, 3C)
    w_rq = w_rq.at[:, :C].multiply(scale)                     # fold scale into q cols
    return {
        "w_reduce_qkv": w_rq.astype(jnp.bfloat16),
        "w_proj": pw.T.astype(jnp.bfloat16),                  # (C, dim)
        "b_proj": jnp.asarray(torch_params["proj_b"], jnp.float32),
    }


# ----------------------------------------------------------------------------
# DMHA forward
# ----------------------------------------------------------------------------
def dmha_forward(params, x1, x2, num_heads=8, chunk_size=4):
    # The fused dual-branch path batches both inputs through the same three
    # pallas_calls; it assumes matching shapes and the (assumed) chunk_size=4.
    assert x1.shape == x2.shape, "dual-branch fused path assumes x1.shape == x2.shape"
    chunks = 4                     # x1 branch hard-codes torch.chunk(a, 4, dim=-2)
    assert chunk_size == chunks    # TODO(synk): self.chunk_size undefined in reference; assumed 4
    B, N, dim = x1.shape
    C = dim // 2
    H = num_heads
    hd = C // H
    assert N % chunks == 0 and C % H == 0
    Nc = N // chunks
    cdt = jnp.bfloat16             # compute dtype for GEMMs / attention (f32 accumulation)

    w_rq = params["w_reduce_qkv"]  # (dim, 3C) bf16, scale folded into q columns
    w_proj = params["w_proj"]      # (C, dim)  bf16
    b_proj = params["b_proj"]      # (dim,)    f32

    # --- fused reduce+qkv GEMM over BOTH branches: one launch, one weight pass.
    xcat = jnp.concatenate([x1, x2], axis=0).astype(cdt)                 # (2B, N, dim)
    qkv = pallas_linear(xcat.reshape(2 * B * N, dim), w_rq, out_dtype=cdt)   # (2B*N, 3C)

    # --- shared K for the x2 branch: sum K over batch AND heads, per chunk.
    k2 = qkv.reshape(2 * B, chunks, Nc, 3 * C)[B:, :, :, C:2 * C]        # (B, chunks, Nc, C)
    ksum = (k2.astype(jnp.float32)
              .reshape(B, chunks, Nc, H, hd)
              .sum(axis=(0, 3))                                          # (chunks, Nc, hd)
              .astype(cdt))

    # --- attention: lane-dense (Nc, 3C) in / (Nc, C) out, both branches in one call.
    att = pallas_dual_attention(qkv.reshape(2 * B * chunks, Nc, 3 * C), ksum,
                                B, chunks, Nc, H, hd, cdt)               # (2B*chunks, Nc, C)

    # --- output projection (bias, f32 out) over both branches in one launch.
    y = pallas_linear(att.reshape(2 * B * N, C), w_proj, bias=b_proj,
                      out_dtype=jnp.float32)                             # (2B*N, dim)
    y = y.reshape(2, B, N, dim)
    return y[0], y[1]


if __name__ == "__main__":
    B, N, dim, num_heads, chunk_size = 2, 16, 64, 8, 4   # N % 4 == 0, (dim//2) % heads == 0
    key = jax.random.PRNGKey(0)
    kx1, kx2, kp = jax.random.split(key, 3)
    x1 = jax.random.normal(kx1, (B, N, dim), jnp.float32)
    x2 = jax.random.normal(kx2, (B, N, dim), jnp.float32)

    params = prepare_params(init_params(kp, dim), num_heads=num_heads)

    fwd = jax.jit(functools.partial(dmha_forward, num_heads=num_heads,
                                    chunk_size=chunk_size))
    y1, y2 = fwd(params, x1, x2)
    jax.block_until_ready((y1, y2))

    assert y1.shape == (B, N, dim) and y2.shape == (B, N, dim)
    assert y1.dtype == jnp.float32 and y2.dtype == jnp.float32
    assert bool(jnp.all(jnp.isfinite(y1))) and bool(jnp.all(jnp.isfinite(y2)))
    print("KERNEL_OK")
</pallas_src>

<mosaic_0001>
module attributes {stable_mosaic.version = 11 : i64} {
  func.func @_matmul_kernel(%arg0: i32, %arg1: i32, %arg2: i32, %arg3: memref<64x64xbf16, #tpu.memory_space<vmem>>, %arg4: memref<64x96xbf16, #tpu.memory_space<vmem>>, %arg5: memref<64x96xbf16, #tpu.memory_space<vmem>>) attributes {dimension_semantics = [#tpu.dimension_semantics<parallel>, #tpu.dimension_semantics<parallel>, #tpu.dimension_semantics<arbitrary>], iteration_bounds = array<i64: 1, 1, 1>, scalar_prefetch = 0 : i64, scratch_operands = 0 : i64, tpu.core_type = #tpu.core_type<tc>, window_params = [{transform_indices = @transform_0, window_bounds = array<i64: 64, 64>}, {transform_indices = @transform_1, window_bounds = array<i64: 64, 96>}, {transform_indices = @transform_2, window_bounds = array<i64: 64, 96>}]} {
    %c0 = arith.constant 0 : index
    %c0_0 = arith.constant 0 : index
    %0 = vector.load %arg3[%c0, %c0_0] : memref<64x64xbf16, #tpu.memory_space<vmem>>, vector<64x64xbf16>
    %c0_1 = arith.constant 0 : index
    %c0_2 = arith.constant 0 : index
    %1 = vector.load %arg4[%c0_1, %c0_2] : memref<64x96xbf16, #tpu.memory_space<vmem>>, vector<64x96xbf16>
    %cst = arith.constant dense<0.000000e+00> : vector<64x96xf32>
    %2 = tpu.matmul %0, %1, %cst {dimension_numbers = #tpu.dot_dimension_numbers<[1], [0], [0], [1], [0, 0, 1, 1], [], []>} : vector<64x64xbf16>, vector<64x96xbf16>, vector<64x96xf32> -> vector<64x96xf32>
    %3 = arith.truncf %2 : vector<64x96xf32> to vector<64x96xbf16>
    %c0_3 = arith.constant 0 : index
    %c0_4 = arith.constant 0 : index
    %4 = vector.load %arg5[%c0_3, %c0_4] : memref<64x96xbf16, #tpu.memory_space<vmem>>, vector<64x96xbf16>
    tpu.vector_store %arg5[%c0_3, %c0_4], %3 {strides = array<i32>} : memref<64x96xbf16, #tpu.memory_space<vmem>>, vector<64x96xbf16>,
    return
  }
  func.func @transform_0(%arg0: i32, %arg1: i32, %arg2: i32) -> (i32, i32) {
    %c0_i32 = arith.constant 0 : i32
    return %arg0, %arg2 : i32, i32
  }
  func.func @transform_1(%arg0: i32, %arg1: i32, %arg2: i32) -> (i32, i32) {
    %c0_i32 = arith.constant 0 : i32
    return %arg2, %arg1 : i32, i32
  }
  func.func @transform_2(%arg0: i32, %arg1: i32, %arg2: i32) -> (i32, i32) {
    %c0_i32 = arith.constant 0 : i32
    return %arg0, %arg1 : i32, i32
  }
}

module attributes {stable_mosaic.version = 11 : i64} {
  func.func @_dual_attn_kernel(%arg0: i32, %arg1: i32, %arg2: memref<1x4x96xbf16, #tpu.memory_space<vmem>>, %arg3: memref<1x4x4xbf16, #tpu.memory_space<vmem>>, %arg4: memref<1x4x32xbf16, #tpu.memory_space<vmem>>) attributes {dimension_semantics = [#tpu.dimension_semantics<parallel>, #tpu.dimension_semantics<parallel>], iteration_bounds = array<i64: 4, 4>, scalar_prefetch = 0 : i64, scratch_operands = 0 : i64, tpu.core_type = #tpu.core_type<tc>, window_params = [{transform_indices = @transform_0, window_bounds = array<i64: 1, 4, 96>}, {transform_indices = @transform_1, window_bounds = array<i64: 1, 4, 4>}, {transform_indices = @transform_2, window_bounds = array<i64: 1, 4, 32>}]} {
    %c0 = arith.constant 0 : index
    %c0_0 = arith.constant 0 : index
    %c0_1 = arith.constant 0 : index
    %0 = vector.load %arg2[%c0, %c0_0, %c0_1] : memref<1x4x96xbf16, #tpu.memory_space<vmem>>, vector<1x4x96xbf16>
    %1 = vector.shape_cast %0 : vector<1x4x96xbf16> to vector<4x96xbf16>
    %c2_i32 = arith.constant 2 : i32
    %2 = arith.cmpi slt, %arg0, %c2_i32 : i32
    %3 = arith.extui %2 : i1 to i32
    %c0_i32 = arith.constant 0 : i32
    %4 = arith.cmpi ne, %3, %c0_i32 : i32
    scf.if %4 {
      %8 = vector.extract_strided_slice %1 {offsets = [0, 0], sizes = [4, 4], strides = [1, 1]} : vector<4x96xbf16> to vector<4x4xbf16>
      %9 = vector.extract_strided_slice %1 {offsets = [0, 32], sizes = [4, 4], strides = [1, 1]} : vector<4x96xbf16> to vector<4x4xbf16>
      %10 = vector.extract_strided_slice %1 {offsets = [0, 64], sizes = [4, 4], strides = [1, 1]} : vector<4x96xbf16> to vector<4x4xbf16>
      "tpu.trace_start"() <{level = 10 : i32, message = "qd,kd->qk"}> : () -> ()
      %cst = arith.constant dense<0.000000e+00> : vector<4x4xf32>
      %11 = tpu.matmul %8, %9, %cst {dimension_numbers = #tpu.dot_dimension_numbers<[1], [1], [0], [0], [0, 0, 1, 0], [], []>} : vector<4x4xbf16>, vector<4x4xbf16>, vector<4x4xf32> -> vector<4x4xf32>
      "tpu.trace_stop"() : () -> ()
      %cst_4 = arith.constant dense<0xFF800000> : vector<4xf32>
      %12 = vector.multi_reduction <maximumf>, %11, %cst_4 [1] : vector<4x4xf32> to vector<4xf32>
      %13 = vector.shape_cast %12 : vector<4xf32> to vector<4x1xf32>
      %14 = vector.broadcast %13 : vector<4x1xf32> to vector<4x4xf32>
      %15 = arith.subf %11, %14 : vector<4x4xf32>
      %16 = math.exp %15 : vector<4x4xf32>
      %cst_5 = arith.constant dense<0.000000e+00> : vector<4xf32>
      %17 = vector.multi_reduction <add>, %16, %cst_5 [1] : vector<4x4xf32> to vector<4xf32>
      %18 = vector.shape_cast %17 : vector<4xf32> to vector<4x1xf32>
      %19 = arith.truncf %16 : vector<4x4xf32> to vector<4x4xbf16>
      %cst_6 = arith.constant dense<0.000000e+00> : vector<4x4xf32>
      %20 = tpu.matmul %19, %10, %cst_6 {dimension_numbers = #tpu.dot_dimension_numbers<[1], [0], [0], [1], [0, 0, 1, 1], [], []>} : vector<4x4xbf16>, vector<4x4xbf16>, vector<4x4xf32> -> vector<4x4xf32>
      %21 = tpu.reciprocal %18 {approx = true} : vector<4x1xf32> -> vector<4x1xf32>
      %22 = vector.broadcast %21 : vector<4x1xf32> to vector<4x4xf32>
      %23 = arith.mulf %20, %22 : vector<4x4xf32>
      %24 = arith.truncf %23 : vector<4x4xf32> to vector<4x4xbf16>
      %c0_7 = arith.constant 0 : index
      %c0_8 = arith.constant 0 : index
      %c0_9 = arith.constant 0 : index
      %25 = vector.load %arg4[%c0_7, %c0_8, %c0_9] : memref<1x4x32xbf16, #tpu.memory_space<vmem>>, vector<1x4x4xbf16>
      %26 = vector.shape_cast %25 : vector<1x4x4xbf16> to vector<4x4xbf16>
      %27 = vector.shape_cast %24 : vector<4x4xbf16> to vector<1x4x4xbf16>
      tpu.vector_store %arg4[%c0_7, %c0_8, %c0_9], %27 {strides = array<i32>} : memref<1x4x32xbf16, #tpu.memory_space<vmem>>, vector<1x4x4xbf16>,
      %28 = vector.extract_strided_slice %1 {offsets = [0, 4], sizes = [4, 4], strides = [1, 1]} : vector<4x96xbf16> to vector<4x4xbf16>
      %29 = vector.extract_strided_slice %1 {offsets = [0, 36], sizes = [4, 4], strides = [1, 1]} : vector<4x96xbf16> to vector<4x4xbf16>
      %30 = vector.extract_strided_slice %1 {offsets = [0, 68], sizes = [4, 4], strides = [1, 1]} : vector<4x96xbf16> to vector<4x4xbf16>
      "tpu.trace_start"() <{level = 10 : i32, message = "qd,kd->qk"}> : () -> ()
      %cst_10 = arith.constant dense<0.000000e+00> : vector<4x4xf32>
      %31 = tpu.matmul %28, %29, %cst_10 {dimension_numbers = #tpu.dot_dimension_numbers<[1], [1], [0], [0], [0, 0, 1, 0], [], []>} : vector<4x4xbf16>, vector<4x4xbf16>, vector<4x4xf32> -> vector<4x4xf32>
      "tpu.trace_stop"() : () -> ()
      %cst_11 = arith.constant dense<0xFF800000> : vector<4xf32>
      %32 = vector.multi_reduction <maximumf>, %31, %cst_11 [1] : vector<4x4xf32> to vector<4xf32>
      %33 = vector.shape_cast %32 : vector<4xf32> to vector<4x1xf32>
      %34 = vector.broadcast %33 : vector<4x1xf32> to vector<4x4xf32>
      %35 = arith.subf %31, %34 : vector<4x4xf32>
      %36 = math.exp %35 : vector<4x4xf32>
      %cst_12 = arith.constant dense<0.000000e+00> : vector<4xf32>
      %37 = vector.multi_reduction <add>, %36, %cst_12 [1] : vector<4x4xf32> to vector<4xf32>
      %38 = vector.shape_cast %37 : vector<4xf32> to vector<4x1xf32>
      %39 = arith.truncf %36 : vector<4x4xf32> to vector<4x4xbf16>
      %cst_13 = arith.constant dense<0.000000e+00> : vector<4x4xf32>
      %40 = tpu.matmul %39, %30, %cst_13 {dimension_numbers = #tpu.dot_dimension_numbers<[1], [0], [0], [1], [0, 0, 1, 1], [], []>} : vector<4x4xbf16>, vector<4x4xbf16>, vector<4x4xf32> -> vector<4x4xf32>
      %41 = tpu.reciprocal %38 {approx = true} : vector<4x1xf32> -> vector<4x1xf32>
      %42 = vector.broadcast %41 : vector<4x1xf32> to vector<4x4xf32>
      %43 = arith.mulf %40, %42 : vector<4x4xf32>
      %44 = arith.truncf %43 : vector<4x4xf32> to vector<4x4xbf16>
      %c0_14 = arith.constant 0 : index
      %c0_15 = arith.constant 0 : index
      %c4 = arith.constant 4 : index
      %45 = vector.load %arg4[%c0_14, %c0_15, %c4] : memref<1x4x32xbf16, #tpu.memory_space<vmem>>, vector<1x4x4xbf16>
      %46 = vector.shape_cast %45 : vector<1x4x4xbf16> to vector<4x4xbf16>
      %47 = vector.shape_cast %44 : vector<4x4xbf16> to vector<1x4x4xbf16>
      tpu.vector_store %arg4[%c0_14, %c0_15, %c4], %47 {strides = array<i32>} : memref<1x4x32xbf16, #tpu.memory_space<vmem>>, vector<1x4x4xbf16>,
      %48 = vector.extract_strided_slice %1 {offsets = [0, 8], sizes = [4, 4], strides = [1, 1]} : vector<4x96xbf16> to vector<4x4xbf16>
      %49 = vector.extract_strided_slice %1 {offsets = [0, 40], sizes = [4, 4], strides = [1, 1]} : vector<4x96xbf16> to vector<4x4xbf16>
      %50 = vector.extract_strided_slice %1 {offsets = [0, 72], sizes = [4, 4], strides = [1, 1]} : vector<4x96xbf16> to vector<4x4xbf16>
      "tpu.trace_start"() <{level = 10 : i32, message = "qd,kd->qk"}> : () -> ()
      %cst_16 = arith.constant dense<0.000000e+00> : vector<4x4xf32>
      %51 = tpu.matmul %48, %49, %cst_16 {dimension_numbers = #tpu.dot_dimension_numbers<[1], [1], [0], [0], [0, 0, 1, 0], [], []>} : vector<4x4xbf16>, vector<4x4xbf16>, vector<4x4xf32> -> vector<4x4xf32>
      "tpu.trace_stop"() : () -> ()
      %cst_17 = arith.constant dense<0xFF800000> : vector<4xf32>
      %52 = vector.multi_reduction <maximumf>, %51, %cst_17 [1] : vector<4x4xf32> to vector<4xf32>
      %53 = vector.shape_cast %52 : vector<4xf32> to vector<4x1xf32>
      %54 = vector.broadcast %53 : vector<4x1xf32> to vector<4x4xf32>
      %55 = arith.subf %51, %54 : vector<4x4xf32>
      %56 = math.exp %55 : vector<4x4xf32>
      %cst_18 = arith.constant dense<0.000000e+00> : vector<4xf32>
      %57 = vector.multi_reduction <add>, %56, %cst_18 [1] : vector<4x4xf32> to vector<4xf32>
      %58 = vector.shape_cast %57 : vector<4xf32> to vector<4x1xf32>
      %59 = arith.truncf %56 : vector<4x4xf32> to vector<4x4xbf16>
      %cst_19 = arith.constant dense<0.000000e+00> : vector<4x4xf32>
      %60 = tpu.matmul %59, %50, %cst_19 {dimension_numbers = #tpu.dot_dimension_numbers<[1], [0], [0], [1], [0, 0, 1, 1], [], []>} : vector<4x4xbf16>, vector<4x4xbf16>, vector<4x4xf32> -> vector<4x4xf32>
      %61 = tpu.reciprocal %58 {approx = true} : vector<4x1xf32> -> vector<4x1xf32>
      %62 = vector.broadcast %61 : vector<4x1xf32> to vector<4x4xf32>
      %63 = arith.mulf %60, %62 : vector<4x4xf32>
      %64 = arith.truncf %63 : vector<4x4xf32> to vector<4x4xbf16>
      %c0_20 = arith.constant 0 : index
      %c0_21 = arith.constant 0 : index
      %c8 = arith.constant 8 : index
      %65 = vector.load %arg4[%c0_20, %c0_21, %c8] : memref<1x4x32xbf16, #tpu.memory_space<vmem>>, vector<1x4x4xbf16>
      %66 = vector.shape_cast %65 : vector<1x4x4xbf16> to vector<4x4xbf16>
      %67 = vector.shape_cast %64 : vector<4x4xbf16> to vector<1x4x4xbf16>
      tpu.vector_store %arg4[%c0_20, %c0_21, %c8], %67 {strides = array<i32>} : memref<1x4x32xbf16, #tpu.memory_space<vmem>>, vector<1x4x4xbf16>,
      %68 = vector.extract_strided_slice %1 {offsets = [0, 12], sizes = [4, 4], strides = [1, 1]} : vector<4x96xbf16> to vector<4x4xbf16>
      %69 = vector.extract_strided_slice %1 {offsets = [0, 44], sizes = [4, 4], strides = [1, 1]} : vector<4x96xbf16> to vector<4x4xbf16>
      %70 = vector.extract_strided_slice %1 {offsets = [0, 76], sizes = [4, 4], strides = [1, 1]} : vector<4x96xbf16> to vector<4x4xbf16>
      "tpu.trace_start"() <{level = 10 : i32, message = "qd,kd->qk"}> : () -> ()
      %cst_22 = arith.constant dense<0.000000e+00> : vector<4x4xf32>
      %71 = tpu.matmul %68, %69, %cst_22 {dimension_numbers = #tpu.dot_dimension_numbers<[1], [1], [0], [0], [0, 0, 1, 0], [], []>} : vector<4x4xbf16>, vector<4x4xbf16>, vector<4x4xf32> -> vector<4x4xf32>
      "tpu.trace_stop"() : () -> ()
      %cst_23 = arith.constant dense<0xFF800000> : vector<4xf32>
      %72 = vector.multi_reduction <maximumf>, %71, %cst_23 [1] : vector<4x4xf32> to vector<4xf32>
      %73 = vector.shape_cast %72 : vector<4xf32> to vector<4x1xf32>
      %74 = vector.broadcast %73 : vector<4x1xf32> to vector<4x4xf32>
      %75 = arith.subf %71, %74 : vector<4x4xf32>
      %76 = math.exp %75 : vector<4x4xf32>
      %cst_24 = arith.constant dense<0.000000e+00> : vector<4xf32>
      %77 = vector.multi_reduction <add>, %76, %cst_24 [1] : vector<4x4xf32> to vector<4xf32>
      %78 = vector.shape_cast %77 : vector<4xf32> to vector<4x1xf32>
      %79 = arith.truncf %76 : vector<4x4xf32> to vector<4x4xbf16>
      %cst_25 = arith.constant dense<0.000000e+00> : vector<4x4xf32>
      %80 = tpu.matmul %79, %70, %cst_25 {dimension_numbers = #tpu.dot_dimension_numbers<[1], [0], [0], [1], [0, 0, 1, 1], [], []>} : vector<4x4xbf16>, vector<4x4xbf16>, vector<4x4xf32> -> vector<4x4xf32>
      %81 = tpu.reciprocal %78 {approx = true} : vector<4x1xf32> -> vector<4x1xf32>
      %82 = vector.broadcast %81 : vector<4x1xf32> to vector<4x4xf32>
      %83 = arith.mulf %80, %82 : vector<4x4xf32>
      %84 = arith.truncf %83 : vector<4x4xf32> to vector<4x4xbf16>
      %c0_26 = arith.constant 0 : index
      %c0_27 = arith.constant 0 : index
      %c12 = arith.constant 12 : index
      %85 = vector.load %arg4[%c0_26, %c0_27, %c12] : memref<1x4x32xbf16, #tpu.memory_space<vmem>>, vector<1x4x4xbf16>
      %86 = vector.shape_cast %85 : vector<1x4x4xbf16> to vector<4x4xbf16>
      %87 = vector.shape_cast %84 : vector<4x4xbf16> to vector<1x4x4xbf16>
      tpu.vector_store %arg4[%c0_26, %c0_27, %c12], %87 {strides = array<i32>} : memref<1x4x32xbf16, #tpu.memory_space<vmem>>, vector<1x4x4xbf16>,
      %88 = vector.extract_strided_slice %1 {offsets = [0, 16], sizes = [4, 4], strides = [1, 1]} : vector<4x96xbf16> to vector<4x4xbf16>
      %89 = vector.extract_strided_slice %1 {offsets = [0, 48], sizes = [4, 4], strides = [1, 1]} : vector<4x96xbf16> to vector<4x4xbf16>
      %90 = vector.extract_strided_slice %1 {offsets = [0, 80], sizes = [4, 4], strides = [1, 1]} : vector<4x96xbf16> to vector<4x4xbf16>
      "tpu.trace_start"() <{level = 10 : i32, message = "qd,kd->qk"}> : () -> ()
      %cst_28 = arith.constant dense<0.000000e+00> : vector<4x4xf32>
      %91 = tpu.matmul %88, %89, %cst_28 {dimension_numbers = #tpu.dot_dimension_numbers<[1], [1], [0], [0], [0, 0, 1, 0], [], []>} : vector<4x4xbf16>, vector<4x4xbf16>, vector<4x4xf32> -> vector<4x4xf32>
      "tpu.trace_stop"() : () -> ()
      %cst_29 = arith.constant dense<0xFF800000> : vector<4xf32>
      %92 = vector.multi_reduction <maximumf>, %91, %cst_29 [1] : vector<4x4xf32> to vector<4xf32>
      %93 = vector.shape_cast %92 : vector<4xf32> to vector<4x1xf32>
      %94 = vector.broadcast %93 : vector<4x1xf32> to vector<4x4xf32>
      %95 = arith.subf %91, %94 : vector<4x4xf32>
      %96 = math.exp %95 : vector<4x4xf32>
      %cst_30 = arith.constant dense<0.000000e+00> : vector<4xf32>
      %97 = vector.multi_reduction <add>, %96, %cst_30 [1] : vector<4x4xf32> to vector<4xf32>
      %98 = vector.shape_cast %97 : vector<4xf32> to vector<4x1xf32>
      %99 = arith.truncf %96 : vector<4x4xf32> to vector<4x4xbf16>
      %cst_31 = arith.constant dense<0.000000e+00> : vector<4x4xf32>
      %100 = tpu.matmul %99, %90, %cst_31 {dimension_numbers = #tpu.dot_dimension_numbers<[1], [0], [0], [1], [0, 0, 1, 1], [], []>} : vector<4x4xbf16>, vector<4x4xbf16>, vector<4x4xf32> -> vector<4x4xf32>
      %101 = tpu.reciprocal %98 {approx = true} : vector<4x1xf32> -> vector<4x1xf32>
      %102 = vector.broadcast %101 : vector<4x1xf32> to vector<4x4xf32>
      %103 = arith.mulf %100, %102 : vector<4x4xf32>
      %104 = arith.truncf %103 : vector<4x4xf32> to vector<4x4xbf16>
      %c0_32 = arith.constant 0 : index
      %c0_33 = arith.constant 0 : index
      %c16 = arith.constant 16 : index
      %105 = vector.load %arg4[%c0_32, %c0_33, %c16] : memref<1x4x32xbf16, #tpu.memory_space<vmem>>, vector<1x4x4xbf16>
      %106 = vector.shape_cast %105 : vector<1x4x4xbf16> to vector<4x4xbf16>
      %107 = vector.shape_cast %104 : vector<4x4xbf16> to vector<1x4x4xbf16>
      tpu.vector_store %arg4[%c0_32, %c0_33, %c16], %107 {strides = array<i32>} : memref<1x4x32xbf16, #tpu.memory_space<vmem>>, vector<1x4x4xbf16>,
      %108 = vector.extract_strided_slice %1 {offsets = [0, 20], sizes = [4, 4], strides = [1, 1]} : vector<4x96xbf16> to vector<4x4xbf16>
      %109 = vector.extract_strided_slice %1 {offsets = [0, 52], sizes = [4, 4], strides = [1, 1]} : vector<4x96xbf16> to vector<4x4xbf16>
      %110 = vector.extract_strided_slice %1 {offsets = [0, 84], sizes = [4, 4], strides = [1, 1]} : vector<4x96xbf16> to vector<4x4xbf16>
      "tpu.trace_start"() <{level = 10 : i32, message = "qd,kd->qk"}> : () -> ()
      %cst_34 = arith.constant dense<0.000000e+00> : vector<4x4xf32>
      %111 = tpu.matmul %108, %109, %cst_34 {dimension_numbers = #tpu.dot_dimension_numbers<[1], [1], [0], [0], [0, 0, 1, 0], [], []>} : vector<4x4xbf16>, vector<4x4xbf16>, vector<4x4xf32> -> vector<4x4xf32>
      "tpu.trace_stop"() : () -> ()
      %cst_35 = arith.constant dense<0xFF800000> : vector<4xf32>
      %112 = vector.multi_reduction <maximumf>, %111, %cst_35 [1] : vector<4x4xf32> to vector<4xf32>
      %113 = vector.shape_cast %112 : vector<4xf32> to vector<4x1xf32>
      %114 = vector.broadcast %113 : vector<4x1xf32> to vector<4x4xf32>
      %115 = arith.subf %111, %114 : vector<4x4xf32>
      %116 = math.exp %115 : vector<4x4xf32>
      %cst_36 = arith.constant dense<0.000000e+00> : vector<4xf32>
      %117 = vector.multi_reduction <add>, %116, %cst_36 [1] : vector<4x4xf32> to vector<4xf32>
      %118 = vector.shape_cast %117 : vector<4xf32> to vector<4x1xf32>
      %119 = arith.truncf %116 : vector<4x4xf32> to vector<4x4xbf16>
      %cst_37 = arith.constant dense<0.000000e+00> : vector<4x4xf32>
      %120 = tpu.matmul %119, %110, %cst_37 {dimension_numbers = #tpu.dot_dimension_numbers<[1], [0], [0], [1], [0, 0, 1, 1], [], []>} : vector<4x4xbf16>, vector<4x4xbf16>, vector<4x4xf32> -> vector<4x4xf32>
      %121 = tpu.reciprocal %118 {approx = true} : vector<4x1xf32> -> vector<4x1xf32>
      %122 = vector.broadcast %121 : vector<4x1xf32> to vector<4x4xf32>
      %123 = arith.mulf %120, %122 : vector<4x4xf32>
      %124 = arith.truncf %123 : vector<4x4xf32> to vector<4x4xbf16>
      %c0_38 = arith.constant 0 : index
      %c0_39 = arith.constant 0 : index
      %c20 = arith.constant 20 : index
      %125 = vector.load %arg4[%c0_38, %c0_39, %c20] : memref<1x4x32xbf16, #tpu.memory_space<vmem>>, vector<1x4x4xbf16>
      %126 = vector.shape_cast %125 : vector<1x4x4xbf16> to vector<4x4xbf16>
      %127 = vector.shape_cast %124 : vector<4x4xbf16> to vector<1x4x4xbf16>
      tpu.vector_store %arg4[%c0_38, %c0_39, %c20], %127 {strides = array<i32>} : memref<1x4x32xbf16, #tpu.memory_space<vmem>>, vector<1x4x4xbf16>,
      %128 = vector.extract_strided_slice %1 {offsets = [0, 24], sizes = [4, 4], strides = [1, 1]} : vector<4x96xbf16> to vector<4x4xbf16>
      %129 = vector.extract_strided_slice %1 {offsets = [0, 56], sizes = [4, 4], strides = [1, 1]} : vector<4x96xbf16> to vector<4x4xbf16>
      %130 = vector.extract_strided_slice %1 {offsets = [0, 88], sizes = [4, 4], strides = [1, 1]} : vector<4x96xbf16> to vector<4x4xbf16>
      "tpu.trace_start"() <{level = 10 : i32, message = "qd,kd->qk"}> : () -> ()
      %cst_40 = arith.constant dense<0.000000e+00> : vector<4x4xf32>
      %131 = tpu.matmul %128, %129, %cst_40 {dimension_numbers = #tpu.dot_dimension_numbers<[1], [1], [0], [0], [0, 0, 1, 0], [], []>} : vector<4x4xbf16>, vector<4x4xbf16>, vector<4x4xf32> -> vector<4x4xf32>
      "tpu.trace_stop"() : () -> ()
      %cst_41 = arith.constant dense<0xFF800000> : vector<4xf32>
      %132 = vector.multi_reduction <maximumf>, %131, %cst_41 [1] : vector<4x4xf32> to vector<4xf32>
      %133 = vector.shape_cast %132 : vector<4xf32> to vector<4x1xf32>
      %134 = vector.broadcast %133 : vector<4x1xf32> to vector<4x4xf32>
      %135 = arith.subf %131, %134 : vector<4x4xf32>
      %136 = math.exp %135 : vector<4x4xf32>
      %cst_42 = arith.constant dense<0.000000e+00> : vector<4xf32>
      %137 = vector.multi_reduction <add>, %136, %cst_42 [1] : vector<4x4xf32> to vector<4xf32>
      %138 = vector.shape_cast %137 : vector<4xf32> to vector<4x1xf32>
      %139 = arith.truncf %136 : vector<4x4xf32> to vector<4x4xbf16>
      %cst_43 = arith.constant dense<0.000000e+00> : vector<4x4xf32>
      %140 = tpu.matmul %139, %130, %cst_43 {dimension_numbers = #tpu.dot_dimension_numbers<[1], [0], [0], [1], [0, 0, 1, 1], [], []>} : vector<4x4xbf16>, vector<4x4xbf16>, vector<4x4xf32> -> vector<4x4xf32>
      %141 = tpu.reciprocal %138 {approx = true} : vector<4x1xf32> -> vector<4x1xf32>
      %142 = vector.broadcast %141 : vector<4x1xf32> to vector<4x4xf32>
      %143 = arith.mulf %140, %142 : vector<4x4xf32>
      %144 = arith.truncf %143 : vector<4x4xf32> to vector<4x4xbf16>
      %c0_44 = arith.constant 0 : index
      %c0_45 = arith.constant 0 : index
      %c24 = arith.constant 24 : index
      %145 = vector.load %arg4[%c0_44, %c0_45, %c24] : memref<1x4x32xbf16, #tpu.memory_space<vmem>>, vector<1x4x4xbf16>
      %146 = vector.shape_cast %145 : vector<1x4x4xbf16> to vector<4x4xbf16>
      %147 = vector.shape_cast %144 : vector<4x4xbf16> to vector<1x4x4xbf16>
      tpu.vector_store %arg4[%c0_44, %c0_45, %c24], %147 {strides = array<i32>} : memref<1x4x32xbf16, #tpu.memory_space<vmem>>, vector<1x4x4xbf16>,
      %148 = vector.extract_strided_slice %1 {offsets = [0, 28], sizes = [4, 4], strides = [1, 1]} : vector<4x96xbf16> to vector<4x4xbf16>
      %149 = vector.extract_strided_slice %1 {offsets = [0, 60], sizes = [4, 4], strides = [1, 1]} : vector<4x96xbf16> to vector<4x4xbf16>
      %150 = vector.extract_strided_slice %1 {offsets = [0, 92], sizes = [4, 4], strides = [1, 1]} : vector<4x96xbf16> to vector<4x4xbf16>
      "tpu.trace_start"() <{level = 10 : i32, message = "qd,kd->qk"}> : () -> ()
      %cst_46 = arith.constant dense<0.000000e+00> : vector<4x4xf32>
      %151 = tpu.matmul %148, %149, %cst_46 {dimension_numbers = #tpu.dot_dimension_numbers<[1], [1], [0], [0], [0, 0, 1, 0], [], []>} : vector<4x4xbf16>, vector<4x4xbf16>, vector<4x4xf32> -> vector<4x4xf32>
      "tpu.trace_stop"() : () -> ()
      %cst_47 = arith.constant dense<0xFF800000> : vector<4xf32>
      %152 = vector.multi_reduction <maximumf>, %151, %cst_47 [1] : vector<4x4xf32> to vector<4xf32>
      %153 = vector.shape_cast %152 : vector<4xf32> to vector<4x1xf32>
      %154 = vector.broadcast %153 : vector<4x1xf32> to vector<4x4xf32>
      %155 = arith.subf %151, %154 : vector<4x4xf32>
      %156 = math.exp %155 : vector<4x4xf32>
      %cst_48 = arith.constant dense<0.000000e+00> : vector<4xf32>
      %157 = vector.multi_reduction <add>, %156, %cst_48 [1] : vector<4x4xf32> to vector<4xf32>
      %158 = vector.shape_cast %157 : vector<4xf32> to vector<4x1xf32>
      %159 = arith.truncf %156 : vector<4x4xf32> to vector<4x4xbf16>
      %cst_49 = arith.constant dense<0.000000e+00> : vector<4x4xf32>
      %160 = tpu.matmul %159, %150, %cst_49 {dimension_numbers = #tpu.dot_dimension_numbers<[1], [0], [0], [1], [0, 0, 1, 1], [], []>} : vector<4x4xbf16>, vector<4x4xbf16>, vector<4x4xf32> -> vector<4x4xf32>
      %161 = tpu.reciprocal %158 {approx = true} : vector<4x1xf32> -> vector<4x1xf32>
      %162 = vector.broadcast %161 : vector<4x1xf32> to vector<4x4xf32>
      %163 = arith.mulf %160, %162 : vector<4x4xf32>
      %164 = arith.truncf %163 : vector<4x4xf32> to vector<4x4xbf16>
      %c0_50 = arith.constant 0 : index
      %c0_51 = arith.constant 0 : index
      %c28 = arith.constant 28 : index
      %165 = vector.load %arg4[%c0_50, %c0_51, %c28] : memref<1x4x32xbf16, #tpu.memory_space<vmem>>, vector<1x4x4xbf16>
      %166 = vector.shape_cast %165 : vector<1x4x4xbf16> to vector<4x4xbf16>
      %167 = vector.shape_cast %164 : vector<4x4xbf16> to vector<1x4x4xbf16>
      tpu.vector_store %arg4[%c0_50, %c0_51, %c28], %167 {strides = array<i32>} : memref<1x4x32xbf16, #tpu.memory_space<vmem>>, vector<1x4x4xbf16>,
    } else {
    }
    %c2_i32_2 = arith.constant 2 : i32
    %5 = arith.cmpi sge, %arg0, %c2_i32_2 : i32
    %6 = arith.extui %5 : i1 to i32
    %c0_i32_3 = arith.constant 0 : i32
    %7 = arith.cmpi ne, %6, %c0_i32_3 : i32
    scf.if %7 {
      %c0_4 = arith.constant 0 : index
      %c0_5 = arith.constant 0 : index
      %c0_6 = arith.constant 0 : index
      %8 = vector.load %arg3[%c0_4, %c0_5, %c0_6] : memref<1x4x4xbf16, #tpu.memory_space<vmem>>, vector<1x4x4xbf16>
      %9 = vector.shape_cast %8 : vector<1x4x4xbf16> to vector<4x4xbf16>
      %10 = vector.extract_strided_slice %1 {offsets = [0, 0], sizes = [4, 4], strides = [1, 1]} : vector<4x96xbf16> to vector<4x4xbf16>
      %11 = vector.extract_strided_slice %1 {offsets = [0, 64], sizes = [4, 4], strides = [1, 1]} : vector<4x96xbf16> to vector<4x4xbf16>
      "tpu.trace_start"() <{level = 10 : i32, message = "qd,kd->qk"}> : () -> ()
      %cst = arith.constant dense<0.000000e+00> : vector<4x4xf32>
      %12 = tpu.matmul %10, %9, %cst {dimension_numbers = #tpu.dot_dimension_numbers<[1], [1], [0], [0], [0, 0, 1, 0], [], []>} : vector<4x4xbf16>, vector<4x4xbf16>, vector<4x4xf32> -> vector<4x4xf32>
      "tpu.trace_stop"() : () -> ()
      %cst_7 = arith.constant dense<0xFF800000> : vector<4xf32>
      %13 = vector.multi_reduction <maximumf>, %12, %cst_7 [1] : vector<4x4xf32> to vector<4xf32>
      %14 = vector.shape_cast %13 : vector<4xf32> to vector<4x1xf32>
      %15 = vector.broadcast %14 : vector<4x1xf32> to vector<4x4xf32>
      %16 = arith.subf %12, %15 : vector<4x4xf32>
      %17 = math.exp %16 : vector<4x4xf32>
      %cst_8 = arith.constant dense<0.000000e+00> : vector<4xf32>
      %18 = vector.multi_reduction <add>, %17, %cst_8 [1] : vector<4x4xf32> to vector<4xf32>
      %19 = vector.shape_cast %18 : vector<4xf32> to vector<4x1xf32>
      %20 = arith.truncf %17 : vector<4x4xf32> to vector<4x4xbf16>
      %cst_9 = arith.constant dense<0.000000e+00> : vector<4x4xf32>
      %21 = tpu.matmul %20, %11, %cst_9 {dimension_numbers = #tpu.dot_dimension_numbers<[1], [0], [0], [1], [0, 0, 1, 1], [], []>} : vector<4x4xbf16>, vector<4x4xbf16>, vector<4x4xf32> -> vector<4x4xf32>
      %22 = tpu.reciprocal %19 {approx = true} : vector<4x1xf32> -> vector<4x1xf32>
      %23 = vector.broadcast %22 : vector<4x1xf32> to vector<4x4xf32>
      %24 = arith.mulf %21, %23 : vector<4x4xf32>
      %25 = arith.truncf %24 : vector<4x4xf32> to vector<4x4xbf16>
      %c0_10 = arith.constant 0 : index
      %c0_11 = arith.constant 0 : index
      %c0_12 = arith.constant 0 : index
      %26 = vector.load %arg4[%c0_10, %c0_11, %c0_12] : memref<1x4x32xbf16, #tpu.memory_space<vmem>>, vector<1x4x4xbf16>
      %27 = vector.shape_cast %26 : vector<1x4x4xbf16> to vector<4x4xbf16>
      %28 = vector.shape_cast %25 : vector<4x4xbf16> to vector<1x4x4xbf16>
      tpu.vector_store %arg4[%c0_10, %c0_11, %c0_12], %28 {strides = array<i32>} : memref<1x4x32xbf16, #tpu.memory_space<vmem>>, vector<1x4x4xbf16>,
      %29 = vector.extract_strided_slice %1 {offsets = [0, 4], sizes = [4, 4], strides = [1, 1]} : vector<4x96xbf16> to vector<4x4xbf16>
      %30 = vector.extract_strided_slice %1 {offsets = [0, 68], sizes = [4, 4], strides = [1, 1]} : vector<4x96xbf16> to vector<4x4xbf16>
      "tpu.trace_start"() <{level = 10 : i32, message = "qd,kd->qk"}> : () -> ()
      %cst_13 = arith.constant dense<0.000000e+00> : vector<4x4xf32>
      %31 = tpu.matmul %29, %9, %cst_13 {dimension_numbers = #tpu.dot_dimension_numbers<[1], [1], [0], [0], [0, 0, 1, 0], [], []>} : vector<4x4xbf16>, vector<4x4xbf16>, vector<4x4xf32> -> vector<4x4xf32>
      "tpu.trace_stop"() : () -> ()
      %cst_14 = arith.constant dense<0xFF800000> : vector<4xf32>
      %32 = vector.multi_reduction <maximumf>, %31, %cst_14 [1] : vector<4x4xf32> to vector<4xf32>
      %33 = vector.shape_cast %32 : vector<4xf32> to vector<4x1xf32>
      %34 = vector.broadcast %33 : vector<4x1xf32> to vector<4x4xf32>
      %35 = arith.subf %31, %34 : vector<4x4xf32>
      %36 = math.exp %35 : vector<4x4xf32>
      %cst_15 = arith.constant dense<0.000000e+00> : vector<4xf32>
      %37 = vector.multi_reduction <add>, %36, %cst_15 [1] : vector<4x4xf32> to vector<4xf32>
      %38 = vector.shape_cast %37 : vector<4xf32> to vector<4x1xf32>
      %39 = arith.truncf %36 : vector<4x4xf32> to vector<4x4xbf16>
      %cst_16 = arith.constant dense<0.000000e+00> : vector<4x4xf32>
      %40 = tpu.matmul %39, %30, %cst_16 {dimension_numbers = #tpu.dot_dimension_numbers<[1], [0], [0], [1], [0, 0, 1, 1], [], []>} : vector<4x4xbf16>, vector<4x4xbf16>, vector<4x4xf32> -> vector<4x4xf32>
      %41 = tpu.reciprocal %38 {approx = true} : vector<4x1xf32> -> vector<4x1xf32>
      %42 = vector.broadcast %41 : vector<4x1xf32> to vector<4x4xf32>
      %43 = arith.mulf %40, %42 : vector<4x4xf32>
      %44 = arith.truncf %43 : vector<4x4xf32> to vector<4x4xbf16>
      %c0_17 = arith.constant 0 : index
      %c0_18 = arith.constant 0 : index
      %c4 = arith.constant 4 : index
      %45 = vector.load %arg4[%c0_17, %c0_18, %c4] : memref<1x4x32xbf16, #tpu.memory_space<vmem>>, vector<1x4x4xbf16>
      %46 = vector.shape_cast %45 : vector<1x4x4xbf16> to vector<4x4xbf16>
      %47 = vector.shape_cast %44 : vector<4x4xbf16> to vector<1x4x4xbf16>
      tpu.vector_store %arg4[%c0_17, %c0_18, %c4], %47 {strides = array<i32>} : memref<1x4x32xbf16, #tpu.memory_space<vmem>>, vector<1x4x4xbf16>,
      %48 = vector.extract_strided_slice %1 {offsets = [0, 8], sizes = [4, 4], strides = [1, 1]} : vector<4x96xbf16> to vector<4x4xbf16>
      %49 = vector.extract_strided_slice %1 {offsets = [0, 72], sizes = [4, 4], strides = [1, 1]} : vector<4x96xbf16> to vector<4x4xbf16>
      "tpu.trace_start"() <{level = 10 : i32, message = "qd,kd->qk"}> : () -> ()
      %cst_19 = arith.constant dense<0.000000e+00> : vector<4x4xf32>
      %50 = tpu.matmul %48, %9, %cst_19 {dimension_numbers = #tpu.dot_dimension_numbers<[1], [1], [0], [0], [0, 0, 1, 0], [], []>} : vector<4x4xbf16>, vector<4x4xbf16>, vector<4x4xf32> -> vector<4x4xf32>
      "tpu.trace_stop"() : () -> ()
      %cst_20 = arith.constant dense<0xFF800000> : vector<4xf32>
      %51 = vector.multi_reduction <maximumf>, %50, %cst_20 [1] : vector<4x4xf32> to vector<4xf32>
      %52 = vector.shape_cast %51 : vector<4xf32> to vector<4x1xf32>
      %53 = vector.broadcast %52 : vector<4x1xf32> to vector<4x4xf32>
      %54 = arith.subf %50, %53 : vector<4x4xf32>
      %55 = math.exp %54 : vector<4x4xf32>
      %cst_21 = arith.constant dense<0.000000e+00> : vector<4xf32>
      %56 = vector.multi_reduction <add>, %55, %cst_21 [1] : vector<4x4xf32> to vector<4xf32>
      %57 = vector.shape_cast %56 : vector<4xf32> to vector<4x1xf32>
      %58 = arith.truncf %55 : vector<4x4xf32> to vector<4x4xbf16>
      %cst_22 = arith.constant dense<0.000000e+00> : vector<4x4xf32>
      %59 = tpu.matmul %58, %49, %cst_22 {dimension_numbers = #tpu.dot_dimension_numbers<[1], [0], [0], [1], [0, 0, 1, 1], [], []>} : vector<4x4xbf16>, vector<4x4xbf16>, vector<4x4xf32> -> vector<4x4xf32>
      %60 = tpu.reciprocal %57 {approx = true} : vector<4x1xf32> -> vector<4x1xf32>
      %61 = vector.broadcast %60 : vector<4x1xf32> to vector<4x4xf32>
      %62 = arith.mulf %59, %61 : vector<4x4xf32>
      %63 = arith.truncf %62 : vector<4x4xf32> to vector<4x4xbf16>
      %c0_23 = arith.constant 0 : index
      %c0_24 = arith.constant 0 : index
      %c8 = arith.constant 8 : index
      %64 = vector.load %arg4[%c0_23, %c0_24, %c8] : memref<1x4x32xbf16, #tpu.memory_space<vmem>>, vector<1x4x4xbf16>
      %65 = vector.shape_cast %64 : vector<1x4x4xbf16> to vector<4x4xbf16>
      %66 = vector.shape_cast %63 : vector<4x4xbf16> to vector<1x4x4xbf16>
      tpu.vector_store %arg4[%c0_23, %c0_24, %c8], %66 {strides = array<i32>} : memref<1x4x32xbf16, #tpu.memory_space<vmem>>, vector<1x4x4xbf16>,
      %67 = vector.extract_strided_slice %1 {offsets = [0, 12], sizes = [4, 4], strides = [1, 1]} : vector<4x96xbf16> to vector<4x4xbf16>
      %68 = vector.extract_strided_slice %1 {offsets = [0, 76], sizes = [4, 4], strides = [1, 1]} : vector<4x96xbf16> to vector<4x4xbf16>
      "tpu.trace_start"() <{level = 10 : i32, message = "qd,kd->qk"}> : () -> ()
      %cst_25 = arith.constant dense<0.000000e+00> : vector<4x4xf32>
      %69 = tpu.matmul %67, %9, %cst_25 {dimension_numbers = #tpu.dot_dimension_numbers<[1], [1], [0], [0], [0, 0, 1, 0], [], []>} : vector<4x4xbf16>, vector<4x4xbf16>, vector<4x4xf32> -> vector<4x4xf32>
      "tpu.trace_stop"() : () -> ()
      %cst_26 = arith.constant dense<0xFF800000> : vector<4xf32>
      %70 = vector.multi_reduction <maximumf>, %69, %cst_26 [1] : vector<4x4xf32> to vector<4xf32>
      %71 = vector.shape_cast %70 : vector<4xf32> to vector<4x1xf32>
      %72 = vector.broadcast %71 : vector<4x1xf32> to vector<4x4xf32>
      %73 = arith.subf %69, %72 : vector<4x4xf32>
      %74 = math.exp %73 : vector<4x4xf32>
      %cst_27 = arith.constant dense<0.000000e+00> : vector<4xf32>
      %75 = vector.multi_reduction <add>, %74, %cst_27 [1] : vector<4x4xf32> to vector<4xf32>
      %76 = vector.shape_cast %75 : vector<4xf32> to vector<4x1xf32>
      %77 = arith.truncf %74 : vector<4x4xf32> to vector<4x4xbf16>
      %cst_28 = arith.constant dense<0.000000e+00> : vector<4x4xf32>
      %78 = tpu.matmul %77, %68, %cst_28 {dimension_numbers = #tpu.dot_dimension_numbers<[1], [0], [0], [1], [0, 0, 1, 1], [], []>} : vector<4x4xbf16>, vector<4x4xbf16>, vector<4x4xf32> -> vector<4x4xf32>
      %79 = tpu.reciprocal %76 {approx = true} : vector<4x1xf32> -> vector<4x1xf32>
      %80 = vector.broadcast %79 : vector<4x1xf32> to vector<4x4xf32>
      %81 = arith.mulf %78, %80 : vector<4x4xf32>
      %82 = arith.truncf %81 : vector<4x4xf32> to vector<4x4xbf16>
      %c0_29 = arith.constant 0 : index
      %c0_30 = arith.constant 0 : index
      %c12 = arith.constant 12 : index
      %83 = vector.load %arg4[%c0_29, %c0_30, %c12] : memref<1x4x32xbf16, #tpu.memory_space<vmem>>, vector<1x4x4xbf16>
      %84 = vector.shape_cast %83 : vector<1x4x4xbf16> to vector<4x4xbf16>
      %85 = vector.shape_cast %82 : vector<4x4xbf16> to vector<1x4x4xbf16>
      tpu.vector_store %arg4[%c0_29, %c0_30, %c12], %85 {strides = array<i32>} : memref<1x4x32xbf16, #tpu.memory_space<vmem>>, vector<1x4x4xbf16>,
      %86 = vector.extract_strided_slice %1 {offsets = [0, 16], sizes = [4, 4], strides = [1, 1]} : vector<4x96xbf16> to vector<4x4xbf16>
      %87 = vector.extract_strided_slice %1 {offsets = [0, 80], sizes = [4, 4], strides = [1, 1]} : vector<4x96xbf16> to vector<4x4xbf16>
      "tpu.trace_start"() <{level = 10 : i32, message = "qd,kd->qk"}> : () -> ()
      %cst_31 = arith.constant dense<0.000000e+00> : vector<4x4xf32>
      %88 = tpu.matmul %86, %9, %cst_31 {dimension_numbers = #tpu.dot_dimension_numbers<[1], [1], [0], [0], [0, 0, 1, 0], [], []>} : vector<4x4xbf16>, vector<4x4xbf16>, vector<4x4xf32> -> vector<4x4xf32>
      "tpu.trace_stop"() : () -> ()
      %cst_32 = arith.constant dense<0xFF800000> : vector<4xf32>
      %89 = vector.multi_reduction <maximumf>, %88, %cst_32 [1] : vector<4x4xf32> to vector<4xf32>
      %90 = vector.shape_cast %89 : vector<4xf32> to vector<4x1xf32>
      %91 = vector.broadcast %90 : vector<4x1xf32> to vector<4x4xf32>
      %92 = arith.subf %88, %91 : vector<4x4xf32>
      %93 = math.exp %92 : vector<4x4xf32>
      %cst_33 = arith.constant dense<0.000000e+00> : vector<4xf32>
      %94 = vector.multi_reduction <add>, %93, %cst_33 [1] : vector<4x4xf32> to vector<4xf32>
      %95 = vector.shape_cast %94 : vector<4xf32> to vector<4x1xf32>
      %96 = arith.truncf %93 : vector<4x4xf32> to vector<4x4xbf16>
      %cst_34 = arith.constant dense<0.000000e+00> : vector<4x4xf32>
      %97 = tpu.matmul %96, %87, %cst_34 {dimension_numbers = #tpu.dot_dimension_numbers<[1], [0], [0], [1], [0, 0, 1, 1], [], []>} : vector<4x4xbf16>, vector<4x4xbf16>, vector<4x4xf32> -> vector<4x4xf32>
      %98 = tpu.reciprocal %95 {approx = true} : vector<4x1xf32> -> vector<4x1xf32>
      %99 = vector.broadcast %98 : vector<4x1xf32> to vector<4x4xf32>
      %100 = arith.mulf %97, %99 : vector<4x4xf32>
      %101 = arith.truncf %100 : vector<4x4xf32> to vector<4x4xbf16>
      %c0_35 = arith.constant 0 : index
      %c0_36 = arith.constant 0 : index
      %c16 = arith.constant 16 : index
      %102 = vector.load %arg4[%c0_35, %c0_36, %c16] : memref<1x4x32xbf16, #tpu.memory_space<vmem>>, vector<1x4x4xbf16>
      %103 = vector.shape_cast %102 : vector<1x4x4xbf16> to vector<4x4xbf16>
      %104 = vector.shape_cast %101 : vector<4x4xbf16> to vector<1x4x4xbf16>
      tpu.vector_store %arg4[%c0_35, %c0_36, %c16], %104 {strides = array<i32>} : memref<1x4x32xbf16, #tpu.memory_space<vmem>>, vector<1x4x4xbf16>,
      %105 = vector.extract_strided_slice %1 {offsets = [0, 20], sizes = [4, 4], strides = [1, 1]} : vector<4x96xbf16> to vector<4x4xbf16>
      %106 = vector.extract_strided_slice %1 {offsets = [0, 84], sizes = [4, 4], strides = [1, 1]} : vector<4x96xbf16> to vector<4x4xbf16>
      "tpu.trace_start"() <{level = 10 : i32, message = "qd,kd->qk"}> : () -> ()
      %cst_37 = arith.constant dense<0.000000e+00> : vector<4x4xf32>
      %107 = tpu.matmul %105, %9, %cst_37 {dimension_numbers = #tpu.dot_dimension_numbers<[1], [1], [0], [0], [0, 0, 1, 0], [], []>} : vector<4x4xbf16>, vector<4x4xbf16>, vector<4x4xf32> -> vector<4x4xf32>
      "tpu.trace_stop"() : () -> ()
      %cst_38 = arith.constant dense<0xFF800000> : vector<4xf32>
      %108 = vector.multi_reduction <maximumf>, %107, %cst_38 [1] : vector<4x4xf32> to vector<4xf32>
      %109 = vector.shape_cast %108 : vector<4xf32> to vector<4x1xf32>
      %110 = vector.broadcast %109 : vector<4x1xf32> to vector<4x4xf32>
      %111 = arith.subf %107, %110 : vector<4x4xf32>
      %112 = math.exp %111 : vector<4x4xf32>
      %cst_39 = arith.constant dense<0.000000e+00> : vector<4xf32>
      %113 = vector.multi_reduction <add>, %112, %cst_39 [1] : vector<4x4xf32> to vector<4xf32>
      %114 = vector.shape_cast %113 : vector<4xf32> to vector<4x1xf32>
      %115 = arith.truncf %112 : vector<4x4xf32> to vector<4x4xbf16>
      %cst_40 = arith.constant dense<0.000000e+00> : vector<4x4xf32>
      %116 = tpu.matmul %115, %106, %cst_40 {dimension_numbers = #tpu.dot_dimension_numbers<[1], [0], [0], [1], [0, 0, 1, 1], [], []>} : vector<4x4xbf16>, vector<4x4xbf16>, vector<4x4xf32> -> vector<4x4xf32>
      %117 = tpu.reciprocal %114 {approx = true} : vector<4x1xf32> -> vector<4x1xf32>
      %118 = vector.broadcast %117 : vector<4x1xf32> to vector<4x4xf32>
      %119 = arith.mulf %116, %118 : vector<4x4xf32>
      %120 = arith.truncf %119 : vector<4x4xf32> to vector<4x4xbf16>
      %c0_41 = arith.constant 0 : index
      %c0_42 = arith.constant 0 : index
      %c20 = arith.constant 20 : index
      %121 = vector.load %arg4[%c0_41, %c0_42, %c20] : memref<1x4x32xbf16, #tpu.memory_space<vmem>>, vector<1x4x4xbf16>
      %122 = vector.shape_cast %121 : vector<1x4x4xbf16> to vector<4x4xbf16>
      %123 = vector.shape_cast %120 : vector<4x4xbf16> to vector<1x4x4xbf16>
      tpu.vector_store %arg4[%c0_41, %c0_42, %c20], %123 {strides = array<i32>} : memref<1x4x32xbf16, #tpu.memory_space<vmem>>, vector<1x4x4xbf16>,
      %124 = vector.extract_strided_slice %1 {offsets = [0, 24], sizes = [4, 4], strides = [1, 1]} : vector<4x96xbf16> to vector<4x4xbf16>
      %125 = vector.extract_strided_slice %1 {offsets = [0, 88], sizes = [4, 4], strides = [1, 1]} : vector<4x96xbf16> to vector<4x4xbf16>
      "tpu.trace_start"() <{level = 10 : i32, message = "qd,kd->qk"}> : () -> ()
      %cst_43 = arith.constant dense<0.000000e+00> : vector<4x4xf32>
      %126 = tpu.matmul %124, %9, %cst_43 {dimension_numbers = #tpu.dot_dimension_numbers<[1], [1], [0], [0], [0, 0, 1, 0], [], []>} : vector<4x4xbf16>, vector<4x4xbf16>, vector<4x4xf32> -> vector<4x4xf32>
      "tpu.trace_stop"() : () -> ()
      %cst_44 = arith.constant dense<0xFF800000> : vector<4xf32>
      %127 = vector.multi_reduction <maximumf>, %126, %cst_44 [1] : vector<4x4xf32> to vector<4xf32>
      %128 = vector.shape_cast %127 : vector<4xf32> to vector<4x1xf32>
      %129 = vector.broadcast %128 : vector<4x1xf32> to vector<4x4xf32>
      %130 = arith.subf %126, %129 : vector<4x4xf32>
      %131 = math.exp %130 : vector<4x4xf32>
      %cst_45 = arith.constant dense<0.000000e+00> : vector<4xf32>
      %132 = vector.multi_reduction <add>, %131, %cst_45 [1] : vector<4x4xf32> to vector<4xf32>
      %133 = vector.shape_cast %132 : vector<4xf32> to vector<4x1xf32>
      %134 = arith.truncf %131 : vector<4x4xf32> to vector<4x4xbf16>
      %cst_46 = arith.constant dense<0.000000e+00> : vector<4x4xf32>
      %135 = tpu.matmul %134, %125, %cst_46 {dimension_numbers = #tpu.dot_dimension_numbers<[1], [0], [0], [1], [0, 0, 1, 1], [], []>} : vector<4x4xbf16>, vector<4x4xbf16>, vector<4x4xf32> -> vector<4x4xf32>
      %136 = tpu.reciprocal %133 {approx = true} : vector<4x1xf32> -> vector<4x1xf32>
      %137 = vector.broadcast %136 : vector<4x1xf32> to vector<4x4xf32>
      %138 = arith.mulf %135, %137 : vector<4x4xf32>
      %139 = arith.truncf %138 : vector<4x4xf32> to vector<4x4xbf16>
      %c0_47 = arith.constant 0 : index
      %c0_48 = arith.constant 0 : index
      %c24 = arith.constant 24 : index
      %140 = vector.load %arg4[%c0_47, %c0_48, %c24] : memref<1x4x32xbf16, #tpu.memory_space<vmem>>, vector<1x4x4xbf16>
      %141 = vector.shape_cast %140 : vector<1x4x4xbf16> to vector<4x4xbf16>
      %142 = vector.shape_cast %139 : vector<4x4xbf16> to vector<1x4x4xbf16>
      tpu.vector_store %arg4[%c0_47, %c0_48, %c24], %142 {strides = array<i32>} : memref<1x4x32xbf16, #tpu.memory_space<vmem>>, vector<1x4x4xbf16>,
      %143 = vector.extract_strided_slice %1 {offsets = [0, 28], sizes = [4, 4], strides = [1, 1]} : vector<4x96xbf16> to vector<4x4xbf16>
      %144 = vector.extract_strided_slice %1 {offsets = [0, 92], sizes = [4, 4], strides = [1, 1]} : vector<4x96xbf16> to vector<4x4xbf16>
      "tpu.trace_start"() <{level = 10 : i32, message = "qd,kd->qk"}> : () -> ()
      %cst_49 = arith.constant dense<0.000000e+00> : vector<4x4xf32>
      %145 = tpu.matmul %143, %9, %cst_49 {dimension_numbers = #tpu.dot_dimension_numbers<[1], [1], [0], [0], [0, 0, 1, 0], [], []>} : vector<4x4xbf16>, vector<4x4xbf16>, vector<4x4xf32> -> vector<4x4xf32>
      "tpu.trace_stop"() : () -> ()
      %cst_50 = arith.constant dense<0xFF800000> : vector<4xf32>
      %146 = vector.multi_reduction <maximumf>, %145, %cst_50 [1] : vector<4x4xf32> to vector<4xf32>
      %147 = vector.shape_cast %146 : vector<4xf32> to vector<4x1xf32>
      %148 = vector.broadcast %147 : vector<4x1xf32> to vector<4x4xf32>
      %149 = arith.subf %145, %148 : vector<4x4xf32>
      %150 = math.exp %149 : vector<4x4xf32>
      %cst_51 = arith.constant dense<0.000000e+00> : vector<4xf32>
      %151 = vector.multi_reduction <add>, %150, %cst_51 [1] : vector<4x4xf32> to vector<4xf32>
      %152 = vector.shape_cast %151 : vector<4xf32> to vector<4x1xf32>
      %153 = arith.truncf %150 : vector<4x4xf32> to vector<4x4xbf16>
      %cst_52 = arith.constant dense<0.000000e+00> : vector<4x4xf32>
      %154 = tpu.matmul %153, %144, %cst_52 {dimension_numbers = #tpu.dot_dimension_numbers<[1], [0], [0], [1], [0, 0, 1, 1], [], []>} : vector<4x4xbf16>, vector<4x4xbf16>, vector<4x4xf32> -> vector<4x4xf32>
      %155 = tpu.reciprocal %152 {approx = true} : vector<4x1xf32> -> vector<4x1xf32>
      %156 = vector.broadcast %155 : vector<4x1xf32> to vector<4x4xf32>
      %157 = arith.mulf %154, %156 : vector<4x4xf32>
      %158 = arith.truncf %157 : vector<4x4xf32> to vector<4x4xbf16>
      %c0_53 = arith.constant 0 : index
      %c0_54 = arith.constant 0 : index
      %c28 = arith.constant 28 : index
      %159 = vector.load %arg4[%c0_53, %c0_54, %c28] : memref<1x4x32xbf16, #tpu.memory_space<vmem>>, vector<1x4x4xbf16>
      %160 = vector.shape_cast %159 : vector<1x4x4xbf16> to vector<4x4xbf16>
      %161 = vector.shape_cast %158 : vector<4x4xbf16> to vector<1x4x4xbf16>
      tpu.vector_store %arg4[%c0_53, %c0_54, %c28], %161 {strides = array<i32>} : memref<1x4x32xbf16, #tpu.memory_space<vmem>>, vector<1x4x4xbf16>,
    } else {
    }
    return
  }
  func.func @transform_0(%arg0: i32, %arg1: i32) -> (i32, i32, i32) {
    %c4_i32 = arith.constant 4 : i32
    %0 = arith.muli %arg0, %c4_i32 : i32
    %1 = arith.addi %0, %arg1 : i32
    %c0_i32 = arith.constant 0 : i32
    %c0_i32_0 = arith.constant 0 : i32
    %c0_i32_1 = arith.constant 0 : i32
    return %1, %c0_i32, %c0_i32_0 : i32, i32, i32
  }
  func.func @transform_1(%arg0: i32, %arg1: i32) -> (i32, i32, i32) {
    %c0_i32 = arith.constant 0 : i32
    %c0_i32_0 = arith.constant 0 : i32
    %c0_i32_1 = arith.constant 0 : i32
    return %arg1, %c0_i32, %c0_i32_0 : i32, i32, i32
  }
  func.func @transform_2(%arg0: i32, %arg1: i32) -> (i32, i32, i32) {
    %c4_i32 = arith.constant 4 : i32
    %0 = arith.muli %arg0, %c4_i32 : i32
    %1 = arith.addi %0, %arg1 : i32
    %c0_i32 = arith.constant 0 : i32
    %c0_i32_0 = arith.constant 0 : i32
    %c0_i32_1 = arith.constant 0 : i32
    return %1, %c0_i32, %c0_i32_0 : i32, i32, i32
  }
}

module attributes {stable_mosaic.version = 11 : i64} {
  func.func @_matmul_bias_kernel(%arg0: i32, %arg1: i32, %arg2: i32, %arg3: memref<64x32xbf16, #tpu.memory_space<vmem>>, %arg4: memref<32x64xbf16, #tpu.memory_space<vmem>>, %arg5: memref<1x64xf32, #tpu.memory_space<vmem>>, %arg6: memref<64x64xf32, #tpu.memory_space<vmem>>) attributes {dimension_semantics = [#tpu.dimension_semantics<parallel>, #tpu.dimension_semantics<parallel>, #tpu.dimension_semantics<arbitrary>], iteration_bounds = array<i64: 1, 1, 1>, scalar_prefetch = 0 : i64, scratch_operands = 0 : i64, tpu.core_type = #tpu.core_type<tc>, window_params = [{transform_indices = @transform_0, window_bounds = array<i64: 64, 32>}, {transform_indices = @transform_1, window_bounds = array<i64: 32, 64>}, {transform_indices = @transform_2, window_bounds = array<i64: 1, 64>}, {transform_indices = @transform_3, window_bounds = array<i64: 64, 64>}]} {
    %c0 = arith.constant 0 : index
    %c0_0 = arith.constant 0 : index
    %0 = vector.load %arg3[%c0, %c0_0] : memref<64x32xbf16, #tpu.memory_space<vmem>>, vector<64x32xbf16>
    %c0_1 = arith.constant 0 : index
    %c0_2 = arith.constant 0 : index
    %1 = vector.load %arg4[%c0_1, %c0_2] : memref<32x64xbf16, #tpu.memory_space<vmem>>, vector<32x64xbf16>
    %cst = arith.constant dense<0.000000e+00> : vector<64x64xf32>
    %2 = tpu.matmul %0, %1, %cst {dimension_numbers = #tpu.dot_dimension_numbers<[1], [0], [0], [1], [0, 0, 1, 1], [], []>} : vector<64x32xbf16>, vector<32x64xbf16>, vector<64x64xf32> -> vector<64x64xf32>
    %c0_3 = arith.constant 0 : index
    %c0_4 = arith.constant 0 : index
    %3 = vector.load %arg5[%c0_3, %c0_4] : memref<1x64xf32, #tpu.memory_space<vmem>>, vector<1x64xf32>
    %4 = vector.broadcast %3 : vector<1x64xf32> to vector<64x64xf32>
    %5 = arith.addf %2, %4 : vector<64x64xf32>
    %c0_5 = arith.constant 0 : index
    %c0_6 = arith.constant 0 : index
    %6 = vector.load %arg6[%c0_5, %c0_6] : memref<64x64xf32, #tpu.memory_space<vmem>>, vector<64x64xf32>
    tpu.vector_store %arg6[%c0_5, %c0_6], %5 {strides = array<i32>} : memref<64x64xf32, #tpu.memory_space<vmem>>, vector<64x64xf32>,
    return
  }
  func.func @transform_0(%arg0: i32, %arg1: i32, %arg2: i32) -> (i32, i32) {
    %c0_i32 = arith.constant 0 : i32
    return %arg0, %arg2 : i32, i32
  }
  func.func @transform_1(%arg0: i32, %arg1: i32, %arg2: i32) -> (i32, i32) {
    %c0_i32 = arith.constant 0 : i32
    return %arg2, %arg1 : i32, i32
  }
  func.func @transform_2(%arg0: i32, %arg1: i32, %arg2: i32) -> (i32, i32) {
    %c0_i32 = arith.constant 0 : i32
    %c0_i32_0 = arith.constant 0 : i32
    return %c0_i32, %arg1 : i32, i32
  }
  func.func @transform_3(%arg0: i32, %arg1: i32, %arg2: i32) -> (i32, i32) {
    %c0_i32 = arith.constant 0 : i32
    return %arg0, %arg1 : i32, i32
  }
}

</mosaic_0001>

<llo_original>
// kernel: dmha_forward.3
$region0: #{dmha_forward.3}
  #allocation0 [shape = 'u32[]', space=smem, size = 0x4, offset = 0x4, fixed_abs, tag = 'smem constant byte address 0x4 - core index']
  #allocation1 [shape = 'u32[144,128]{1,0:T(1,128)}', space=vmem, size = 0x12000, scoped, tag = 'internal scratch']
  %s0 = inlined_call_operand.vmem [shape: bf16[64,64], index: 0, kind: input, shape index: {}]
  %s1 = inlined_call_operand.vmem [shape: bf16[64,96], index: 1, kind: input, shape index: {}]
  %s2 = inlined_call_operand.vmem [shape: bf16[64,96], index: 2, kind: output, shape index: {}]
  %s3 = sld [smem:[#allocation0]]
  $region18: #{dmha_forward.3} parent=0
    _
  %s5 = ssub.s32 1, %s3
  %s6 = scalar_select 0, %s5, %s3
  // Predicated region
  $region2: #{dmha_forward.3} parent=0 // pred_check
    _
  $region3: #{dmha_forward.3} parent=0 // pred_check_branch
    %8 = sbr.rel (0) target = $region5
  $region4: #{dmha_forward.3} parent=0 // pred_region
    _
  $region5: #{dmha_forward.3} parent=0 // pred_fallthru
    _
  // Predicated region
  $region6: #{dmha_forward.3} parent=0 // pred_check
    _
  $region7: #{dmha_forward.3} parent=0 // pred_check_branch
    %10 = sbr.rel (0) target = $region9
  $region8: #{dmha_forward.3} parent=0 // pred_region
    _
  $region9: #{dmha_forward.3} parent=0 // pred_fallthru
    _
  %v12 = vld [vmem:[%s0] sm:$0xf]
  %v13 = vld [vmem:[%s0 + $0x4] sm:$0xf]
  %v14 = vld [vmem:[%s0 + $0x8] sm:$0xf]
  %v15 = vld [vmem:[%s0 + $0xc] sm:$0xf]
  %v16 = vld [vmem:[%s0 + $0x10] sm:$0xf]
  %v17 = vld [vmem:[%s0 + $0x14] sm:$0xf]
  %v18 = vld [vmem:[%s0 + $0x18] sm:$0xf]
  %v19 = vld [vmem:[%s0 + $0x1c] sm:$0xf]
  %v20 = vld [vmem:[%s1] sm:$0xf]
  %v21 = vld [vmem:[%s1 + $0x4] sm:$0xf]
  %v22 = vld [vmem:[%s1 + $0x8] sm:$0xf]
  %v23 = vld [vmem:[%s1 + $0xc] sm:$0xf]
  %v24 = vld [vmem:[%s1 + $0x10] sm:$0xf]
  %v25 = vld [vmem:[%s1 + $0x14] sm:$0xf]
  %v26 = vld [vmem:[%s1 + $0x18] sm:$0xf]
  %v27 = vld [vmem:[%s1 + $0x1c] sm:$0xf]
  %v36 = vunpack.c.l.b16 %v12
  %v37 = vunpack.c.l.b16 %v13
  %v38 = vunpack.c.l.b16 %v14
  %v39 = vunpack.c.l.b16 %v15
  %v40 = vunpack.c.l.b16 %v16
  %v41 = vunpack.c.l.b16 %v17
  %v42 = vunpack.c.l.b16 %v18
  %v43 = vunpack.c.l.b16 %v19
  %v44 = vpack.c.b16 %v37, %v36
  %v45 = vpack.c.b16 %v39, %v38
  %v46 = vpack.c.b16 %v41, %v40
  %v47 = vpack.c.b16 %v43, %v42
  %v56 = vunpack.c.l.b16 %v20
  %v57 = vunpack.c.l.b16 %v21
  %v58 = vunpack.c.l.b16 %v22
  %v59 = vunpack.c.l.b16 %v23
  %v60 = vunpack.c.l.b16 %v24
  %v61 = vunpack.c.l.b16 %v25
  %v62 = vunpack.c.l.b16 %v26
  %v63 = vunpack.c.l.b16 %v27
  %v64 = vpack.c.b16 %v57, %v56
  %v65 = vpack.c.b16 %v59, %v58
  %v66 = vpack.c.b16 %v61, %v60
  %v67 = vpack.c.b16 %v63, %v62
  %vm72 = vcmask 523264
  %v74 = vsel %vm72, %v44, 0
  %v77 = vsel %vm72, %v45, 0
  %v80 = vsel %vm72, %v46, 0
  %v83 = vsel %vm72, %v47, 0
  %85 = vmatprep.subr.bf16.mxu0 0
  %86 = vmatpush1.bf16.msra.mxu0 %v64
  %87 = vmatprep.subr.bf16.mxu0 0
  %88 = vmatpush1.bf16.msra.mxu0 %v65
  %89 = vmatprep.subr.bf16.mxu0 0
  %90 = vmatpush1.bf16.msra.mxu0 %v66
  %91 = vmatprep.subr.bf16.mxu0 0
  %92 = vmatpush1.bf16.msra.mxu0 %v67
  %93 = vmatprep.subr.bf16.mxu0 0
  %94 = vmatpush1.bf16.msra.mxu0 0
  %95 = vmatprep.subr.bf16.mxu0 0
  %96 = vmatpush1.bf16.msra.mxu0 0
  %97 = vmatprep.subr.bf16.mxu0 0
  %98 = vmatpush1.bf16.msra.mxu0 0
  %99 = vmatprep.subr.bf16.mxu0 0
  %100 = vmatpush1.bf16.msra.mxu0 0
  %101 = vmatprep.subr.bf16.mxu0 0
  %102 = vmatpush1.bf16.msra.mxu0 0
  %103 = vmatprep.subr.bf16.mxu0 0
  %104 = vmatpush1.bf16.msra.mxu0 0
  %105 = vmatprep.subr.bf16.mxu0 0
  %106 = vmatpush1.bf16.msra.mxu0 0
  %107 = vmatprep.subr.bf16.mxu0 0
  %108 = vmatpush1.bf16.msra.mxu0 0
  %109 = vmatprep.subr.bf16.mxu0 0
  %110 = vmatpush1.bf16.msra.mxu0 0
  %111 = vmatprep.subr.bf16.mxu0 0
  %112 = vmatpush1.bf16.msra.mxu0 0
  %113 = vmatprep.subr.bf16.mxu0 0
  %114 = vmatpush1.bf16.msra.mxu0 0
  %115 = vmatprep.subr.bf16.mxu0 0
  %116 = vmatpush1.bf16.msra.mxu0 0
  %117 = vmatprep.mubr.bf16.mxu0 0
  %118 = vmatmul.mubr.bf16.gmra.mrb[0].mxu0 %v74
  %v119 = vpop.f32.mrb[0].mxu0
  %v120 = vadd.f32 0.0, %v119
  %v121 = vpop.f32.mrb[0].mxu0
  %v122 = vpop.f32.mrb[0].mxu0
  %v123 = vadd.f32 0.0, %v122
  %v124 = vpop.f32.mrb[0].mxu0
  %125 = vmatprep.mubr.bf16.mxu0 0
  %126 = vmatmul.mubr.bf16.gmra.mrb[0].mxu0 %v77
  %v127 = vpop.f32.mrb[0].mxu0
  %v128 = vadd.f32 0.0, %v127
  %v129 = vpop.f32.mrb[0].mxu0
  %v130 = vpop.f32.mrb[0].mxu0
  %v131 = vadd.f32 0.0, %v130
  %v132 = vpop.f32.mrb[0].mxu0
  %133 = vmatprep.mubr.bf16.mxu0 0
  %134 = vmatmul.mubr.bf16.gmra.mrb[0].mxu0 %v80
  %v135 = vpop.f32.mrb[0].mxu0
  %v136 = vadd.f32 0.0, %v135
  %v137 = vpop.f32.mrb[0].mxu0
  %v138 = vpop.f32.mrb[0].mxu0
  %v139 = vadd.f32 0.0, %v138
  %v140 = vpop.f32.mrb[0].mxu0
  %141 = vmatprep.mubr.bf16.mxu0 0
  %142 = vmatmul.mubr.bf16.gmra.mrb[0].mxu0 %v83
  %v143 = vpop.f32.mrb[0].mxu0
  %v144 = vadd.f32 0.0, %v143
  %v145 = vpop.f32.mrb[0].mxu0
  %v146 = vpop.f32.mrb[0].mxu0
  %v147 = vadd.f32 0.0, %v146
  %v148 = vpop.f32.mrb[0].mxu0
  %149 = vdwg.mxu0
  %v150 = vpack.c.bf16 %v123, %v120
  %v151 = vpack.c.bf16 %v131, %v128
  %v152 = vpack.c.bf16 %v139, %v136
  %v153 = vpack.c.bf16 %v147, %v144
  %v158 = vunpack.c.l.b16 %v150
  %v159 = vunpack.c.h.b16 %v150
  %v160 = vunpack.c.l.b16 %v151
  %v161 = vunpack.c.h.b16 %v151
  %v162 = vunpack.c.l.b16 %v152
  %v163 = vunpack.c.h.b16 %v152
  %v164 = vunpack.c.l.b16 %v153
  %v165 = vunpack.c.h.b16 %v153
  %v166 = vpack.c.b16 %v158, %v158
  %v167 = vpack.c.b16 %v159, %v159
  %v168 = vpack.c.b16 %v160, %v160
  %v169 = vpack.c.b16 %v161, %v161
  %v170 = vpack.c.b16 %v162, %v162
  %v171 = vpack.c.b16 %v163, %v163
  %v172 = vpack.c.b16 %v164, %v164
  %v173 = vpack.c.b16 %v165, %v165
  %vm182 = vcmask 781312
  %183 = vst.msk [vmem:[%s2] sm:$0xf] %vm182, %v166
  %184 = vst.msk [vmem:[%s2 + $0x4] sm:$0xf] %vm182, %v167
  %185 = vst.msk [vmem:[%s2 + $0x8] sm:$0xf] %vm182, %v168
  %186 = vst.msk [vmem:[%s2 + $0xc] sm:$0xf] %vm182, %v169
  %187 = vst.msk [vmem:[%s2 + $0x10] sm:$0xf] %vm182, %v170
  %188 = vst.msk [vmem:[%s2 + $0x14] sm:$0xf] %vm182, %v171
  %189 = vst.msk [vmem:[%s2 + $0x18] sm:$0xf] %vm182, %v172
  %190 = vst.msk [vmem:[%s2 + $0x1c] sm:$0xf] %vm182, %v173
  // Predicated region
  $region10: #{dmha_forward.3} parent=0 // pred_check
    _
  $region11: #{dmha_forward.3} parent=0 // pred_check_branch
    %192 = sbr.rel (0) target = $region13
  $region12: #{dmha_forward.3} parent=0 // pred_region
    _
  $region13: #{dmha_forward.3} parent=0 // pred_fallthru
    _
  // Predicated region
  $region14: #{dmha_forward.3} parent=0 // pred_check
    _
  $region15: #{dmha_forward.3} parent=0 // pred_check_branch
    %194 = sbr.rel (0) target = $region17
  $region16: #{dmha_forward.3} parent=0 // pred_region
    _
  $region17: #{dmha_forward.3} parent=0 // pred_fallthru
    _

// kernel: dmha_forward.5
$region0: #{dmha_forward.5}
  #allocation0 [shape = 'u32[]', space=smem, size = 0x4, offset = 0x4, fixed_abs, tag = 'smem constant byte address 0x4 - core index']
  #allocation1 [shape = 'u32[144,128]{1,0:T(1,128)}', space=vmem, size = 0x12000, scoped, tag = 'internal scratch']
  %s0 = inlined_call_operand.vmem [shape: bf16[64,32], index: 0, kind: input, shape index: {}]
  %s1 = inlined_call_operand.vmem [shape: bf16[32,64], index: 1, kind: input, shape index: {}]
  %s2 = inlined_call_operand.vmem [shape: f32[1,64], index: 2, kind: input, shape index: {}]
  %s3 = inlined_call_operand.vmem [shape: f32[64,64], index: 3, kind: output, shape index: {}]
  %s4 = sld [smem:[#allocation0]]
  $region22: #{dmha_forward.5} parent=0
    _
  %s6 = ssub.s32 1, %s4
  %s7 = scalar_select 0, %s6, %s4
  // Predicated region
  $region2: #{dmha_forward.5} parent=0 // pred_check
    _
  $region3: #{dmha_forward.5} parent=0 // pred_check_branch
    %9 = sbr.rel (0) target = $region5
  $region4: #{dmha_forward.5} parent=0 // pred_region
    _
  $region5: #{dmha_forward.5} parent=0 // pred_fallthru
    _
  // Predicated region
  $region6: #{dmha_forward.5} parent=0 // pred_check
    _
  $region7: #{dmha_forward.5} parent=0 // pred_check_branch
    %11 = sbr.rel (0) target = $region9
  $region8: #{dmha_forward.5} parent=0 // pred_region
    _
  $region9: #{dmha_forward.5} parent=0 // pred_fallthru
    _
  // Predicated region
  $region10: #{dmha_forward.5} parent=0 // pred_check
    _
  $region11: #{dmha_forward.5} parent=0 // pred_check_branch
    %13 = sbr.rel (0) target = $region13
  $region12: #{dmha_forward.5} parent=0 // pred_region
    _
  $region13: #{dmha_forward.5} parent=0 // pred_fallthru
    _
  %v15 = vld [vmem:[%s0] sm:$0xf]
  %v16 = vld [vmem:[%s0 + $0x4] sm:$0xf]
  %v17 = vld [vmem:[%s0 + $0x8] sm:$0xf]
  %v18 = vld [vmem:[%s0 + $0xc] sm:$0xf]
  %v19 = vld [vmem:[%s0 + $0x10] sm:$0xf]
  %v20 = vld [vmem:[%s0 + $0x14] sm:$0xf]
  %v21 = vld [vmem:[%s0 + $0x18] sm:$0xf]
  %v22 = vld [vmem:[%s0 + $0x1c] sm:$0xf]
  %v23 = vld [vmem:[%s1] sm:$0xf]
  %v24 = vld [vmem:[%s1 + $0x4] sm:$0xf]
  %v25 = vld [vmem:[%s1 + $0x8] sm:$0xf]
  %v26 = vld [vmem:[%s1 + $0xc] sm:$0xf]
  %v27 = vld [vmem:[%s2] sm:$0x1]
  %v29 = vlaneseq
  %v30 = vshrl.u32 %v29, 7
  %v31 = vsub.s32 0, %v30
  %v32 = vrot.slane %v27, %v31
  %v42 = vunpack.c.l.b16 %v15
  %v43 = vunpack.c.l.b16 %v16
  %v44 = vunpack.c.l.b16 %v17
  %v45 = vunpack.c.l.b16 %v18
  %v46 = vunpack.c.l.b16 %v19
  %v47 = vunpack.c.l.b16 %v20
  %v48 = vunpack.c.l.b16 %v21
  %v49 = vunpack.c.l.b16 %v22
  %v50 = vpack.c.b16 %v43, %v42
  %v51 = vpack.c.b16 %v45, %v44
  %v52 = vpack.c.b16 %v47, %v46
  %v53 = vpack.c.b16 %v49, %v48
  %v58 = vunpack.c.l.b16 %v23
  %v59 = vunpack.c.l.b16 %v24
  %v60 = vunpack.c.l.b16 %v25
  %v61 = vunpack.c.l.b16 %v26
  %v62 = vpack.c.b16 %v59, %v58
  %v63 = vpack.c.b16 %v61, %v60
  %vm66 = vcmask 261120
  %v68 = vsel %vm66, %v50, 0
  %v71 = vsel %vm66, %v51, 0
  %v74 = vsel %vm66, %v52, 0
  %v77 = vsel %vm66, %v53, 0
  %79 = vmatprep.subr.bf16.mxu0 0
  %80 = vmatpush1.bf16.msra.mxu0 %v62
  %81 = vmatprep.subr.bf16.mxu0 0
  %82 = vmatpush1.bf16.msra.mxu0 %v63
  %83 = vmatprep.subr.bf16.mxu0 0
  %84 = vmatpush1.bf16.msra.mxu0 0
  %85 = vmatprep.subr.bf16.mxu0 0
  %86 = vmatpush1.bf16.msra.mxu0 0
  %87 = vmatprep.subr.bf16.mxu0 0
  %88 = vmatpush1.bf16.msra.mxu0 0
  %89 = vmatprep.subr.bf16.mxu0 0
  %90 = vmatpush1.bf16.msra.mxu0 0
  %91 = vmatprep.subr.bf16.mxu0 0
  %92 = vmatpush1.bf16.msra.mxu0 0
  %93 = vmatprep.subr.bf16.mxu0 0
  %94 = vmatpush1.bf16.msra.mxu0 0
  %95 = vmatprep.subr.bf16.mxu0 0
  %96 = vmatpush1.bf16.msra.mxu0 0
  %97 = vmatprep.subr.bf16.mxu0 0
  %98 = vmatpush1.bf16.msra.mxu0 0
  %99 = vmatprep.subr.bf16.mxu0 0
  %100 = vmatpush1.bf16.msra.mxu0 0
  %101 = vmatprep.subr.bf16.mxu0 0
  %102 = vmatpush1.bf16.msra.mxu0 0
  %103 = vmatprep.subr.bf16.mxu0 0
  %104 = vmatpush1.bf16.msra.mxu0 0
  %105 = vmatprep.subr.bf16.mxu0 0
  %106 = vmatpush1.bf16.msra.mxu0 0
  %107 = vmatprep.subr.bf16.mxu0 0
  %108 = vmatpush1.bf16.msra.mxu0 0
  %109 = vmatprep.subr.bf16.mxu0 0
  %110 = vmatpush1.bf16.msra.mxu0 0
  %111 = vmatprep.mubr.bf16.mxu0 0
  %112 = vmatmul.mubr.bf16.gmra.mrb[0].mxu0 %v68
  %v113 = vpop.f32.mrb[0].mxu0
  %v114 = vadd.f32 %v32, %v113
  %v115 = vpop.f32.mrb[0].mxu0
  %v116 = vpop.f32.mrb[0].mxu0
  %v117 = vadd.f32 %v32, %v116
  %v118 = vpop.f32.mrb[0].mxu0
  %119 = vmatprep.mubr.bf16.mxu0 0
  %120 = vmatmul.mubr.bf16.gmra.mrb[0].mxu0 %v71
  %v121 = vpop.f32.mrb[0].mxu0
  %v122 = vadd.f32 %v32, %v121
  %v123 = vpop.f32.mrb[0].mxu0
  %v124 = vpop.f32.mrb[0].mxu0
  %v125 = vadd.f32 %v32, %v124
  %v126 = vpop.f32.mrb[0].mxu0
  %127 = vmatprep.mubr.bf16.mxu0 0
  %128 = vmatmul.mubr.bf16.gmra.mrb[0].mxu0 %v74
  %v129 = vpop.f32.mrb[0].mxu0
  %v130 = vadd.f32 %v32, %v129
  %v131 = vpop.f32.mrb[0].mxu0
  %v132 = vpop.f32.mrb[0].mxu0
  %v133 = vadd.f32 %v32, %v132
  %v134 = vpop.f32.mrb[0].mxu0
  %135 = vmatprep.mubr.bf16.mxu0 0
  %136 = vmatmul.mubr.bf16.gmra.mrb[0].mxu0 %v77
  %v137 = vpop.f32.mrb[0].mxu0
  %v138 = vadd.f32 %v32, %v137
  %v139 = vpop.f32.mrb[0].mxu0
  %v140 = vpop.f32.mrb[0].mxu0
  %v141 = vadd.f32 %v32, %v140
  %v142 = vpop.f32.mrb[0].mxu0
  %143 = vdwg.mxu0
  %vm144 = vcmask 523264
  %145 = vst.msk [vmem:[%s3] sm:$0xff] %vm144, %v114
  %146 = vst.msk [vmem:[%s3 + $0x8] sm:$0xff] %vm144, %v117
  %147 = vst.msk [vmem:[%s3 + $0x10] sm:$0xff] %vm144, %v122
  %148 = vst.msk [vmem:[%s3 + $0x18] sm:$0xff] %vm144, %v125
  %149 = vst.msk [vmem:[%s3 + $0x20] sm:$0xff] %vm144, %v130
  %150 = vst.msk [vmem:[%s3 + $0x28] sm:$0xff] %vm144, %v133
  %151 = vst.msk [vmem:[%s3 + $0x30] sm:$0xff] %vm144, %v138
  %152 = vst.msk [vmem:[%s3 + $0x38] sm:$0xff] %vm144, %v141
  // Predicated region
  $region14: #{dmha_forward.5} parent=0 // pred_check
    _
  $region15: #{dmha_forward.5} parent=0 // pred_check_branch
    %154 = sbr.rel (0) target = $region17
  $region16: #{dmha_forward.5} parent=0 // pred_region
    _
  $region17: #{dmha_forward.5} parent=0 // pred_fallthru
    _
  // Predicated region
  $region18: #{dmha_forward.5} parent=0 // pred_check
    _
  $region19: #{dmha_forward.5} parent=0 // pred_check_branch
    %156 = sbr.rel (0) target = $region21
  $region20: #{dmha_forward.5} parent=0 // pred_region
    _
  $region21: #{dmha_forward.5} parent=0 // pred_fallthru
    _

// kernel: dmha_forward.4
$region0: #{dmha_forward.4}
  #allocation0 [shape = 'u32[]', space=smem, size = 0x4, offset = 0x4, fixed_abs, tag = 'smem constant byte address 0x4 - core index']
  #allocation1 [shape = 'u32[144,128]{1,0:T(1,128)}', space=vmem, size = 0x12000, scoped, tag = 'internal scratch']
  %s0 = inlined_call_operand.vmem [shape: bf16[16,4,96], index: 0, kind: input, shape index: {}]
  %s1 = inlined_call_operand.vmem [shape: bf16[4,4,4], index: 1, kind: input, shape index: {}]
  %s2 = inlined_call_operand.vmem [shape: bf16[16,4,32], index: 2, kind: output, shape index: {}]
  %s3 = sld [smem:[#allocation0]]
  $region49: #{dmha_forward.4} parent=0
    _
  %s5 = ssub.s32 1, %s3
  %s6 = scalar_select 0, %s5, %s3
  loop: start=0, step=1, limit=18
  $region2: #{dmha_forward.4} parent=0 // loop_pre_header
    _
  $region3: #{dmha_forward.4} parent=0 // loop_header
    %s8 = sphi 0, %s12
    %p9 = scmp.ge.s32.totalorder %s8, 18
    %s15 = sphi 0, %s27
    %s16 = sphi 0, %s23
    %s17 = sphi 0, %s15
    %s18 = sphi 0, %s16
    %s19 = sphi 0, %s17
    %s20 = sphi 0, %s18
    %s34 = sphi 0, %s36
    %s37 = sphi 0, %s34
    %s38 = sphi 0, %s37
    %s54 = sphi 0, %s38
    %s60 = sphi 0, %s62
    %s63 = sphi 0, %s60
    %s64 = sphi 0, %s63
    %s80 = sphi 0, %s64
    %s90 = sphi 0, %s92
    %s93 = sphi 0, %s90
    %s94 = sphi 0, %s93
    %s110 = sphi 0, %s94
  $region4: #{dmha_forward.4} parent=0 // loop_header_branch
    %11 = sbr.rel (%p9) target = $region8
  $region5: #{dmha_forward.4} parent=0 // loop_body
    %s13 = ssub.s32 %s8, 1
    %s14 = ssub.s32 %s8, 2
    %s21 = sadd.s32 1, %s16
    %p22 = scmp.ge.s32.totalorder %s21, 4
    %s23 = scalar_select %p22, 0, %s21
    %s24 = sadd.s32 1, %s15
    %s25 = scalar_select %p22, %s24, %s15
    %p26 = scmp.ge.s32.totalorder %s25, 4
    %s27 = scalar_select %p26, 0, %s25
    %s28 = smul.u32 %s15, 4
    %s29 = sadd.s32 %s28, %s16
    %s30 = smul.u32 %s27, 4
    %s31 = sadd.s32 %s30, %s23
    %s32 = ssub.s32 %s29, %s31
    %p33 = scmp.eq.s32.totalorder %s32, 0
    %s35 = sadd.s32 %s34, 1
    %s36 = scalar_select %p33, %s34, %s35
    %p39 = pneg %p33
    %p40 = scmp.eq.s32.totalorder %s8, 15
    %p41 = por %p39, %p40
    %p42 = scmp.ne.s32.totalorder %s34, %s37
    %p43 = scmp.eq.s32.totalorder %s8, 0
    %p44 = por %p42, %p43
    %p45 = scmp.ne.s32.totalorder %s34, %s37
    %p46 = scmp.eq.s32.totalorder %s13, 15
    %p47 = por %p45, %p46
    %p48 = scmp.ne.s32.totalorder %s37, %s38
    %p49 = scmp.eq.s32.totalorder %s13, 0
    %p50 = por %p48, %p49
    %p51 = scmp.ne.s32.totalorder %s37, %s38
    %p52 = scmp.eq.s32.totalorder %s14, 15
    %p53 = por %p51, %p52
    %p55 = scmp.ne.s32.totalorder %s38, %s54
    %p56 = scmp.eq.s32.totalorder %s14, 0
    %p57 = por %p55, %p56
    %s58 = ssub.s32 %s16, %s23
    %p59 = scmp.eq.s32.totalorder %s58, 0
    %s61 = sadd.s32 %s60, 1
    %s62 = scalar_select %p59, %s60, %s61
    %p65 = pneg %p59
    %p66 = scmp.eq.s32.totalorder %s8, 15
    %p67 = por %p65, %p66
    %p68 = scmp.ne.s32.totalorder %s60, %s63
    %p69 = scmp.eq.s32.totalorder %s8, 0
    %p70 = por %p68, %p69
    %p71 = scmp.ne.s32.totalorder %s60, %s63
    %p72 = scmp.eq.s32.totalorder %s13, 15
    %p73 = por %p71, %p72
    %p74 = scmp.ne.s32.totalorder %s63, %s64
    %p75 = scmp.eq.s32.totalorder %s13, 0
    %p76 = por %p74, %p75
    %p77 = scmp.ne.s32.totalorder %s63, %s64
    %p78 = scmp.eq.s32.totalorder %s14, 15
    %p79 = por %p77, %p78
    %p81 = scmp.ne.s32.totalorder %s64, %s80
    %p82 = scmp.eq.s32.totalorder %s14, 0
    %p83 = por %p81, %p82
    %s84 = smul.u32 %s15, 4
    %s85 = sadd.s32 %s84, %s16
    %s86 = smul.u32 %s27, 4
    %s87 = sadd.s32 %s86, %s23
    %s88 = ssub.s32 %s85, %s87
    %p89 = scmp.eq.s32.totalorder %s88, 0
    %s91 = sadd.s32 %s90, 1
    %s92 = scalar_select %p89, %s90, %s91
    %p95 = pneg %p89
    %p96 = scmp.eq.s32.totalorder %s8, 15
    %p97 = por %p95, %p96
    %p98 = scmp.ne.s32.totalorder %s90, %s93
    %p99 = scmp.eq.s32.totalorder %s8, 0
    %p100 = por %p98, %p99
    %p101 = scmp.ne.s32.totalorder %s90, %s93
    %p102 = scmp.eq.s32.totalorder %s13, 15
    %p103 = por %p101, %p102
    %p104 = scmp.ne.s32.totalorder %s93, %s94
    %p105 = scmp.eq.s32.totalorder %s13, 0
    %p106 = por %p104, %p105
    %p107 = scmp.ne.s32.totalorder %s93, %s94
    %p108 = scmp.eq.s32.totalorder %s14, 15
    %p109 = por %p107, %p108
    %p111 = scmp.ne.s32.totalorder %s94, %s110
    %p112 = scmp.eq.s32.totalorder %s14, 0
    %p113 = por %p111, %p112
    %p114 = scmp.le.s32.totalorder 1, %s8
    %p115 = scmp.lt.s32.totalorder %s8, 17
    %p116 = pnand %p114, %p115
    %p117 = pneg %p116
    // Predicated region
    $region9: #{dmha_forward.4} parent=5 // pred_check
      _
    $region10: #{dmha_forward.4} parent=5 // pred_check_branch
      %119 = sbr.rel (%p116) target = $region12
    $region11: #{dmha_forward.4} parent=5 // pred_region
      %s120 = ssub.s32 %s8, 1
    $region12: #{dmha_forward.4} parent=5 // pred_fallthru
      _
    %p121 = scmp.lt.s32.totalorder %s8, 16
    // Predicated region
    $region13: #{dmha_forward.4} parent=5 // pred_check
      %p122 = pneg %p121
    $region14: #{dmha_forward.4} parent=5 // pred_check_branch
      %124 = sbr.rel (%p122) target = $region16
    $region15: #{dmha_forward.4} parent=5 // pred_region
      // Predicated region
      $region17: #{dmha_forward.4} parent=15 // pred_check
        %p125 = pneg %p44
      $region18: #{dmha_forward.4} parent=15 // pred_check_branch
        %127 = sbr.rel (%p125) target = $region20
      $region19: #{dmha_forward.4} parent=15 // pred_region
        %s128 = smul.u32 %s15, 4
        %s129 = sadd.s32 %s128, %s16
        %p130 = scmp.lt.s32.totalorder %s129, 15
        %s131 = scalar_select %p130, %s129, 15
        %s132 = smul.addr %s131, 2
        %s133 = scalar_lea.vmem %s0, %s132
        %s134 = smul.u32 %s15, 4
        %s135 = sadd.s32 %s134, %s16
      $region20: #{dmha_forward.4} parent=15 // pred_fallthru
        _
      // Predicated region
      $region21: #{dmha_forward.4} parent=15 // pred_check
        %p136 = pneg %p70
      $region22: #{dmha_forward.4} parent=15 // pred_check_branch
        %138 = sbr.rel (%p136) target = $region24
      $region23: #{dmha_forward.4} parent=15 // pred_region
        %p139 = scmp.lt.s32.totalorder %s16, 3
        %s140 = scalar_select %p139, %s16, 3
        %s141 = smul.addr %s140, 2
        %s142 = scalar_lea.vmem %s1, %s141
      $region24: #{dmha_forward.4} parent=15 // pred_fallthru
        _
    $region16: #{dmha_forward.4} parent=5 // pred_fallthru
      _
    %p143 = scmp.le.s32.totalorder 1, %s8
    %p144 = scmp.lt.s32.totalorder %s8, 17
    %p145 = pnand %p143, %p144
    %p146 = pneg %p145
    // Predicated region
    $region25: #{dmha_forward.4} parent=5 // pred_check
      _
    $region26: #{dmha_forward.4} parent=5 // pred_check_branch
      %148 = sbr.rel (%p145) target = $region28
    $region27: #{dmha_forward.4} parent=5 // pred_region
      %s149 = ssub.s32 %s8, 1
      %s150 = smul.u32 %s17, 4
      %s151 = sadd.s32 %s150, %s18
      %p152 = scmp.lt.s32.totalorder %s151, 15
      %s153 = scalar_select %p152, %s151, 15
      %s154 = smul.addr %s153, 2
      %s155 = scalar_lea.vmem %s0, %s154
      %p156 = pneg %p50
      %p157 = pneg %p47
      %p158 = scmp.lt.s32.totalorder %s18, 3
      %s159 = scalar_select %p158, %s18, 3
      %s160 = smul.addr %s159, 2
      %s161 = scalar_lea.vmem %s1, %s160
      %p162 = pneg %p76
      %p163 = pneg %p73
      %p164 = pneg %p106
      %p165 = pneg %p103
      %s166 = smul.u32 %s17, 4
      %s167 = sadd.s32 %s166, %s18
      %p168 = scmp.lt.s32.totalorder %s167, 15
      %s169 = scalar_select %p168, %s167, 15
      %s170 = smul.addr %s169, 2
      %s171 = scalar_lea.vmem %s2, %s170
      %s172 = smul.u32 %s17, 4
      %s173 = sadd.s32 %s172, %s18
      %p174 = scmp.lt.s32.totalorder %s173, 15
      %s175 = scalar_select %p174, %s173, 15
      %s176 = smul.addr %s175, 2
      %s177 = scalar_lea.vmem %s0, %s176
      %s178 = smul.u32 %s17, 4
      %s179 = sadd.s32 %s178, %s18
      %p180 = scmp.lt.s32.totalorder %s18, 3
      %s181 = scalar_select %p180, %s18, 3
      %s182 = smul.addr %s181, 2
      %s183 = scalar_lea.vmem %s1, %s182
      %s184 = smul.u32 %s17, 4
      %s185 = sadd.s32 %s184, %s18
      %p186 = scmp.lt.s32.totalorder %s185, 15
      %s187 = scalar_select %p186, %s185, 15
      %s188 = smul.addr %s187, 2
      %s189 = scalar_lea.vmem %s2, %s188
      %s190 = smul.u32 %s17, 4
      %s191 = sadd.s32 %s190, %s18
      %v193 = vld [vmem:[%s177] sm:$0x3]
      %p194 = scmp.lt.s32.totalorder %s17, 2
      // Predicated region
      $region29: #{dmha_forward.4} parent=27 // pred_check
        %p195 = pneg %p194
      $region30: #{dmha_forward.4} parent=27 // pred_check_branch
        %197 = sbr.rel (%p195) target = $region32
      $region31: #{dmha_forward.4} parent=27 // pred_region
        %v200 = vunpack.c.l.s4 1983009808
        %v201 = vunpack.c.0.s8 %v200
        %v202 = vlaneseq
        %v203 = vshrl.u32 %v202, 7
        %v204 = vsub.s32 %v201, %v203
        %v205 = vrot.slane %v193, %v204
        %206 = vrot.lane.b32.xlu0 %v205, 96
        %v207 = vpop.permute.xlu0 %206
        %vm208 = vcmask 31744
        %v210 = vsel %vm208, %v193, 0
        %v213 = vsel %vm208, %v207, 0
        %215 = vmatprep.subr.bf16.mxu0 0
        %216 = vmatpush1.bf16.xpose.msra.mxu0 %v213
        %217 = vmatprep.subr.bf16.mxu0 0
        %218 = vmatpush1.bf16.xpose.msra.mxu0 0
        %219 = vmatprep.subr.bf16.mxu0 0
        %220 = vmatpush1.bf16.xpose.msra.mxu0 0
        %221 = vmatprep.subr.bf16.mxu0 0
        %222 = vmatpush1.bf16.xpose.msra.mxu0 0
        %223 = vmatprep.subr.bf16.mxu0 0
        %224 = vmatpush1.bf16.xpose.msra.mxu0 0
        %225 = vmatprep.subr.bf16.mxu0 0
        %226 = vmatpush1.bf16.xpose.msra.mxu0 0
        %227 = vmatprep.subr.bf16.mxu0 0
        %228 = vmatpush1.bf16.xpose.msra.mxu0 0
        %229 = vmatprep.subr.bf16.mxu0 0
        %230 = vmatpush1.bf16.xpose.msra.mxu0 0
        %231 = vmatprep.subr.bf16.mxu0 0
        %232 = vmatpush1.bf16.xpose.msra.mxu0 0
        %233 = vmatprep.subr.bf16.mxu0 0
        %234 = vmatpush1.bf16.xpose.msra.mxu0 0
        %235 = vmatprep.subr.bf16.mxu0 0
        %236 = vmatpush1.bf16.xpose.msra.mxu0 0
        %237 = vmatprep.subr.bf16.mxu0 0
        %238 = vmatpush1.bf16.xpose.msra.mxu0 0
        %239 = vmatprep.subr.bf16.mxu0 0
        %240 = vmatpush1.bf16.xpose.msra.mxu0 0
        %241 = vmatprep.subr.bf16.mxu0 0
        %242 = vmatpush1.bf16.xpose.msra.mxu0 0
        %243 = vmatprep.subr.bf16.mxu0 0
        %244 = vmatpush1.bf16.xpose.msra.mxu0 0
        %245 = vmatprep.subr.bf16.mxu0 0
        %246 = vmatpush1.bf16.xpose.msra.mxu0 0
        %247 = vmatprep.mubr.bf16.mxu0 0
        %248 = vmatmul.mubr.bf16.gmra.mrb[0].mxu0 %v210
        %v249 = vpop.f32.mrb[0].mxu0
        %v250 = vadd.f32 0.0, %v249
        %v251 = vpop.f32.mrb[0].mxu0
        %v252 = vpop.f32.mrb[0].mxu0
        %v253 = vpop.f32.mrb[0].mxu0
        %254 = vdwg.mxu0
        %vm255 = vcmask 27648
        %v256 = vsel %vm255, %v250, -inf
        %257 = vmax.xlane.f32.xlu0 %v256
        %v258 = vpop.xlane.xlu0 %257
        %v259 = vsub.f32 %v250, %v258
        %v260 = vmul.f32 %v259, 1.442695
        %v261 = vpow.pop %v260
        %v262 = vsel %vm255, %v261, 0.0
        %263 = vadd.xlane.f32.xlu0 %v262
        %v264 = vpop.xlane.xlu0 %263
        %v265 = vpack.c.bf16 %v261, %v261
        %266 = vrot.lane.b32.xlu0 %v205, 64
        %v267 = vpop.permute.xlu0 %266
        %v269 = vsel %vm208, %v265, 0
        %vm271 = vcmask 1041408
        %v273 = vsel %vm271, %v267, 0
        %275 = vmatprep.subr.bf16.mxu0 0
        %276 = vmatpush1.bf16.msra.mxu0 %v273
        %277 = vmatprep.subr.bf16.mxu0 0
        %278 = vmatpush1.bf16.msra.mxu0 0
        %279 = vmatprep.subr.bf16.mxu0 0
        %280 = vmatpush1.bf16.msra.mxu0 0
        %281 = vmatprep.subr.bf16.mxu0 0
        %282 = vmatpush1.bf16.msra.mxu0 0
        %283 = vmatprep.subr.bf16.mxu0 0
        %284 = vmatpush1.bf16.msra.mxu0 0
        %285 = vmatprep.subr.bf16.mxu0 0
        %286 = vmatpush1.bf16.msra.mxu0 0
        %287 = vmatprep.subr.bf16.mxu0 0
        %288 = vmatpush1.bf16.msra.mxu0 0
        %289 = vmatprep.subr.bf16.mxu0 0
        %290 = vmatpush1.bf16.msra.mxu0 0
        %291 = vmatprep.subr.bf16.mxu0 0
        %292 = vmatpush1.bf16.msra.mxu0 0
        %293 = vmatprep.subr.bf16.mxu0 0
        %294 = vmatpush1.bf16.msra.mxu0 0
        %295 = vmatprep.subr.bf16.mxu0 0
        %296 = vmatpush1.bf16.msra.mxu0 0
        %297 = vmatprep.subr.bf16.mxu0 0
        %298 = vmatpush1.bf16.msra.mxu0 0
        %299 = vmatprep.subr.bf16.mxu0 0
        %300 = vmatpush1.bf16.msra.mxu0 0
        %301 = vmatprep.subr.bf16.mxu0 0
        %302 = vmatpush1.bf16.msra.mxu0 0
        %303 = vmatprep.subr.bf16.mxu0 0
        %304 = vmatpush1.bf16.msra.mxu0 0
        %305 = vmatprep.subr.bf16.mxu0 0
        %306 = vmatpush1.bf16.msra.mxu0 0
        %307 = vmatprep.mubr.bf16.mxu0 0
        %308 = vmatmul.mubr.bf16.gmra.mrb[0].mxu0 %v269
        %v309 = vpop.f32.mrb[0].mxu0
        %v310 = vadd.f32 0.0, %v309
        %v311 = vpop.f32.mrb[0].mxu0
        %v312 = vpop.f32.mrb[0].mxu0
        %v313 = vpop.f32.mrb[0].mxu0
        %314 = vdwg.mxu0
        %v315 = vrcp.pop %v264
        %v316 = vmul.f32 %v310, %v315
        %v317 = vpack.c.bf16 %v316, %v316
        %vm318 = vcmask 25600
        %319 = vst.msk [vmem:[%s189] sm:$0x3] %vm318, %v317
        %320 = vrot.lane.b32.xlu0 %v205, 124
        %v321 = vpop.permute.xlu0 %320
        %322 = vrot.lane.b32.xlu0 %v205, 92
        %v323 = vpop.permute.xlu0 %322
        %v325 = vsel %vm208, %v321, 0
        %v328 = vsel %vm208, %v323, 0
        %330 = vmatprep.subr.bf16.mxu0 0
        %331 = vmatpush1.bf16.xpose.msra.mxu0 %v328
        %332 = vmatprep.subr.bf16.mxu0 0
        %333 = vmatpush1.bf16.xpose.msra.mxu0 0
        %334 = vmatprep.subr.bf16.mxu0 0
        %335 = vmatpush1.bf16.xpose.msra.mxu0 0
        %336 = vmatprep.subr.bf16.mxu0 0
        %337 = vmatpush1.bf16.xpose.msra.mxu0 0
        %338 = vmatprep.subr.bf16.mxu0 0
        %339 = vmatpush1.bf16.xpose.msra.mxu0 0
        %340 = vmatprep.subr.bf16.mxu0 0
        %341 = vmatpush1.bf16.xpose.msra.mxu0 0
        %342 = vmatprep.subr.bf16.mxu0 0
        %343 = vmatpush1.bf16.xpose.msra.mxu0 0
        %344 = vmatprep.subr.bf16.mxu0 0
        %345 = vmatpush1.bf16.xpose.msra.mxu0 0
        %346 = vmatprep.subr.bf16.mxu0 0
        %347 = vmatpush1.bf16.xpose.msra.mxu0 0
        %348 = vmatprep.subr.bf16.mxu0 0
        %349 = vmatpush1.bf16.xpose.msra.mxu0 0
        %350 = vmatprep.subr.bf16.mxu0 0
        %351 = vmatpush1.bf16.xpose.msra.mxu0 0
        %352 = vmatprep.subr.bf16.mxu0 0
        %353 = vmatpush1.bf16.xpose.msra.mxu0 0
        %354 = vmatprep.subr.bf16.mxu0 0
        %355 = vmatpush1.bf16.xpose.msra.mxu0 0
        %356 = vmatprep.subr.bf16.mxu0 0
        %357 = vmatpush1.bf16.xpose.msra.mxu0 0
        %358 = vmatprep.subr.bf16.mxu0 0
        %359 = vmatpush1.bf16.xpose.msra.mxu0 0
        %360 = vmatprep.subr.bf16.mxu0 0
        %361 = vmatpush1.bf16.xpose.msra.mxu0 0
        %362 = vmatprep.mubr.bf16.mxu0 0
        %363 = vmatmul.mubr.bf16.gmra.mrb[0].mxu0 %v325
        %v364 = vpop.f32.mrb[0].mxu0
        %v365 = vadd.f32 0.0, %v364
        %v366 = vpop.f32.mrb[0].mxu0
        %v367 = vpop.f32.mrb[0].mxu0
        %v368 = vpop.f32.mrb[0].mxu0
        %369 = vdwg.mxu0
        %v370 = vsel %vm255, %v365, -inf
        %371 = vmax.xlane.f32.xlu0 %v370
        %v372 = vpop.xlane.xlu0 %371
        %v373 = vsub.f32 %v365, %v372
        %v374 = vmul.f32 %v373, 1.442695
        %v375 = vpow.pop %v374
        %v376 = vsel %vm255, %v375, 0.0
        %377 = vadd.xlane.f32.xlu0 %v376
        %v378 = vpop.xlane.xlu0 %377
        %v379 = vpack.c.bf16 %v375, %v375
        %380 = vrot.lane.b32.xlu0 %v205, 60
        %v381 = vpop.permute.xlu0 %380
        %v383 = vsel %vm208, %v379, 0
        %v386 = vsel %vm271, %v381, 0
        %388 = vmatprep.subr.bf16.mxu0 0
        %389 = vmatpush1.bf16.msra.mxu0 %v386
        %390 = vmatprep.subr.bf16.mxu0 0
        %391 = vmatpush1.bf16.msra.mxu0 0
        %392 = vmatprep.subr.bf16.mxu0 0
        %393 = vmatpush1.bf16.msra.mxu0 0
        %394 = vmatprep.subr.bf16.mxu0 0
        %395 = vmatpush1.bf16.msra.mxu0 0
        %396 = vmatprep.subr.bf16.mxu0 0
        %397 = vmatpush1.bf16.msra.mxu0 0
        %398 = vmatprep.subr.bf16.mxu0 0
        %399 = vmatpush1.bf16.msra.mxu0 0
        %400 = vmatprep.subr.bf16.mxu0 0
        %401 = vmatpush1.bf16.msra.mxu0 0
        %402 = vmatprep.subr.bf16.mxu0 0
        %403 = vmatpush1.bf16.msra.mxu0 0
        %404 = vmatprep.subr.bf16.mxu0 0
        %405 = vmatpush1.bf16.msra.mxu0 0
        %406 = vmatprep.subr.bf16.mxu0 0
        %407 = vmatpush1.bf16.msra.mxu0 0
        %408 = vmatprep.subr.bf16.mxu0 0
        %409 = vmatpush1.bf16.msra.mxu0 0
        %410 = vmatprep.subr.bf16.mxu0 0
        %411 = vmatpush1.bf16.msra.mxu0 0
        %412 = vmatprep.subr.bf16.mxu0 0
        %413 = vmatpush1.bf16.msra.mxu0 0
        %414 = vmatprep.subr.bf16.mxu0 0
        %415 = vmatpush1.bf16.msra.mxu0 0
        %416 = vmatprep.subr.bf16.mxu0 0
        %417 = vmatpush1.bf16.msra.mxu0 0
        %418 = vmatprep.subr.bf16.mxu0 0
        %419 = vmatpush1.bf16.msra.mxu0 0
        %420 = vmatprep.mubr.bf16.mxu0 0
        %421 = vmatmul.mubr.bf16.gmra.mrb[0].mxu0 %v383
        %v422 = vpop.f32.mrb[0].mxu0
        %v423 = vadd.f32 0.0, %v422
        %v424 = vpop.f32.mrb[0].mxu0
        %v425 = vpop.f32.mrb[0].mxu0
        %v426 = vpop.f32.mrb[0].mxu0
        %427 = vdwg.mxu0
        %v428 = vrcp.pop %v378
        %v429 = vmul.f32 %v423, %v428
        %v430 = vpack.c.bf16 %v429, %v429
        %v433 = vunpack.c.l.s4 1983009808
        %v434 = vunpack.c.0.s8 %v433
        %v435 = vlaneseq
        %v436 = vshrl.u32 %v435, 7
        %v437 = vsub.s32 %v434, %v436
        %v438 = vrot.slane %v430, %v437
        %439 = vrot.lane.b32.xlu0 %v438, 4
        %v440 = vpop.permute.xlu0 %439
        %vm442 = vcmask 58400
        %443 = vst.msk [vmem:[%s189] sm:$0x3] %vm442, %v440
        %444 = vrot.lane.b32.xlu0 %v205, 120
        %v445 = vpop.permute.xlu0 %444
        %446 = vrot.lane.b32.xlu0 %v205, 88
        %v447 = vpop.permute.xlu0 %446
        %v449 = vsel %vm208, %v445, 0
        %v452 = vsel %vm208, %v447, 0
        %454 = vmatprep.subr.bf16.mxu0 0
        %455 = vmatpush1.bf16.xpose.msra.mxu0 %v452
        %456 = vmatprep.subr.bf16.mxu0 0
        %457 = vmatpush1.bf16.xpose.msra.mxu0 0
        %458 = vmatprep.subr.bf16.mxu0 0
        %459 = vmatpush1.bf16.xpose.msra.mxu0 0
        %460 = vmatprep.subr.bf16.mxu0 0
        %461 = vmatpush1.bf16.xpose.msra.mxu0 0
        %462 = vmatprep.subr.bf16.mxu0 0
        %463 = vmatpush1.bf16.xpose.msra.mxu0 0
        %464 = vmatprep.subr.bf16.mxu0 0
        %465 = vmatpush1.bf16.xpose.msra.mxu0 0
        %466 = vmatprep.subr.bf16.mxu0 0
        %467 = vmatpush1.bf16.xpose.msra.mxu0 0
        %468 = vmatprep.subr.bf16.mxu0 0
        %469 = vmatpush1.bf16.xpose.msra.mxu0 0
        %470 = vmatprep.subr.bf16.mxu0 0
        %471 = vmatpush1.bf16.xpose.msra.mxu0 0
        %472 = vmatprep.subr.bf16.mxu0 0
        %473 = vmatpush1.bf16.xpose.msra.mxu0 0
        %474 = vmatprep.subr.bf16.mxu0 0
        %475 = vmatpush1.bf16.xpose.msra.mxu0 0
        %476 = vmatprep.subr.bf16.mxu0 0
        %477 = vmatpush1.bf16.xpose.msra.mxu0 0
        %478 = vmatprep.subr.bf16.mxu0 0
        %479 = vmatpush1.bf16.xpose.msra.mxu0 0
        %480 = vmatprep.subr.bf16.mxu0 0
        %481 = vmatpush1.bf16.xpose.msra.mxu0 0
        %482 = vmatprep.subr.bf16.mxu0 0
        %483 = vmatpush1.bf16.xpose.msra.mxu0 0
        %484 = vmatprep.subr.bf16.mxu0 0
        %485 = vmatpush1.bf16.xpose.msra.mxu0 0
        %486 = vmatprep.mubr.bf16.mxu0 0
        %487 = vmatmul.mubr.bf16.gmra.mrb[0].mxu0 %v449
        %v488 = vpop.f32.mrb[0].mxu0
        %v489 = vadd.f32 0.0, %v488
        %v490 = vpop.f32.mrb[0].mxu0
        %v491 = vpop.f32.mrb[0].mxu0
        %v492 = vpop.f32.mrb[0].mxu0
        %493 = vdwg.mxu0
        %v494 = vsel %vm255, %v489, -inf
        %495 = vmax.xlane.f32.xlu0 %v494
        %v496 = vpop.xlane.xlu0 %495
        %v497 = vsub.f32 %v489, %v496
        %v498 = vmul.f32 %v497, 1.442695
        %v499 = vpow.pop %v498
        %v500 = vsel %vm255, %v499, 0.0
        %501 = vadd.xlane.f32.xlu0 %v500
        %v502 = vpop.xlane.xlu0 %501
        %v503 = vpack.c.bf16 %v499, %v499
        %504 = vrot.lane.b32.xlu0 %v205, 56
        %v505 = vpop.permute.xlu0 %504
        %v507 = vsel %vm208, %v503, 0
        %v510 = vsel %vm271, %v505, 0
        %512 = vmatprep.subr.bf16.mxu0 0
        %513 = vmatpush1.bf16.msra.mxu0 %v510
        %514 = vmatprep.subr.bf16.mxu0 0
        %515 = vmatpush1.bf16.msra.mxu0 0
        %516 = vmatprep.subr.bf16.mxu0 0
        %517 = vmatpush1.bf16.msra.mxu0 0
        %518 = vmatprep.subr.bf16.mxu0 0
        %519 = vmatpush1.bf16.msra.mxu0 0
        %520 = vmatprep.subr.bf16.mxu0 0
        %521 = vmatpush1.bf16.msra.mxu0 0
        %522 = vmatprep.subr.bf16.mxu0 0
        %523 = vmatpush1.bf16.msra.mxu0 0
        %524 = vmatprep.subr.bf16.mxu0 0
        %525 = vmatpush1.bf16.msra.mxu0 0
        %526 = vmatprep.subr.bf16.mxu0 0
        %527 = vmatpush1.bf16.msra.mxu0 0
        %528 = vmatprep.subr.bf16.mxu0 0
        %529 = vmatpush1.bf16.msra.mxu0 0
        %530 = vmatprep.subr.bf16.mxu0 0
        %531 = vmatpush1.bf16.msra.mxu0 0
        %532 = vmatprep.subr.bf16.mxu0 0
        %533 = vmatpush1.bf16.msra.mxu0 0
        %534 = vmatprep.subr.bf16.mxu0 0
        %535 = vmatpush1.bf16.msra.mxu0 0
        %536 = vmatprep.subr.bf16.mxu0 0
        %537 = vmatpush1.bf16.msra.mxu0 0
        %538 = vmatprep.subr.bf16.mxu0 0
        %539 = vmatpush1.bf16.msra.mxu0 0
        %540 = vmatprep.subr.bf16.mxu0 0
        %541 = vmatpush1.bf16.msra.mxu0 0
        %542 = vmatprep.subr.bf16.mxu0 0
        %543 = vmatpush1.bf16.msra.mxu0 0
        %544 = vmatprep.mubr.bf16.mxu0 0
        %545 = vmatmul.mubr.bf16.gmra.mrb[0].mxu0 %v507
        %v546 = vpop.f32.mrb[0].mxu0
        %v547 = vadd.f32 0.0, %v546
        %v548 = vpop.f32.mrb[0].mxu0
        %v549 = vpop.f32.mrb[0].mxu0
        %v550 = vpop.f32.mrb[0].mxu0
        %551 = vdwg.mxu0
        %v552 = vrcp.pop %v502
        %v553 = vmul.f32 %v547, %v552
        %v554 = vpack.c.bf16 %v553, %v553
        %v557 = vunpack.c.l.s4 1983009808
        %v558 = vunpack.c.0.s8 %v557
        %v559 = vlaneseq
        %v560 = vshrl.u32 %v559, 7
        %v561 = vsub.s32 %v558, %v560
        %v562 = vrot.slane %v554, %v561
        %563 = vrot.lane.b32.xlu0 %v562, 8
        %v564 = vpop.permute.xlu0 %563
        %vm566 = vcmask 91200
        %567 = vst.msk [vmem:[%s189] sm:$0x3] %vm566, %v564
        %568 = vrot.lane.b32.xlu0 %v205, 116
        %v569 = vpop.permute.xlu0 %568
        %570 = vrot.lane.b32.xlu0 %v205, 84
        %v571 = vpop.permute.xlu0 %570
        %v573 = vsel %vm208, %v569, 0
        %v576 = vsel %vm208, %v571, 0
        %578 = vmatprep.subr.bf16.mxu0 0
        %579 = vmatpush1.bf16.xpose.msra.mxu0 %v576
        %580 = vmatprep.subr.bf16.mxu0 0
        %581 = vmatpush1.bf16.xpose.msra.mxu0 0
        %582 = vmatprep.subr.bf16.mxu0 0
        %583 = vmatpush1.bf16.xpose.msra.mxu0 0
        %584 = vmatprep.subr.bf16.mxu0 0
        %585 = vmatpush1.bf16.xpose.msra.mxu0 0
        %586 = vmatprep.subr.bf16.mxu0 0
        %587 = vmatpush1.bf16.xpose.msra.mxu0 0
        %588 = vmatprep.subr.bf16.mxu0 0
        %589 = vmatpush1.bf16.xpose.msra.mxu0 0
        %590 = vmatprep.subr.bf16.mxu0 0
        %591 = vmatpush1.bf16.xpose.msra.mxu0 0
        %592 = vmatprep.subr.bf16.mxu0 0
        %593 = vmatpush1.bf16.xpose.msra.mxu0 0
        %594 = vmatprep.subr.bf16.mxu0 0
        %595 = vmatpush1.bf16.xpose.msra.mxu0 0
        %596 = vmatprep.subr.bf16.mxu0 0
        %597 = vmatpush1.bf16.xpose.msra.mxu0 0
        %598 = vmatprep.subr.bf16.mxu0 0
        %599 = vmatpush1.bf16.xpose.msra.mxu0 0
        %600 = vmatprep.subr.bf16.mxu0 0
        %601 = vmatpush1.bf16.xpose.msra.mxu0 0
        %602 = vmatprep.subr.bf16.mxu0 0
        %603 = vmatpush1.bf16.xpose.msra.mxu0 0
        %604 = vmatprep.subr.bf16.mxu0 0
        %605 = vmatpush1.bf16.xpose.msra.mxu0 0
        %606 = vmatprep.subr.bf16.mxu0 0
        %607 = vmatpush1.bf16.xpose.msra.mxu0 0
        %608 = vmatprep.subr.bf16.mxu0 0
        %609 = vmatpush1.bf16.xpose.msra.mxu0 0
        %610 = vmatprep.mubr.bf16.mxu0 0
        %611 = vmatmul.mubr.bf16.gmra.mrb[0].mxu0 %v573
        %v612 = vpop.f32.mrb[0].mxu0
        %v613 = vadd.f32 0.0, %v612
        %v614 = vpop.f32.mrb[0].mxu0
        %v615 = vpop.f32.mrb[0].mxu0
        %v616 = vpop.f32.mrb[0].mxu0
        %617 = vdwg.mxu0
        %v618 = vsel %vm255, %v613, -inf
        %619 = vmax.xlane.f32.xlu0 %v618
        %v620 = vpop.xlane.xlu0 %619
        %v621 = vsub.f32 %v613, %v620
        %v622 = vmul.f32 %v621, 1.442695
        %v623 = vpow.pop %v622
        %v624 = vsel %vm255, %v623, 0.0
        %625 = vadd.xlane.f32.xlu0 %v624
        %v626 = vpop.xlane.xlu0 %625
        %v627 = vpack.c.bf16 %v623, %v623
        %628 = vrot.lane.b32.xlu0 %v205, 52
        %v629 = vpop.permute.xlu0 %628
        %v631 = vsel %vm208, %v627, 0
        %v634 = vsel %vm271, %v629, 0
        %636 = vmatprep.subr.bf16.mxu0 0
        %637 = vmatpush1.bf16.msra.mxu0 %v634
        %638 = vmatprep.subr.bf16.mxu0 0
        %639 = vmatpush1.bf16.msra.mxu0 0
        %640 = vmatprep.subr.bf16.mxu0 0
        %641 = vmatpush1.bf16.msra.mxu0 0
        %642 = vmatprep.subr.bf16.mxu0 0
        %643 = vmatpush1.bf16.msra.mxu0 0
        %644 = vmatprep.subr.bf16.mxu0 0
        %645 = vmatpush1.bf16.msra.mxu0 0
        %646 = vmatprep.subr.bf16.mxu0 0
        %647 = vmatpush1.bf16.msra.mxu0 0
        %648 = vmatprep.subr.bf16.mxu0 0
        %649 = vmatpush1.bf16.msra.mxu0 0
        %650 = vmatprep.subr.bf16.mxu0 0
        %651 = vmatpush1.bf16.msra.mxu0 0
        %652 = vmatprep.subr.bf16.mxu0 0
        %653 = vmatpush1.bf16.msra.mxu0 0
        %654 = vmatprep.subr.bf16.mxu0 0
        %655 = vmatpush1.bf16.msra.mxu0 0
        %656 = vmatprep.subr.bf16.mxu0 0
        %657 = vmatpush1.bf16.msra.mxu0 0
        %658 = vmatprep.subr.bf16.mxu0 0
        %659 = vmatpush1.bf16.msra.mxu0 0
        %660 = vmatprep.subr.bf16.mxu0 0
        %661 = vmatpush1.bf16.msra.mxu0 0
        %662 = vmatprep.subr.bf16.mxu0 0
        %663 = vmatpush1.bf16.msra.mxu0 0
        %664 = vmatprep.subr.bf16.mxu0 0
        %665 = vmatpush1.bf16.msra.mxu0 0
        %666 = vmatprep.subr.bf16.mxu0 0
        %667 = vmatpush1.bf16.msra.mxu0 0
        %668 = vmatprep.mubr.bf16.mxu0 0
        %669 = vmatmul.mubr.bf16.gmra.mrb[0].mxu0 %v631
        %v670 = vpop.f32.mrb[0].mxu0
        %v671 = vadd.f32 0.0, %v670
        %v672 = vpop.f32.mrb[0].mxu0
        %v673 = vpop.f32.mrb[0].mxu0
        %v674 = vpop.f32.mrb[0].mxu0
        %675 = vdwg.mxu0
        %v676 = vrcp.pop %v626
        %v677 = vmul.f32 %v671, %v676
        %v678 = vpack.c.bf16 %v677, %v677
        %v681 = vunpack.c.l.s4 1983009808
        %v682 = vunpack.c.0.s8 %v681
        %v683 = vlaneseq
        %v684 = vshrl.u32 %v683, 7
        %v685 = vsub.s32 %v682, %v684
        %v686 = vrot.slane %v678, %v685
        %687 = vrot.lane.b32.xlu0 %v686, 12
        %v688 = vpop.permute.xlu0 %687
        %vm690 = vcmask 124000
        %691 = vst.msk [vmem:[%s189] sm:$0x3] %vm690, %v688
        %692 = vrot.lane.b32.xlu0 %v205, 112
        %v693 = vpop.permute.xlu0 %692
        %694 = vrot.lane.b32.xlu0 %v205, 80
        %v695 = vpop.permute.xlu0 %694
        %v697 = vsel %vm208, %v693, 0
        %v700 = vsel %vm208, %v695, 0
        %702 = vmatprep.subr.bf16.mxu0 0
        %703 = vmatpush1.bf16.xpose.msra.mxu0 %v700
        %704 = vmatprep.subr.bf16.mxu0 0
        %705 = vmatpush1.bf16.xpose.msra.mxu0 0
        %706 = vmatprep.subr.bf16.mxu0 0
        %707 = vmatpush1.bf16.xpose.msra.mxu0 0
        %708 = vmatprep.subr.bf16.mxu0 0
        %709 = vmatpush1.bf16.xpose.msra.mxu0 0
        %710 = vmatprep.subr.bf16.mxu0 0
        %711 = vmatpush1.bf16.xpose.msra.mxu0 0
        %712 = vmatprep.subr.bf16.mxu0 0
        %713 = vmatpush1.bf16.xpose.msra.mxu0 0
        %714 = vmatprep.subr.bf16.mxu0 0
        %715 = vmatpush1.bf16.xpose.msra.mxu0 0
        %716 = vmatprep.subr.bf16.mxu0 0
        %717 = vmatpush1.bf16.xpose.msra.mxu0 0
        %718 = vmatprep.subr.bf16.mxu0 0
        %719 = vmatpush1.bf16.xpose.msra.mxu0 0
        %720 = vmatprep.subr.bf16.mxu0 0
        %721 = vmatpush1.bf16.xpose.msra.mxu0 0
        %722 = vmatprep.subr.bf16.mxu0 0
        %723 = vmatpush1.bf16.xpose.msra.mxu0 0
        %724 = vmatprep.subr.bf16.mxu0 0
        %725 = vmatpush1.bf16.xpose.msra.mxu0 0
        %726 = vmatprep.subr.bf16.mxu0 0
        %727 = vmatpush1.bf16.xpose.msra.mxu0 0
        %728 = vmatprep.subr.bf16.mxu0 0
        %729 = vmatpush1.bf16.xpose.msra.mxu0 0
        %730 = vmatprep.subr.bf16.mxu0 0
        %731 = vmatpush1.bf16.xpose.msra.mxu0 0
        %732 = vmatprep.subr.bf16.mxu0 0
        %733 = vmatpush1.bf16.xpose.msra.mxu0 0
        %734 = vmatprep.mubr.bf16.mxu0 0
        %735 = vmatmul.mubr.bf16.gmra.mrb[0].mxu0 %v697
        %v736 = vpop.f32.mrb[0].mxu0
        %v737 = vadd.f32 0.0, %v736
        %v738 = vpop.f32.mrb[0].mxu0
        %v739 = vpop.f32.mrb[0].mxu0
        %v740 = vpop.f32.mrb[0].mxu0
        %741 = vdwg.mxu0
        %v742 = vsel %vm255, %v737, -inf
        %743 = vmax.xlane.f32.xlu0 %v742
        %v744 = vpop.xlane.xlu0 %743
        %v745 = vsub.f32 %v737, %v744
        %v746 = vmul.f32 %v745, 1.442695
        %v747 = vpow.pop %v746
        %v748 = vsel %vm255, %v747, 0.0
        %749 = vadd.xlane.f32.xlu0 %v748
        %v750 = vpop.xlane.xlu0 %749
        %v751 = vpack.c.bf16 %v747, %v747
        %752 = vrot.lane.b32.xlu0 %v205, 48
        %v753 = vpop.permute.xlu0 %752
        %v755 = vsel %vm208, %v751, 0
        %v758 = vsel %vm271, %v753, 0
        %760 = vmatprep.subr.bf16.mxu0 0
        %761 = vmatpush1.bf16.msra.mxu0 %v758
        %762 = vmatprep.subr.bf16.mxu0 0
        %763 = vmatpush1.bf16.msra.mxu0 0
        %764 = vmatprep.subr.bf16.mxu0 0
        %765 = vmatpush1.bf16.msra.mxu0 0
        %766 = vmatprep.subr.bf16.mxu0 0
        %767 = vmatpush1.bf16.msra.mxu0 0
        %768 = vmatprep.subr.bf16.mxu0 0
        %769 = vmatpush1.bf16.msra.mxu0 0
        %770 = vmatprep.subr.bf16.mxu0 0
        %771 = vmatpush1.bf16.msra.mxu0 0
        %772 = vmatprep.subr.bf16.mxu0 0
        %773 = vmatpush1.bf16.msra.mxu0 0
        %774 = vmatprep.subr.bf16.mxu0 0
        %775 = vmatpush1.bf16.msra.mxu0 0
        %776 = vmatprep.subr.bf16.mxu0 0
        %777 = vmatpush1.bf16.msra.mxu0 0
        %778 = vmatprep.subr.bf16.mxu0 0
        %779 = vmatpush1.bf16.msra.mxu0 0
        %780 = vmatprep.subr.bf16.mxu0 0
        %781 = vmatpush1.bf16.msra.mxu0 0
        %782 = vmatprep.subr.bf16.mxu0 0
        %783 = vmatpush1.bf16.msra.mxu0 0
        %784 = vmatprep.subr.bf16.mxu0 0
        %785 = vmatpush1.bf16.msra.mxu0 0
        %786 = vmatprep.subr.bf16.mxu0 0
        %787 = vmatpush1.bf16.msra.mxu0 0
        %788 = vmatprep.subr.bf16.mxu0 0
        %789 = vmatpush1.bf16.msra.mxu0 0
        %790 = vmatprep.subr.bf16.mxu0 0
        %791 = vmatpush1.bf16.msra.mxu0 0
        %792 = vmatprep.mubr.bf16.mxu0 0
        %793 = vmatmul.mubr.bf16.gmra.mrb[0].mxu0 %v755
        %v794 = vpop.f32.mrb[0].mxu0
        %v795 = vadd.f32 0.0, %v794
        %v796 = vpop.f32.mrb[0].mxu0
        %v797 = vpop.f32.mrb[0].mxu0
        %v798 = vpop.f32.mrb[0].mxu0
        %799 = vdwg.mxu0
        %v800 = vrcp.pop %v750
        %v801 = vmul.f32 %v795, %v800
        %v802 = vpack.c.bf16 %v801, %v801
        %v805 = vunpack.c.l.s4 1983009808
        %v806 = vunpack.c.0.s8 %v805
        %v807 = vlaneseq
        %v808 = vshrl.u32 %v807, 7
        %v809 = vsub.s32 %v806, %v808
        %v810 = vrot.slane %v802, %v809
        %811 = vrot.lane.b32.xlu0 %v810, 16
        %v812 = vpop.permute.xlu0 %811
        %vm814 = vcmask 156800
        %815 = vst.msk [vmem:[%s189] sm:$0x3] %vm814, %v812
        %816 = vrot.lane.b32.xlu0 %v205, 108
        %v817 = vpop.permute.xlu0 %816
        %818 = vrot.lane.b32.xlu0 %v205, 76
        %v819 = vpop.permute.xlu0 %818
        %v821 = vsel %vm208, %v817, 0
        %v824 = vsel %vm208, %v819, 0
        %826 = vmatprep.subr.bf16.mxu0 0
        %827 = vmatpush1.bf16.xpose.msra.mxu0 %v824
        %828 = vmatprep.subr.bf16.mxu0 0
        %829 = vmatpush1.bf16.xpose.msra.mxu0 0
        %830 = vmatprep.subr.bf16.mxu0 0
        %831 = vmatpush1.bf16.xpose.msra.mxu0 0
        %832 = vmatprep.subr.bf16.mxu0 0
        %833 = vmatpush1.bf16.xpose.msra.mxu0 0
        %834 = vmatprep.subr.bf16.mxu0 0
        %835 = vmatpush1.bf16.xpose.msra.mxu0 0
        %836 = vmatprep.subr.bf16.mxu0 0
        %837 = vmatpush1.bf16.xpose.msra.mxu0 0
        %838 = vmatprep.subr.bf16.mxu0 0
        %839 = vmatpush1.bf16.xpose.msra.mxu0 0
        %840 = vmatprep.subr.bf16.mxu0 0
        %841 = vmatpush1.bf16.xpose.msra.mxu0 0
        %842 = vmatprep.subr.bf16.mxu0 0
        %843 = vmatpush1.bf16.xpose.msra.mxu0 0
        %844 = vmatprep.subr.bf16.mxu0 0
        %845 = vmatpush1.bf16.xpose.msra.mxu0 0
        %846 = vmatprep.subr.bf16.mxu0 0
        %847 = vmatpush1.bf16.xpose.msra.mxu0 0
        %848 = vmatprep.subr.bf16.mxu0 0
        %849 = vmatpush1.bf16.xpose.msra.mxu0 0
        %850 = vmatprep.subr.bf16.mxu0 0
        %851 = vmatpush1.bf16.xpose.msra.mxu0 0
        %852 = vmatprep.subr.bf16.mxu0 0
        %853 = vmatpush1.bf16.xpose.msra.mxu0 0
        %854 = vmatprep.subr.bf16.mxu0 0
        %855 = vmatpush1.bf16.xpose.msra.mxu0 0
        %856 = vmatprep.subr.bf16.mxu0 0
        %857 = vmatpush1.bf16.xpose.msra.mxu0 0
        %858 = vmatprep.mubr.bf16.mxu0 0
        %859 = vmatmul.mubr.bf16.gmra.mrb[0].mxu0 %v821
        %v860 = vpop.f32.mrb[0].mxu0
        %v861 = vadd.f32 0.0, %v860
        %v862 = vpop.f32.mrb[0].mxu0
        %v863 = vpop.f32.mrb[0].mxu0
        %v864 = vpop.f32.mrb[0].mxu0
        %865 = vdwg.mxu0
        %v866 = vsel %vm255, %v861, -inf
        %867 = vmax.xlane.f32.xlu0 %v866
        %v868 = vpop.xlane.xlu0 %867
        %v869 = vsub.f32 %v861, %v868
        %v870 = vmul.f32 %v869, 1.442695
        %v871 = vpow.pop %v870
        %v872 = vsel %vm255, %v871, 0.0
        %873 = vadd.xlane.f32.xlu0 %v872
        %v874 = vpop.xlane.xlu0 %873
        %v875 = vpack.c.bf16 %v871, %v871
        %876 = vrot.lane.b32.xlu0 %v205, 44
        %v877 = vpop.permute.xlu0 %876
        %v879 = vsel %vm208, %v875, 0
        %v882 = vsel %vm271, %v877, 0
        %884 = vmatprep.subr.bf16.mxu0 0
        %885 = vmatpush1.bf16.msra.mxu0 %v882
        %886 = vmatprep.subr.bf16.mxu0 0
        %887 = vmatpush1.bf16.msra.mxu0 0
        %888 = vmatprep.subr.bf16.mxu0 0
        %889 = vmatpush1.bf16.msra.mxu0 0
        %890 = vmatprep.subr.bf16.mxu0 0
        %891 = vmatpush1.bf16.msra.mxu0 0
        %892 = vmatprep.subr.bf16.mxu0 0
        %893 = vmatpush1.bf16.msra.mxu0 0
        %894 = vmatprep.subr.bf16.mxu0 0
        %895 = vmatpush1.bf16.msra.mxu0 0
        %896 = vmatprep.subr.bf16.mxu0 0
        %897 = vmatpush1.bf16.msra.mxu0 0
        %898 = vmatprep.subr.bf16.mxu0 0
        %899 = vmatpush1.bf16.msra.mxu0 0
        %900 = vmatprep.subr.bf16.mxu0 0
        %901 = vmatpush1.bf16.msra.mxu0 0
        %902 = vmatprep.subr.bf16.mxu0 0
        %903 = vmatpush1.bf16.msra.mxu0 0
        %904 = vmatprep.subr.bf16.mxu0 0
        %905 = vmatpush1.bf16.msra.mxu0 0
        %906 = vmatprep.subr.bf16.mxu0 0
        %907 = vmatpush1.bf16.msra.mxu0 0
        %908 = vmatprep.subr.bf16.mxu0 0
        %909 = vmatpush1.bf16.msra.mxu0 0
        %910 = vmatprep.subr.bf16.mxu0 0
        %911 = vmatpush1.bf16.msra.mxu0 0
        %912 = vmatprep.subr.bf16.mxu0 0
        %913 = vmatpush1.bf16.msra.mxu0 0
        %914 = vmatprep.subr.bf16.mxu0 0
        %915 = vmatpush1.bf16.msra.mxu0 0
        %916 = vmatprep.mubr.bf16.mxu0 0
        %917 = vmatmul.mubr.bf16.gmra.mrb[0].mxu0 %v879
        %v918 = vpop.f32.mrb[0].mxu0
        %v919 = vadd.f32 0.0, %v918
        %v920 = vpop.f32.mrb[0].mxu0
        %v921 = vpop.f32.mrb[0].mxu0
        %v922 = vpop.f32.mrb[0].mxu0
        %923 = vdwg.mxu0
        %v924 = vrcp.pop %v874
        %v925 = vmul.f32 %v919, %v924
        %v926 = vpack.c.bf16 %v925, %v925
        %v929 = vunpack.c.l.s4 1983009808
        %v930 = vunpack.c.0.s8 %v929
        %v931 = vlaneseq
        %v932 = vshrl.u32 %v931, 7
        %v933 = vsub.s32 %v930, %v932
        %v934 = vrot.slane %v926, %v933
        %935 = vrot.lane.b32.xlu0 %v934, 20
        %v936 = vpop.permute.xlu0 %935
        %vm938 = vcmask 189600
        %939 = vst.msk [vmem:[%s189] sm:$0x3] %vm938, %v936
        %940 = vrot.lane.b32.xlu0 %v205, 104
        %v941 = vpop.permute.xlu0 %940
        %942 = vrot.lane.b32.xlu0 %v205, 72
        %v943 = vpop.permute.xlu0 %942
        %v945 = vsel %vm208, %v941, 0
        %v948 = vsel %vm208, %v943, 0
        %950 = vmatprep.subr.bf16.mxu0 0
        %951 = vmatpush1.bf16.xpose.msra.mxu0 %v948
        %952 = vmatprep.subr.bf16.mxu0 0
        %953 = vmatpush1.bf16.xpose.msra.mxu0 0
        %954 = vmatprep.subr.bf16.mxu0 0
        %955 = vmatpush1.bf16.xpose.msra.mxu0 0
        %956 = vmatprep.subr.bf16.mxu0 0
        %957 = vmatpush1.bf16.xpose.msra.mxu0 0
        %958 = vmatprep.subr.bf16.mxu0 0
        %959 = vmatpush1.bf16.xpose.msra.mxu0 0
        %960 = vmatprep.subr.bf16.mxu0 0
        %961 = vmatpush1.bf16.xpose.msra.mxu0 0
        %962 = vmatprep.subr.bf16.mxu0 0
        %963 = vmatpush1.bf16.xpose.msra.mxu0 0
        %964 = vmatprep.subr.bf16.mxu0 0
        %965 = vmatpush1.bf16.xpose.msra.mxu0 0
        %966 = vmatprep.subr.bf16.mxu0 0
        %967 = vmatpush1.bf16.xpose.msra.mxu0 0
        %968 = vmatprep.subr.bf16.mxu0 0
        %969 = vmatpush1.bf16.xpose.msra.mxu0 0
        %970 = vmatprep.subr.bf16.mxu0 0
        %971 = vmatpush1.bf16.xpose.msra.mxu0 0
        %972 = vmatprep.subr.bf16.mxu0 0
        %973 = vmatpush1.bf16.xpose.msra.mxu0 0
        %974 = vmatprep.subr.bf16.mxu0 0
        %975 = vmatpush1.bf16.xpose.msra.mxu0 0
        %976 = vmatprep.subr.bf16.mxu0 0
        %977 = vmatpush1.bf16.xpose.msra.mxu0 0
        %978 = vmatprep.subr.bf16.mxu0 0
        %979 = vmatpush1.bf16.xpose.msra.mxu0 0
        %980 = vmatprep.subr.bf16.mxu0 0
        %981 = vmatpush1.bf16.xpose.msra.mxu0 0
        %982 = vmatprep.mubr.bf16.mxu0 0
        %983 = vmatmul.mubr.bf16.gmra.mrb[0].mxu0 %v945
        %v984 = vpop.f32.mrb[0].mxu0
        %v985 = vadd.f32 0.0, %v984
        %v986 = vpop.f32.mrb[0].mxu0
        %v987 = vpop.f32.mrb[0].mxu0
        %v988 = vpop.f32.mrb[0].mxu0
        %989 = vdwg.mxu0
        %v990 = vsel %vm255, %v985, -inf
        %991 = vmax.xlane.f32.xlu0 %v990
        %v992 = vpop.xlane.xlu0 %991
        %v993 = vsub.f32 %v985, %v992
        %v994 = vmul.f32 %v993, 1.442695
        %v995 = vpow.pop %v994
        %v996 = vsel %vm255, %v995, 0.0
        %997 = vadd.xlane.f32.xlu0 %v996
        %v998 = vpop.xlane.xlu0 %997
        %v999 = vpack.c.bf16 %v995, %v995
        %1000 = vrot.lane.b32.xlu0 %v205, 40
        %v1001 = vpop.permute.xlu0 %1000
        %v1003 = vsel %vm208, %v999, 0
        %v1006 = vsel %vm271, %v1001, 0
        %1008 = vmatprep.subr.bf16.mxu0 0
        %1009 = vmatpush1.bf16.msra.mxu0 %v1006
        %1010 = vmatprep.subr.bf16.mxu0 0
        %1011 = vmatpush1.bf16.msra.mxu0 0
        %1012 = vmatprep.subr.bf16.mxu0 0
        %1013 = vmatpush1.bf16.msra.mxu0 0
        %1014 = vmatprep.subr.bf16.mxu0 0
        %1015 = vmatpush1.bf16.msra.mxu0 0
        %1016 = vmatprep.subr.bf16.mxu0 0
        %1017 = vmatpush1.bf16.msra.mxu0 0
        %1018 = vmatprep.subr.bf16.mxu0 0
        %1019 = vmatpush1.bf16.msra.mxu0 0
        %1020 = vmatprep.subr.bf16.mxu0 0
        %1021 = vmatpush1.bf16.msra.mxu0 0
        %1022 = vmatprep.subr.bf16.mxu0 0
        %1023 = vmatpush1.bf16.msra.mxu0 0
        %1024 = vmatprep.subr.bf16.mxu0 0
        %1025 = vmatpush1.bf16.msra.mxu0 0
        %1026 = vmatprep.subr.bf16.mxu0 0
        %1027 = vmatpush1.bf16.msra.mxu0 0
        %1028 = vmatprep.subr.bf16.mxu0 0
        %1029 = vmatpush1.bf16.msra.mxu0 0
        %1030 = vmatprep.subr.bf16.mxu0 0
        %1031 = vmatpush1.bf16.msra.mxu0 0
        %1032 = vmatprep.subr.bf16.mxu0 0
        %1033 = vmatpush1.bf16.msra.mxu0 0
        %1034 = vmatprep.subr.bf16.mxu0 0
        %1035 = vmatpush1.bf16.msra.mxu0 0
        %1036 = vmatprep.subr.bf16.mxu0 0
        %1037 = vmatpush1.bf16.msra.mxu0 0
        %1038 = vmatprep.subr.bf16.mxu0 0
        %1039 = vmatpush1.bf16.msra.mxu0 0
        %1040 = vmatprep.mubr.bf16.mxu0 0
        %1041 = vmatmul.mubr.bf16.gmra.mrb[0].mxu0 %v1003
        %v1042 = vpop.f32.mrb[0].mxu0
        %v1043 = vadd.f32 0.0, %v1042
        %v1044 = vpop.f32.mrb[0].mxu0
        %v1045 = vpop.f32.mrb[0].mxu0
        %v1046 = vpop.f32.mrb[0].mxu0
        %1047 = vdwg.mxu0
        %v1048 = vrcp.pop %v998
        %v1049 = vmul.f32 %v1043, %v1048
        %v1050 = vpack.c.bf16 %v1049, %v1049
        %v1053 = vunpack.c.l.s4 1983009808
        %v1054 = vunpack.c.0.s8 %v1053
        %v1055 = vlaneseq
        %v1056 = vshrl.u32 %v1055, 7
        %v1057 = vsub.s32 %v1054, %v1056
        %v1058 = vrot.slane %v1050, %v1057
        %1059 = vrot.lane.b32.xlu0 %v1058, 24
        %v1060 = vpop.permute.xlu0 %1059
        %vm1062 = vcmask 222400
        %1063 = vst.msk [vmem:[%s189] sm:$0x3] %vm1062, %v1060
        %1064 = vrot.lane.b32.xlu0 %v205, 100
        %v1065 = vpop.permute.xlu0 %1064
        %1066 = vrot.lane.b32.xlu0 %v205, 68
        %v1067 = vpop.permute.xlu0 %1066
        %v1069 = vsel %vm208, %v1065, 0
        %v1072 = vsel %vm208, %v1067, 0
        %1074 = vmatprep.subr.bf16.mxu0 0
        %1075 = vmatpush1.bf16.xpose.msra.mxu0 %v1072
        %1076 = vmatprep.subr.bf16.mxu0 0
        %1077 = vmatpush1.bf16.xpose.msra.mxu0 0
        %1078 = vmatprep.subr.bf16.mxu0 0
        %1079 = vmatpush1.bf16.xpose.msra.mxu0 0
        %1080 = vmatprep.subr.bf16.mxu0 0
        %1081 = vmatpush1.bf16.xpose.msra.mxu0 0
        %1082 = vmatprep.subr.bf16.mxu0 0
        %1083 = vmatpush1.bf16.xpose.msra.mxu0 0
        %1084 = vmatprep.subr.bf16.mxu0 0
        %1085 = vmatpush1.bf16.xpose.msra.mxu0 0
        %1086 = vmatprep.subr.bf16.mxu0 0
        %1087 = vmatpush1.bf16.xpose.msra.mxu0 0
        %1088 = vmatprep.subr.bf16.mxu0 0
        %1089 = vmatpush1.bf16.xpose.msra.mxu0 0
        %1090 = vmatprep.subr.bf16.mxu0 0
        %1091 = vmatpush1.bf16.xpose.msra.mxu0 0
        %1092 = vmatprep.subr.bf16.mxu0 0
        %1093 = vmatpush1.bf16.xpose.msra.mxu0 0
        %1094 = vmatprep.subr.bf16.mxu0 0
        %1095 = vmatpush1.bf16.xpose.msra.mxu0 0
        %1096 = vmatprep.subr.bf16.mxu0 0
        %1097 = vmatpush1.bf16.xpose.msra.mxu0 0
        %1098 = vmatprep.subr.bf16.mxu0 0
        %1099 = vmatpush1.bf16.xpose.msra.mxu0 0
        %1100 = vmatprep.subr.bf16.mxu0 0
        %1101 = vmatpush1.bf16.xpose.msra.mxu0 0
        %1102 = vmatprep.subr.bf16.mxu0 0
        %1103 = vmatpush1.bf16.xpose.msra.mxu0 0
        %1104 = vmatprep.subr.bf16.mxu0 0
        %1105 = vmatpush1.bf16.xpose.msra.mxu0 0
        %1106 = vmatprep.mubr.bf16.mxu0 0
        %1107 = vmatmul.mubr.bf16.gmra.mrb[0].mxu0 %v1069
        %v1108 = vpop.f32.mrb[0].mxu0
        %v1109 = vadd.f32 0.0, %v1108
        %v1110 = vpop.f32.mrb[0].mxu0
        %v1111 = vpop.f32.mrb[0].mxu0
        %v1112 = vpop.f32.mrb[0].mxu0
        %1113 = vdwg.mxu0
        %v1114 = vsel %vm255, %v1109, -inf
        %1115 = vmax.xlane.f32.xlu0 %v1114
        %v1116 = vpop.xlane.xlu0 %1115
        %v1117 = vsub.f32 %v1109, %v1116
        %v1118 = vmul.f32 %v1117, 1.442695
        %v1119 = vpow.pop %v1118
        %v1120 = vsel %vm255, %v1119, 0.0
        %1121 = vadd.xlane.f32.xlu0 %v1120
        %v1122 = vpop.xlane.xlu0 %1121
        %v1123 = vpack.c.bf16 %v1119, %v1119
        %1124 = vrot.lane.b32.xlu0 %v205, 36
        %v1125 = vpop.permute.xlu0 %1124
        %v1127 = vsel %vm208, %v1123, 0
        %v1130 = vsel %vm271, %v1125, 0
        %1132 = vmatprep.subr.bf16.mxu0 0
        %1133 = vmatpush1.bf16.msra.mxu0 %v1130
        %1134 = vmatprep.subr.bf16.mxu0 0
        %1135 = vmatpush1.bf16.msra.mxu0 0
        %1136 = vmatprep.subr.bf16.mxu0 0
        %1137 = vmatpush1.bf16.msra.mxu0 0
        %1138 = vmatprep.subr.bf16.mxu0 0
        %1139 = vmatpush1.bf16.msra.mxu0 0
        %1140 = vmatprep.subr.bf16.mxu0 0
        %1141 = vmatpush1.bf16.msra.mxu0 0
        %1142 = vmatprep.subr.bf16.mxu0 0
        %1143 = vmatpush1.bf16.msra.mxu0 0
        %1144 = vmatprep.subr.bf16.mxu0 0
        %1145 = vmatpush1.bf16.msra.mxu0 0
        %1146 = vmatprep.subr.bf16.mxu0 0
        %1147 = vmatpush1.bf16.msra.mxu0 0
        %1148 = vmatprep.subr.bf16.mxu0 0
        %1149 = vmatpush1.bf16.msra.mxu0 0
        %1150 = vmatprep.subr.bf16.mxu0 0
        %1151 = vmatpush1.bf16.msra.mxu0 0
        %1152 = vmatprep.subr.bf16.mxu0 0
        %1153 = vmatpush1.bf16.msra.mxu0 0
        %1154 = vmatprep.subr.bf16.mxu0 0
        %1155 = vmatpush1.bf16.msra.mxu0 0
        %1156 = vmatprep.subr.bf16.mxu0 0
        %1157 = vmatpush1.bf16.msra.mxu0 0
        %1158 = vmatprep.subr.bf16.mxu0 0
        %1159 = vmatpush1.bf16.msra.mxu0 0
        %1160 = vmatprep.subr.bf16.mxu0 0
        %1161 = vmatpush1.bf16.msra.mxu0 0
        %1162 = vmatprep.subr.bf16.mxu0 0
        %1163 = vmatpush1.bf16.msra.mxu0 0
        %1164 = vmatprep.mubr.bf16.mxu0 0
        %1165 = vmatmul.mubr.bf16.gmra.mrb[0].mxu0 %v1127
        %v1166 = vpop.f32.mrb[0].mxu0
        %v1167 = vadd.f32 0.0, %v1166
        %v1168 = vpop.f32.mrb[0].mxu0
        %v1169 = vpop.f32.mrb[0].mxu0
        %v1170 = vpop.f32.mrb[0].mxu0
        %1171 = vdwg.mxu0
        %v1172 = vrcp.pop %v1122
        %v1173 = vmul.f32 %v1167, %v1172
        %v1174 = vpack.c.bf16 %v1173, %v1173
        %v1177 = vunpack.c.l.s4 1983009808
        %v1178 = vunpack.c.0.s8 %v1177
        %v1179 = vlaneseq
        %v1180 = vshrl.u32 %v1179, 7
        %v1181 = vsub.s32 %v1178, %v1180
        %v1182 = vrot.slane %v1174, %v1181
        %1183 = vrot.lane.b32.xlu0 %v1182, 28
        %v1184 = vpop.permute.xlu0 %1183
        %vm1186 = vcmask 255200
        %1187 = vst.msk [vmem:[%s189] sm:$0x3] %vm1186, %v1184
      $region32: #{dmha_forward.4} parent=27 // pred_fallthru
        _
      %p1188 = scmp.ge.s32.totalorder %s17, 2
      // Predicated region
      $region33: #{dmha_forward.4} parent=27 // pred_check
        %p1189 = pneg %p1188
      $region34: #{dmha_forward.4} parent=27 // pred_check_branch
        %1191 = sbr.rel (%p1189) target = $region36
      $region35: #{dmha_forward.4} parent=27 // pred_region
        %v1192 = vld [vmem:[%s183] sm:$0x3]
        %vm1193 = vcmask 31744
        %v1195 = vsel %vm1193, %v193, 0
        %v1198 = vsel %vm1193, %v1192, 0
        %1200 = vmatprep.subr.bf16.mxu0 0
        %1201 = vmatpush1.bf16.xpose.msra.mxu0 %v1198
        %1202 = vmatprep.subr.bf16.mxu0 0
        %1203 = vmatpush1.bf16.xpose.msra.mxu0 0
        %1204 = vmatprep.subr.bf16.mxu0 0
        %1205 = vmatpush1.bf16.xpose.msra.mxu0 0
        %1206 = vmatprep.subr.bf16.mxu0 0
        %1207 = vmatpush1.bf16.xpose.msra.mxu0 0
        %1208 = vmatprep.subr.bf16.mxu0 0
        %1209 = vmatpush1.bf16.xpose.msra.mxu0 0
        %1210 = vmatprep.subr.bf16.mxu0 0
        %1211 = vmatpush1.bf16.xpose.msra.mxu0 0
        %1212 = vmatprep.subr.bf16.mxu0 0
        %1213 = vmatpush1.bf16.xpose.msra.mxu0 0
        %1214 = vmatprep.subr.bf16.mxu0 0
        %1215 = vmatpush1.bf16.xpose.msra.mxu0 0
        %1216 = vmatprep.subr.bf16.mxu0 0
        %1217 = vmatpush1.bf16.xpose.msra.mxu0 0
        %1218 = vmatprep.subr.bf16.mxu0 0
        %1219 = vmatpush1.bf16.xpose.msra.mxu0 0
        %1220 = vmatprep.subr.bf16.mxu0 0
        %1221 = vmatpush1.bf16.xpose.msra.mxu0 0
        %1222 = vmatprep.subr.bf16.mxu0 0
        %1223 = vmatpush1.bf16.xpose.msra.mxu0 0
        %1224 = vmatprep.subr.bf16.mxu0 0
        %1225 = vmatpush1.bf16.xpose.msra.mxu0 0
        %1226 = vmatprep.subr.bf16.mxu0 0
        %1227 = vmatpush1.bf16.xpose.msra.mxu0 0
        %1228 = vmatprep.subr.bf16.mxu0 0
        %1229 = vmatpush1.bf16.xpose.msra.mxu0 0
        %1230 = vmatprep.subr.bf16.mxu0 0
        %1231 = vmatpush1.bf16.xpose.msra.mxu0 0
        %1232 = vmatprep.mubr.bf16.mxu0 0
        %1233 = vmatmul.mubr.bf16.gmra.mrb[0].mxu0 %v1195
        %v1234 = vpop.f32.mrb[0].mxu0
        %v1235 = vadd.f32 0.0, %v1234
        %v1236 = vpop.f32.mrb[0].mxu0
        %v1237 = vpop.f32.mrb[0].mxu0
        %v1238 = vpop.f32.mrb[0].mxu0
        %1239 = vdwg.mxu0
        %vm1240 = vcmask 27648
        %v1241 = vsel %vm1240, %v1235, -inf
        %1242 = vmax.xlane.f32.xlu0 %v1241
        %v1243 = vpop.xlane.xlu0 %1242
        %v1244 = vsub.f32 %v1235, %v1243
        %v1245 = vmul.f32 %v1244, 1.442695
        %v1246 = vpow.pop %v1245
        %v1247 = vsel %vm1240, %v1246, 0.0
        %1248 = vadd.xlane.f32.xlu0 %v1247
        %v1249 = vpop.xlane.xlu0 %1248
        %v1250 = vpack.c.bf16 %v1246, %v1246
        %v1253 = vunpack.c.l.s4 1983009808
        %v1254 = vunpack.c.0.s8 %v1253
        %v1255 = vlaneseq
        %v1256 = vshrl.u32 %v1255, 7
        %v1257 = vsub.s32 %v1254, %v1256
        %v1258 = vrot.slane %v193, %v1257
        %1259 = vrot.lane.b32.xlu0 %v1258, 64
        %v1260 = vpop.permute.xlu0 %1259
        %v1262 = vsel %vm1193, %v1250, 0
        %vm1264 = vcmask 1041408
        %v1266 = vsel %vm1264, %v1260, 0
        %1268 = vmatprep.subr.bf16.mxu0 0
        %1269 = vmatpush1.bf16.msra.mxu0 %v1266
        %1270 = vmatprep.subr.bf16.mxu0 0
        %1271 = vmatpush1.bf16.msra.mxu0 0
        %1272 = vmatprep.subr.bf16.mxu0 0
        %1273 = vmatpush1.bf16.msra.mxu0 0
        %1274 = vmatprep.subr.bf16.mxu0 0
        %1275 = vmatpush1.bf16.msra.mxu0 0
        %1276 = vmatprep.subr.bf16.mxu0 0
        %1277 = vmatpush1.bf16.msra.mxu0 0
        %1278 = vmatprep.subr.bf16.mxu0 0
        %1279 = vmatpush1.bf16.msra.mxu0 0
        %1280 = vmatprep.subr.bf16.mxu0 0
        %1281 = vmatpush1.bf16.msra.mxu0 0
        %1282 = vmatprep.subr.bf16.mxu0 0
        %1283 = vmatpush1.bf16.msra.mxu0 0
        %1284 = vmatprep.subr.bf16.mxu0 0
        %1285 = vmatpush1.bf16.msra.mxu0 0
        %1286 = vmatprep.subr.bf16.mxu0 0
        %1287 = vmatpush1.bf16.msra.mxu0 0
        %1288 = vmatprep.subr.bf16.mxu0 0
        %1289 = vmatpush1.bf16.msra.mxu0 0
        %1290 = vmatprep.subr.bf16.mxu0 0
        %1291 = vmatpush1.bf16.msra.mxu0 0
        %1292 = vmatprep.subr.bf16.mxu0 0
        %1293 = vmatpush1.bf16.msra.mxu0 0
        %1294 = vmatprep.subr.bf16.mxu0 0
        %1295 = vmatpush1.bf16.msra.mxu0 0
        %1296 = vmatprep.subr.bf16.mxu0 0
        %1297 = vmatpush1.bf16.msra.mxu0 0
        %1298 = vmatprep.subr.bf16.mxu0 0
        %1299 = vmatpush1.bf16.msra.mxu0 0
        %1300 = vmatprep.mubr.bf16.mxu0 0
        %1301 = vmatmul.mubr.bf16.gmra.mrb[0].mxu0 %v1262
        %v1302 = vpop.f32.mrb[0].mxu0
        %v1303 = vadd.f32 0.0, %v1302
        %v1304 = vpop.f32.mrb[0].mxu0
        %v1305 = vpop.f32.mrb[0].mxu0
        %v1306 = vpop.f32.mrb[0].mxu0
        %1307 = vdwg.mxu0
        %v1308 = vrcp.pop %v1249
        %v1309 = vmul.f32 %v1303, %v1308
        %v1310 = vpack.c.bf16 %v1309, %v1309
        %vm1311 = vcmask 25600
        %1312 = vst.msk [vmem:[%s189] sm:$0x3] %vm1311, %v1310
        %1313 = vrot.lane.b32.xlu0 %v1258, 124
        %v1314 = vpop.permute.xlu0 %1313
        %v1316 = vsel %vm1193, %v1314, 0
        %1318 = vmatprep.subr.bf16.mxu0 0
        %1319 = vmatpush1.bf16.xpose.msra.mxu0 %v1198
        %1320 = vmatprep.subr.bf16.mxu0 0
        %1321 = vmatpush1.bf16.xpose.msra.mxu0 0
        %1322 = vmatprep.subr.bf16.mxu0 0
        %1323 = vmatpush1.bf16.xpose.msra.mxu0 0
        %1324 = vmatprep.subr.bf16.mxu0 0
        %1325 = vmatpush1.bf16.xpose.msra.mxu0 0
        %1326 = vmatprep.subr.bf16.mxu0 0
        %1327 = vmatpush1.bf16.xpose.msra.mxu0 0
        %1328 = vmatprep.subr.bf16.mxu0 0
        %1329 = vmatpush1.bf16.xpose.msra.mxu0 0
        %1330 = vmatprep.subr.bf16.mxu0 0
        %1331 = vmatpush1.bf16.xpose.msra.mxu0 0
        %1332 = vmatprep.subr.bf16.mxu0 0
        %1333 = vmatpush1.bf16.xpose.msra.mxu0 0
        %1334 = vmatprep.subr.bf16.mxu0 0
        %1335 = vmatpush1.bf16.xpose.msra.mxu0 0
        %1336 = vmatprep.subr.bf16.mxu0 0
        %1337 = vmatpush1.bf16.xpose.msra.mxu0 0
        %1338 = vmatprep.subr.bf16.mxu0 0
        %1339 = vmatpush1.bf16.xpose.msra.mxu0 0
        %1340 = vmatprep.subr.bf16.mxu0 0
        %1341 = vmatpush1.bf16.xpose.msra.mxu0 0
        %1342 = vmatprep.subr.bf16.mxu0 0
        %1343 = vmatpush1.bf16.xpose.msra.mxu0 0
        %1344 = vmatprep.subr.bf16.mxu0 0
        %1345 = vmatpush1.bf16.xpose.msra.mxu0 0
        %1346 = vmatprep.subr.bf16.mxu0 0
        %1347 = vmatpush1.bf16.xpose.msra.mxu0 0
        %1348 = vmatprep.subr.bf16.mxu0 0
        %1349 = vmatpush1.bf16.xpose.msra.mxu0 0
        %1350 = vmatprep.mubr.bf16.mxu0 0
        %1351 = vmatmul.mubr.bf16.gmra.mrb[0].mxu0 %v1316
        %v1352 = vpop.f32.mrb[0].mxu0
        %v1353 = vadd.f32 0.0, %v1352
        %v1354 = vpop.f32.mrb[0].mxu0
        %v1355 = vpop.f32.mrb[0].mxu0
        %v1356 = vpop.f32.mrb[0].mxu0
        %1357 = vdwg.mxu0
        %v1358 = vsel %vm1240, %v1353, -inf
        %1359 = vmax.xlane.f32.xlu0 %v1358
        %v1360 = vpop.xlane.xlu0 %1359
        %v1361 = vsub.f32 %v1353, %v1360
        %v1362 = vmul.f32 %v1361, 1.442695
        %v1363 = vpow.pop %v1362
        %v1364 = vsel %vm1240, %v1363, 0.0
        %1365 = vadd.xlane.f32.xlu0 %v1364
        %v1366 = vpop.xlane.xlu0 %1365
        %v1367 = vpack.c.bf16 %v1363, %v1363
        %1368 = vrot.lane.b32.xlu0 %v1258, 60
        %v1369 = vpop.permute.xlu0 %1368
        %v1371 = vsel %vm1193, %v1367, 0
        %v1374 = vsel %vm1264, %v1369, 0
        %1376 = vmatprep.subr.bf16.mxu0 0
        %1377 = vmatpush1.bf16.msra.mxu0 %v1374
        %1378 = vmatprep.subr.bf16.mxu0 0
        %1379 = vmatpush1.bf16.msra.mxu0 0
        %1380 = vmatprep.subr.bf16.mxu0 0
        %1381 = vmatpush1.bf16.msra.mxu0 0
        %1382 = vmatprep.subr.bf16.mxu0 0
        %1383 = vmatpush1.bf16.msra.mxu0 0
        %1384 = vmatprep.subr.bf16.mxu0 0
        %1385 = vmatpush1.bf16.msra.mxu0 0
        %1386 = vmatprep.subr.bf16.mxu0 0
        %1387 = vmatpush1.bf16.msra.mxu0 0
        %1388 = vmatprep.subr.bf16.mxu0 0
        %1389 = vmatpush1.bf16.msra.mxu0 0
        %1390 = vmatprep.subr.bf16.mxu0 0
        %1391 = vmatpush1.bf16.msra.mxu0 0
        %1392 = vmatprep.subr.bf16.mxu0 0
        %1393 = vmatpush1.bf16.msra.mxu0 0
        %1394 = vmatprep.subr.bf16.mxu0 0
        %1395 = vmatpush1.bf16.msra.mxu0 0
        %1396 = vmatprep.subr.bf16.mxu0 0
        %1397 = vmatpush1.bf16.msra.mxu0 0
        %1398 = vmatprep.subr.bf16.mxu0 0
        %1399 = vmatpush1.bf16.msra.mxu0 0
        %1400 = vmatprep.subr.bf16.mxu0 0
        %1401 = vmatpush1.bf16.msra.mxu0 0
        %1402 = vmatprep.subr.bf16.mxu0 0
        %1403 = vmatpush1.bf16.msra.mxu0 0
        %1404 = vmatprep.subr.bf16.mxu0 0
        %1405 = vmatpush1.bf16.msra.mxu0 0
        %1406 = vmatprep.subr.bf16.mxu0 0
        %1407 = vmatpush1.bf16.msra.mxu0 0
        %1408 = vmatprep.mubr.bf16.mxu0 0
        %1409 = vmatmul.mubr.bf16.gmra.mrb[0].mxu0 %v1371
        %v1410 = vpop.f32.mrb[0].mxu0
        %v1411 = vadd.f32 0.0, %v1410
        %v1412 = vpop.f32.mrb[0].mxu0
        %v1413 = vpop.f32.mrb[0].mxu0
        %v1414 = vpop.f32.mrb[0].mxu0
        %1415 = vdwg.mxu0
        %v1416 = vrcp.pop %v1366
        %v1417 = vmul.f32 %v1411, %v1416
        %v1418 = vpack.c.bf16 %v1417, %v1417
        %v1421 = vunpack.c.l.s4 1983009808
        %v1422 = vunpack.c.0.s8 %v1421
        %v1423 = vlaneseq
        %v1424 = vshrl.u32 %v1423, 7
        %v1425 = vsub.s32 %v1422, %v1424
        %v1426 = vrot.slane %v1418, %v1425
        %1427 = vrot.lane.b32.xlu0 %v1426, 4
        %v1428 = vpop.permute.xlu0 %1427
        %vm1430 = vcmask 58400
        %1431 = vst.msk [vmem:[%s189] sm:$0x3] %vm1430, %v1428
        %1432 = vrot.lane.b32.xlu0 %v1258, 120
        %v1433 = vpop.permute.xlu0 %1432
        %v1435 = vsel %vm1193, %v1433, 0
        %1437 = vmatprep.subr.bf16.mxu0 0
        %1438 = vmatpush1.bf16.xpose.msra.mxu0 %v1198
        %1439 = vmatprep.subr.bf16.mxu0 0
        %1440 = vmatpush1.bf16.xpose.msra.mxu0 0
        %1441 = vmatprep.subr.bf16.mxu0 0
        %1442 = vmatpush1.bf16.xpose.msra.mxu0 0
        %1443 = vmatprep.subr.bf16.mxu0 0
        %1444 = vmatpush1.bf16.xpose.msra.mxu0 0
        %1445 = vmatprep.subr.bf16.mxu0 0
        %1446 = vmatpush1.bf16.xpose.msra.mxu0 0
        %1447 = vmatprep.subr.bf16.mxu0 0
        %1448 = vmatpush1.bf16.xpose.msra.mxu0 0
        %1449 = vmatprep.subr.bf16.mxu0 0
        %1450 = vmatpush1.bf16.xpose.msra.mxu0 0
        %1451 = vmatprep.subr.bf16.mxu0 0
        %1452 = vmatpush1.bf16.xpose.msra.mxu0 0
        %1453 = vmatprep.subr.bf16.mxu0 0
        %1454 = vmatpush1.bf16.xpose.msra.mxu0 0
        %1455 = vmatprep.subr.bf16.mxu0 0
        %1456 = vmatpush1.bf16.xpose.msra.mxu0 0
        %1457 = vmatprep.subr.bf16.mxu0 0
        %1458 = vmatpush1.bf16.xpose.msra.mxu0 0
        %1459 = vmatprep.subr.bf16.mxu0 0
        %1460 = vmatpush1.bf16.xpose.msra.mxu0 0
        %1461 = vmatprep.subr.bf16.mxu0 0
        %1462 = vmatpush1.bf16.xpose.msra.mxu0 0
        %1463 = vmatprep.subr.bf16.mxu0 0
        %1464 = vmatpush1.bf16.xpose.msra.mxu0 0
        %1465 = vmatprep.subr.bf16.mxu0 0
        %1466 = vmatpush1.bf16.xpose.msra.mxu0 0
        %1467 = vmatprep.subr.bf16.mxu0 0
        %1468 = vmatpush1.bf16.xpose.msra.mxu0 0
        %1469 = vmatprep.mubr.bf16.mxu0 0
        %1470 = vmatmul.mubr.bf16.gmra.mrb[0].mxu0 %v1435
        %v1471 = vpop.f32.mrb[0].mxu0
        %v1472 = vadd.f32 0.0, %v1471
        %v1473 = vpop.f32.mrb[0].mxu0
        %v1474 = vpop.f32.mrb[0].mxu0
        %v1475 = vpop.f32.mrb[0].mxu0
        %1476 = vdwg.mxu0
        %v1477 = vsel %vm1240, %v1472, -inf
        %1478 = vmax.xlane.f32.xlu0 %v1477
        %v1479 = vpop.xlane.xlu0 %1478
        %v1480 = vsub.f32 %v1472, %v1479
        %v1481 = vmul.f32 %v1480, 1.442695
        %v1482 = vpow.pop %v1481
        %v1483 = vsel %vm1240, %v1482, 0.0
        %1484 = vadd.xlane.f32.xlu0 %v1483
        %v1485 = vpop.xlane.xlu0 %1484
        %v1486 = vpack.c.bf16 %v1482, %v1482
        %1487 = vrot.lane.b32.xlu0 %v1258, 56
        %v1488 = vpop.permute.xlu0 %1487
        %v1490 = vsel %vm1193, %v1486, 0
        %v1493 = vsel %vm1264, %v1488, 0
        %1495 = vmatprep.subr.bf16.mxu0 0
        %1496 = vmatpush1.bf16.msra.mxu0 %v1493
        %1497 = vmatprep.subr.bf16.mxu0 0
        %1498 = vmatpush1.bf16.msra.mxu0 0
        %1499 = vmatprep.subr.bf16.mxu0 0
        %1500 = vmatpush1.bf16.msra.mxu0 0
        %1501 = vmatprep.subr.bf16.mxu0 0
        %1502 = vmatpush1.bf16.msra.mxu0 0
        %1503 = vmatprep.subr.bf16.mxu0 0
        %1504 = vmatpush1.bf16.msra.mxu0 0
        %1505 = vmatprep.subr.bf16.mxu0 0
        %1506 = vmatpush1.bf16.msra.mxu0 0
        %1507 = vmatprep.subr.bf16.mxu0 0
        %1508 = vmatpush1.bf16.msra.mxu0 0
        %1509 = vmatprep.subr.bf16.mxu0 0
        %1510 = vmatpush1.bf16.msra.mxu0 0
        %1511 = vmatprep.subr.bf16.mxu0 0
        %1512 = vmatpush1.bf16.msra.mxu0 0
        %1513 = vmatprep.subr.bf16.mxu0 0
        %1514 = vmatpush1.bf16.msra.mxu0 0
        %1515 = vmatprep.subr.bf16.mxu0 0
        %1516 = vmatpush1.bf16.msra.mxu0 0
        %1517 = vmatprep.subr.bf16.mxu0 0
        %1518 = vmatpush1.bf16.msra.mxu0 0
        %1519 = vmatprep.subr.bf16.mxu0 0
        %1520 = vmatpush1.bf16.msra.mxu0 0
        %1521 = vmatprep.subr.bf16.mxu0 0
        %1522 = vmatpush1.bf16.msra.mxu0 0
        %1523 = vmatprep.subr.bf16.mxu0 0
        %1524 = vmatpush1.bf16.msra.mxu0 0
        %1525 = vmatprep.subr.bf16.mxu0 0
        %1526 = vmatpush1.bf16.msra.mxu0 0
        %1527 = vmatprep.mubr.bf16.mxu0 0
        %1528 = vmatmul.mubr.bf16.gmra.mrb[0].mxu0 %v1490
        %v1529 = vpop.f32.mrb[0].mxu0
        %v1530 = vadd.f32 0.0, %v1529
        %v1531 = vpop.f32.mrb[0].mxu0
        %v1532 = vpop.f32.mrb[0].mxu0
        %v1533 = vpop.f32.mrb[0].mxu0
        %1534 = vdwg.mxu0
        %v1535 = vrcp.pop %v1485
        %v1536 = vmul.f32 %v1530, %v1535
        %v1537 = vpack.c.bf16 %v1536, %v1536
        %v1540 = vunpack.c.l.s4 1983009808
        %v1541 = vunpack.c.0.s8 %v1540
        %v1542 = vlaneseq
        %v1543 = vshrl.u32 %v1542, 7
        %v1544 = vsub.s32 %v1541, %v1543
        %v1545 = vrot.slane %v1537, %v1544
        %1546 = vrot.lane.b32.xlu0 %v1545, 8
        %v1547 = vpop.permute.xlu0 %1546
        %vm1549 = vcmask 91200
        %1550 = vst.msk [vmem:[%s189] sm:$0x3] %vm1549, %v1547
        %1551 = vrot.lane.b32.xlu0 %v1258, 116
        %v1552 = vpop.permute.xlu0 %1551
        %v1554 = vsel %vm1193, %v1552, 0
        %1556 = vmatprep.subr.bf16.mxu0 0
        %1557 = vmatpush1.bf16.xpose.msra.mxu0 %v1198
        %1558 = vmatprep.subr.bf16.mxu0 0
        %1559 = vmatpush1.bf16.xpose.msra.mxu0 0
        %1560 = vmatprep.subr.bf16.mxu0 0
        %1561 = vmatpush1.bf16.xpose.msra.mxu0 0
        %1562 = vmatprep.subr.bf16.mxu0 0
        %1563 = vmatpush1.bf16.xpose.msra.mxu0 0
        %1564 = vmatprep.subr.bf16.mxu0 0
        %1565 = vmatpush1.bf16.xpose.msra.mxu0 0
        %1566 = vmatprep.subr.bf16.mxu0 0
        %1567 = vmatpush1.bf16.xpose.msra.mxu0 0
        %1568 = vmatprep.subr.bf16.mxu0 0
        %1569 = vmatpush1.bf16.xpose.msra.mxu0 0
        %1570 = vmatprep.subr.bf16.mxu0 0
        %1571 = vmatpush1.bf16.xpose.msra.mxu0 0
        %1572 = vmatprep.subr.bf16.mxu0 0
        %1573 = vmatpush1.bf16.xpose.msra.mxu0 0
        %1574 = vmatprep.subr.bf16.mxu0 0
        %1575 = vmatpush1.bf16.xpose.msra.mxu0 0
        %1576 = vmatprep.subr.bf16.mxu0 0
        %1577 = vmatpush1.bf16.xpose.msra.mxu0 0
        %1578 = vmatprep.subr.bf16.mxu0 0
        %1579 = vmatpush1.bf16.xpose.msra.mxu0 0
        %1580 = vmatprep.subr.bf16.mxu0 0
        %1581 = vmatpush1.bf16.xpose.msra.mxu0 0
        %1582 = vmatprep.subr.bf16.mxu0 0
        %1583 = vmatpush1.bf16.xpose.msra.mxu0 0
        %1584 = vmatprep.subr.bf16.mxu0 0
        %1585 = vmatpush1.bf16.xpose.msra.mxu0 0
        %1586 = vmatprep.subr.bf16.mxu0 0
        %1587 = vmatpush1.bf16.xpose.msra.mxu0 0
        %1588 = vmatprep.mubr.bf16.mxu0 0
        %1589 = vmatmul.mubr.bf16.gmra.mrb[0].mxu0 %v1554
        %v1590 = vpop.f32.mrb[0].mxu0
        %v1591 = vadd.f32 0.0, %v1590
        %v1592 = vpop.f32.mrb[0].mxu0
        %v1593 = vpop.f32.mrb[0].mxu0
        %v1594 = vpop.f32.mrb[0].mxu0
        %1595 = vdwg.mxu0
        %v1596 = vsel %vm1240, %v1591, -inf
        %1597 = vmax.xlane.f32.xlu0 %v1596
        %v1598 = vpop.xlane.xlu0 %1597
        %v1599 = vsub.f32 %v1591, %v1598
        %v1600 = vmul.f32 %v1599, 1.442695
        %v1601 = vpow.pop %v1600
        %v1602 = vsel %vm1240, %v1601, 0.0
        %1603 = vadd.xlane.f32.xlu0 %v1602
        %v1604 = vpop.xlane.xlu0 %1603
        %v1605 = vpack.c.bf16 %v1601, %v1601
        %1606 = vrot.lane.b32.xlu0 %v1258, 52
        %v1607 = vpop.permute.xlu0 %1606
        %v1609 = vsel %vm1193, %v1605, 0
        %v1612 = vsel %vm1264, %v1607, 0
        %1614 = vmatprep.subr.bf16.mxu0 0
        %1615 = vmatpush1.bf16.msra.mxu0 %v1612
        %1616 = vmatprep.subr.bf16.mxu0 0
        %1617 = vmatpush1.bf16.msra.mxu0 0
        %1618 = vmatprep.subr.bf16.mxu0 0
        %1619 = vmatpush1.bf16.msra.mxu0 0
        %1620 = vmatprep.subr.bf16.mxu0 0
        %1621 = vmatpush1.bf16.msra.mxu0 0
        %1622 = vmatprep.subr.bf16.mxu0 0
        %1623 = vmatpush1.bf16.msra.mxu0 0
        %1624 = vmatprep.subr.bf16.mxu0 0
        %1625 = vmatpush1.bf16.msra.mxu0 0
        %1626 = vmatprep.subr.bf16.mxu0 0
        %1627 = vmatpush1.bf16.msra.mxu0 0
        %1628 = vmatprep.subr.bf16.mxu0 0
        %1629 = vmatpush1.bf16.msra.mxu0 0
        %1630 = vmatprep.subr.bf16.mxu0 0
        %1631 = vmatpush1.bf16.msra.mxu0 0
        %1632 = vmatprep.subr.bf16.mxu0 0
        %1633 = vmatpush1.bf16.msra.mxu0 0
        %1634 = vmatprep.subr.bf16.mxu0 0
        %1635 = vmatpush1.bf16.msra.mxu0 0
        %1636 = vmatprep.subr.bf16.mxu0 0
        %1637 = vmatpush1.bf16.msra.mxu0 0
        %1638 = vmatprep.subr.bf16.mxu0 0
        %1639 = vmatpush1.bf16.msra.mxu0 0
        %1640 = vmatprep.subr.bf16.mxu0 0
        %1641 = vmatpush1.bf16.msra.mxu0 0
        %1642 = vmatprep.subr.bf16.mxu0 0
        %1643 = vmatpush1.bf16.msra.mxu0 0
        %1644 = vmatprep.subr.bf16.mxu0 0
        %1645 = vmatpush1.bf16.msra.mxu0 0
        %1646 = vmatprep.mubr.bf16.mxu0 0
        %1647 = vmatmul.mubr.bf16.gmra.mrb[0].mxu0 %v1609
        %v1648 = vpop.f32.mrb[0].mxu0
        %v1649 = vadd.f32 0.0, %v1648
        %v1650 = vpop.f32.mrb[0].mxu0
        %v1651 = vpop.f32.mrb[0].mxu0
        %v1652 = vpop.f32.mrb[0].mxu0
        %1653 = vdwg.mxu0
        %v1654 = vrcp.pop %v1604
        %v1655 = vmul.f32 %v1649, %v1654
        %v1656 = vpack.c.bf16 %v1655, %v1655
        %v1659 = vunpack.c.l.s4 1983009808
        %v1660 = vunpack.c.0.s8 %v1659
        %v1661 = vlaneseq
        %v1662 = vshrl.u32 %v1661, 7
        %v1663 = vsub.s32 %v1660, %v1662
        %v1664 = vrot.slane %v1656, %v1663
        %1665 = vrot.lane.b32.xlu0 %v1664, 12
        %v1666 = vpop.permute.xlu0 %1665
        %vm1668 = vcmask 124000
        %1669 = vst.msk [vmem:[%s189] sm:$0x3] %vm1668, %v1666
        %1670 = vrot.lane.b32.xlu0 %v1258, 112
        %v1671 = vpop.permute.xlu0 %1670
        %v1673 = vsel %vm1193, %v1671, 0
        %1675 = vmatprep.subr.bf16.mxu0 0
        %1676 = vmatpush1.bf16.xpose.msra.mxu0 %v1198
        %1677 = vmatprep.subr.bf16.mxu0 0
        %1678 = vmatpush1.bf16.xpose.msra.mxu0 0
        %1679 = vmatprep.subr.bf16.mxu0 0
        %1680 = vmatpush1.bf16.xpose.msra.mxu0 0
        %1681 = vmatprep.subr.bf16.mxu0 0
        %1682 = vmatpush1.bf16.xpose.msra.mxu0 0
        %1683 = vmatprep.subr.bf16.mxu0 0
        %1684 = vmatpush1.bf16.xpose.msra.mxu0 0
        %1685 = vmatprep.subr.bf16.mxu0 0
        %1686 = vmatpush1.bf16.xpose.msra.mxu0 0
        %1687 = vmatprep.subr.bf16.mxu0 0
        %1688 = vmatpush1.bf16.xpose.msra.mxu0 0
        %1689 = vmatprep.subr.bf16.mxu0 0
        %1690 = vmatpush1.bf16.xpose.msra.mxu0 0
        %1691 = vmatprep.subr.bf16.mxu0 0
        %1692 = vmatpush1.bf16.xpose.msra.mxu0 0
        %1693 = vmatprep.subr.bf16.mxu0 0
        %1694 = vmatpush1.bf16.xpose.msra.mxu0 0
        %1695 = vmatprep.subr.bf16.mxu0 0
        %1696 = vmatpush1.bf16.xpose.msra.mxu0 0
        %1697 = vmatprep.subr.bf16.mxu0 0
        %1698 = vmatpush1.bf16.xpose.msra.mxu0 0
        %1699 = vmatprep.subr.bf16.mxu0 0
        %1700 = vmatpush1.bf16.xpose.msra.mxu0 0
        %1701 = vmatprep.subr.bf16.mxu0 0
        %1702 = vmatpush1.bf16.xpose.msra.mxu0 0
        %1703 = vmatprep.subr.bf16.mxu0 0
        %1704 = vmatpush1.bf16.xpose.msra.mxu0 0
        %1705 = vmatprep.subr.bf16.mxu0 0
        %1706 = vmatpush1.bf16.xpose.msra.mxu0 0
        %1707 = vmatprep.mubr.bf16.mxu0 0
        %1708 = vmatmul.mubr.bf16.gmra.mrb[0].mxu0 %v1673
        %v1709 = vpop.f32.mrb[0].mxu0
        %v1710 = vadd.f32 0.0, %v1709
        %v1711 = vpop.f32.mrb[0].mxu0
        %v1712 = vpop.f32.mrb[0].mxu0
        %v1713 = vpop.f32.mrb[0].mxu0
        %1714 = vdwg.mxu0
        %v1715 = vsel %vm1240, %v1710, -inf
        %1716 = vmax.xlane.f32.xlu0 %v1715
        %v1717 = vpop.xlane.xlu0 %1716
        %v1718 = vsub.f32 %v1710, %v1717
        %v1719 = vmul.f32 %v1718, 1.442695
        %v1720 = vpow.pop %v1719
        %v1721 = vsel %vm1240, %v1720, 0.0
        %1722 = vadd.xlane.f32.xlu0 %v1721
        %v1723 = vpop.xlane.xlu0 %1722
        %v1724 = vpack.c.bf16 %v1720, %v1720
        %1725 = vrot.lane.b32.xlu0 %v1258, 48
        %v1726 = vpop.permute.xlu0 %1725
        %v1728 = vsel %vm1193, %v1724, 0
        %v1731 = vsel %vm1264, %v1726, 0
        %1733 = vmatprep.subr.bf16.mxu0 0
        %1734 = vmatpush1.bf16.msra.mxu0 %v1731
        %1735 = vmatprep.subr.bf16.mxu0 0
        %1736 = vmatpush1.bf16.msra.mxu0 0
        %1737 = vmatprep.subr.bf16.mxu0 0
        %1738 = vmatpush1.bf16.msra.mxu0 0
        %1739 = vmatprep.subr.bf16.mxu0 0
        %1740 = vmatpush1.bf16.msra.mxu0 0
        %1741 = vmatprep.subr.bf16.mxu0 0
        %1742 = vmatpush1.bf16.msra.mxu0 0
        %1743 = vmatprep.subr.bf16.mxu0 0
        %1744 = vmatpush1.bf16.msra.mxu0 0
        %1745 = vmatprep.subr.bf16.mxu0 0
        %1746 = vmatpush1.bf16.msra.mxu0 0
        %1747 = vmatprep.subr.bf16.mxu0 0
        %1748 = vmatpush1.bf16.msra.mxu0 0
        %1749 = vmatprep.subr.bf16.mxu0 0
        %1750 = vmatpush1.bf16.msra.mxu0 0
        %1751 = vmatprep.subr.bf16.mxu0 0
        %1752 = vmatpush1.bf16.msra.mxu0 0
        %1753 = vmatprep.subr.bf16.mxu0 0
        %1754 = vmatpush1.bf16.msra.mxu0 0
        %1755 = vmatprep.subr.bf16.mxu0 0
        %1756 = vmatpush1.bf16.msra.mxu0 0
        %1757 = vmatprep.subr.bf16.mxu0 0
        %1758 = vmatpush1.bf16.msra.mxu0 0
        %1759 = vmatprep.subr.bf16.mxu0 0
        %1760 = vmatpush1.bf16.msra.mxu0 0
        %1761 = vmatprep.subr.bf16.mxu0 0
        %1762 = vmatpush1.bf16.msra.mxu0 0
        %1763 = vmatprep.subr.bf16.mxu0 0
        %1764 = vmatpush1.bf16.msra.mxu0 0
        %1765 = vmatprep.mubr.bf16.mxu0 0
        %1766 = vmatmul.mubr.bf16.gmra.mrb[0].mxu0 %v1728
        %v1767 = vpop.f32.mrb[0].mxu0
        %v1768 = vadd.f32 0.0, %v1767
        %v1769 = vpop.f32.mrb[0].mxu0
        %v1770 = vpop.f32.mrb[0].mxu0
        %v1771 = vpop.f32.mrb[0].mxu0
        %1772 = vdwg.mxu0
        %v1773 = vrcp.pop %v1723
        %v1774 = vmul.f32 %v1768, %v1773
        %v1775 = vpack.c.bf16 %v1774, %v1774
        %v1778 = vunpack.c.l.s4 1983009808
        %v1779 = vunpack.c.0.s8 %v1778
        %v1780 = vlaneseq
        %v1781 = vshrl.u32 %v1780, 7
        %v1782 = vsub.s32 %v1779, %v1781
        %v1783 = vrot.slane %v1775, %v1782
        %1784 = vrot.lane.b32.xlu0 %v1783, 16
        %v1785 = vpop.permute.xlu0 %1784
        %vm1787 = vcmask 156800
        %1788 = vst.msk [vmem:[%s189] sm:$0x3] %vm1787, %v1785
        %1789 = vrot.lane.b32.xlu0 %v1258, 108
        %v1790 = vpop.permute.xlu0 %1789
        %v1792 = vsel %vm1193, %v1790, 0
        %1794 = vmatprep.subr.bf16.mxu0 0
        %1795 = vmatpush1.bf16.xpose.msra.mxu0 %v1198
        %1796 = vmatprep.subr.bf16.mxu0 0
        %1797 = vmatpush1.bf16.xpose.msra.mxu0 0
        %1798 = vmatprep.subr.bf16.mxu0 0
        %1799 = vmatpush1.bf16.xpose.msra.mxu0 0
        %1800 = vmatprep.subr.bf16.mxu0 0
        %1801 = vmatpush1.bf16.xpose.msra.mxu0 0
        %1802 = vmatprep.subr.bf16.mxu0 0
        %1803 = vmatpush1.bf16.xpose.msra.mxu0 0
        %1804 = vmatprep.subr.bf16.mxu0 0
        %1805 = vmatpush1.bf16.xpose.msra.mxu0 0
        %1806 = vmatprep.subr.bf16.mxu0 0
        %1807 = vmatpush1.bf16.xpose.msra.mxu0 0
        %1808 = vmatprep.subr.bf16.mxu0 0
        %1809 = vmatpush1.bf16.xpose.msra.mxu0 0
        %1810 = vmatprep.subr.bf16.mxu0 0
        %1811 = vmatpush1.bf16.xpose.msra.mxu0 0
        %1812 = vmatprep.subr.bf16.mxu0 0
        %1813 = vmatpush1.bf16.xpose.msra.mxu0 0
        %1814 = vmatprep.subr.bf16.mxu0 0
        %1815 = vmatpush1.bf16.xpose.msra.mxu0 0
        %1816 = vmatprep.subr.bf16.mxu0 0
        %1817 = vmatpush1.bf16.xpose.msra.mxu0 0
        %1818 = vmatprep.subr.bf16.mxu0 0
        %1819 = vmatpush1.bf16.xpose.msra.mxu0 0
        %1820 = vmatprep.subr.bf16.mxu0 0
        %1821 = vmatpush1.bf16.xpose.msra.mxu0 0
        %1822 = vmatprep.subr.bf16.mxu0 0
        %1823 = vmatpush1.bf16.xpose.msra.mxu0 0
        %1824 = vmatprep.subr.bf16.mxu0 0
        %1825 = vmatpush1.bf16.xpose.msra.mxu0 0
        %1826 = vmatprep.mubr.bf16.mxu0 0
        %1827 = vmatmul.mubr.bf16.gmra.mrb[0].mxu0 %v1792
        %v1828 = vpop.f32.mrb[0].mxu0
        %v1829 = vadd.f32 0.0, %v1828
        %v1830 = vpop.f32.mrb[0].mxu0
        %v1831 = vpop.f32.mrb[0].mxu0
        %v1832 = vpop.f32.mrb[0].mxu0
        %1833 = vdwg.mxu0
        %v1834 = vsel %vm1240, %v1829, -inf
        %1835 = vmax.xlane.f32.xlu0 %v1834
        %v1836 = vpop.xlane.xlu0 %1835
        %v1837 = vsub.f32 %v1829, %v1836
        %v1838 = vmul.f32 %v1837, 1.442695
        %v1839 = vpow.pop %v1838
        %v1840 = vsel %vm1240, %v1839, 0.0
        %1841 = vadd.xlane.f32.xlu0 %v1840
        %v1842 = vpop.xlane.xlu0 %1841
        %v1843 = vpack.c.bf16 %v1839, %v1839
        %1844 = vrot.lane.b32.xlu0 %v1258, 44
        %v1845 = vpop.permute.xlu0 %1844
        %v1847 = vsel %vm1193, %v1843, 0
        %v1850 = vsel %vm1264, %v1845, 0
        %1852 = vmatprep.subr.bf16.mxu0 0
        %1853 = vmatpush1.bf16.msra.mxu0 %v1850
        %1854 = vmatprep.subr.bf16.mxu0 0
        %1855 = vmatpush1.bf16.msra.mxu0 0
        %1856 = vmatprep.subr.bf16.mxu0 0
        %1857 = vmatpush1.bf16.msra.mxu0 0
        %1858 = vmatprep.subr.bf16.mxu0 0
        %1859 = vmatpush1.bf16.msra.mxu0 0
        %1860 = vmatprep.subr.bf16.mxu0 0
        %1861 = vmatpush1.bf16.msra.mxu0 0
        %1862 = vmatprep.subr.bf16.mxu0 0
        %1863 = vmatpush1.bf16.msra.mxu0 0
        %1864 = vmatprep.subr.bf16.mxu0 0
        %1865 = vmatpush1.bf16.msra.mxu0 0
        %1866 = vmatprep.subr.bf16.mxu0 0
        %1867 = vmatpush1.bf16.msra.mxu0 0
        %1868 = vmatprep.subr.bf16.mxu0 0
        %1869 = vmatpush1.bf16.msra.mxu0 0
        %1870 = vmatprep.subr.bf16.mxu0 0
        %1871 = vmatpush1.bf16.msra.mxu0 0
        %1872 = vmatprep.subr.bf16.mxu0 0
        %1873 = vmatpush1.bf16.msra.mxu0 0
        %1874 = vmatprep.subr.bf16.mxu0 0
        %1875 = vmatpush1.bf16.msra.mxu0 0
        %1876 = vmatprep.subr.bf16.mxu0 0
        %1877 = vmatpush1.bf16.msra.mxu0 0
        %1878 = vmatprep.subr.bf16.mxu0 0
        %1879 = vmatpush1.bf16.msra.mxu0 0
        %1880 = vmatprep.subr.bf16.mxu0 0
        %1881 = vmatpush1.bf16.msra.mxu0 0
        %1882 = vmatprep.subr.bf16.mxu0 0
        %1883 = vmatpush1.bf16.msra.mxu0 0
        %1884 = vmatprep.mubr.bf16.mxu0 0
        %1885 = vmatmul.mubr.bf16.gmra.mrb[0].mxu0 %v1847
        %v1886 = vpop.f32.mrb[0].mxu0
        %v1887 = vadd.f32 0.0, %v1886
        %v1888 = vpop.f32.mrb[0].mxu0
        %v1889 = vpop.f32.mrb[0].mxu0
        %v1890 = vpop.f32.mrb[0].mxu0
        %1891 = vdwg.mxu0
        %v1892 = vrcp.pop %v1842
        %v1893 = vmul.f32 %v1887, %v1892
        %v1894 = vpack.c.bf16 %v1893, %v1893
        %v1897 = vunpack.c.l.s4 1983009808
        %v1898 = vunpack.c.0.s8 %v1897
        %v1899 = vlaneseq
        %v1900 = vshrl.u32 %v1899, 7
        %v1901 = vsub.s32 %v1898, %v1900
        %v1902 = vrot.slane %v1894, %v1901
        %1903 = vrot.lane.b32.xlu0 %v1902, 20
        %v1904 = vpop.permute.xlu0 %1903
        %vm1906 = vcmask 189600
        %1907 = vst.msk [vmem:[%s189] sm:$0x3] %vm1906, %v1904
        %1908 = vrot.lane.b32.xlu0 %v1258, 104
        %v1909 = vpop.permute.xlu0 %1908
        %v1911 = vsel %vm1193, %v1909, 0
        %1913 = vmatprep.subr.bf16.mxu0 0
        %1914 = vmatpush1.bf16.xpose.msra.mxu0 %v1198
        %1915 = vmatprep.subr.bf16.mxu0 0
        %1916 = vmatpush1.bf16.xpose.msra.mxu0 0
        %1917 = vmatprep.subr.bf16.mxu0 0
        %1918 = vmatpush1.bf16.xpose.msra.mxu0 0
        %1919 = vmatprep.subr.bf16.mxu0 0
        %1920 = vmatpush1.bf16.xpose.msra.mxu0 0
        %1921 = vmatprep.subr.bf16.mxu0 0
        %1922 = vmatpush1.bf16.xpose.msra.mxu0 0
        %1923 = vmatprep.subr.bf16.mxu0 0
        %1924 = vmatpush1.bf16.xpose.msra.mxu0 0
        %1925 = vmatprep.subr.bf16.mxu0 0
        %1926 = vmatpush1.bf16.xpose.msra.mxu0 0
        %1927 = vmatprep.subr.bf16.mxu0 0
        %1928 = vmatpush1.bf16.xpose.msra.mxu0 0
        %1929 = vmatprep.subr.bf16.mxu0 0
        %1930 = vmatpush1.bf16.xpose.msra.mxu0 0
        %1931 = vmatprep.subr.bf16.mxu0 0
        %1932 = vmatpush1.bf16.xpose.msra.mxu0 0
        %1933 = vmatprep.subr.bf16.mxu0 0
        %1934 = vmatpush1.bf16.xpose.msra.mxu0 0
        %1935 = vmatprep.subr.bf16.mxu0 0
        %1936 = vmatpush1.bf16.xpose.msra.mxu0 0
        %1937 = vmatprep.subr.bf16.mxu0 0
        %1938 = vmatpush1.bf16.xpose.msra.mxu0 0
        %1939 = vmatprep.subr.bf16.mxu0 0
        %1940 = vmatpush1.bf16.xpose.msra.mxu0 0
        %1941 = vmatprep.subr.bf16.mxu0 0
        %1942 = vmatpush1.bf16.xpose.msra.mxu0 0
        %1943 = vmatprep.subr.bf16.mxu0 0
        %1944 = vmatpush1.bf16.xpose.msra.mxu0 0
        %1945 = vmatprep.mubr.bf16.mxu0 0
        %1946 = vmatmul.mubr.bf16.gmra.mrb[0].mxu0 %v1911
        %v1947 = vpop.f32.mrb[0].mxu0
        %v1948 = vadd.f32 0.0, %v1947
        %v1949 = vpop.f32.mrb[0].mxu0
        %v1950 = vpop.f32.mrb[0].mxu0
        %v1951 = vpop.f32.mrb[0].mxu0
        %1952 = vdwg.mxu0
        %v1953 = vsel %vm1240, %v1948, -inf
        %1954 = vmax.xlane.f32.xlu0 %v1953
        %v1955 = vpop.xlane.xlu0 %1954
        %v1956 = vsub.f32 %v1948, %v1955
        %v1957 = vmul.f32 %v1956, 1.442695
        %v1958 = vpow.pop %v1957
        %v1959 = vsel %vm1240, %v1958, 0.0
        %1960 = vadd.xlane.f32.xlu0 %v1959
        %v1961 = vpop.xlane.xlu0 %1960
        %v1962 = vpack.c.bf16 %v1958, %v1958
        %1963 = vrot.lane.b32.xlu0 %v1258, 40
        %v1964 = vpop.permute.xlu0 %1963
        %v1966 = vsel %vm1193, %v1962, 0
        %v1969 = vsel %vm1264, %v1964, 0
        %1971 = vmatprep.subr.bf16.mxu0 0
        %1972 = vmatpush1.bf16.msra.mxu0 %v1969
        %1973 = vmatprep.subr.bf16.mxu0 0
        %1974 = vmatpush1.bf16.msra.mxu0 0
        %1975 = vmatprep.subr.bf16.mxu0 0
        %1976 = vmatpush1.bf16.msra.mxu0 0
        %1977 = vmatprep.subr.bf16.mxu0 0
        %1978 = vmatpush1.bf16.msra.mxu0 0
        %1979 = vmatprep.subr.bf16.mxu0 0
        %1980 = vmatpush1.bf16.msra.mxu0 0
        %1981 = vmatprep.subr.bf16.mxu0 0
        %1982 = vmatpush1.bf16.msra.mxu0 0
        %1983 = vmatprep.subr.bf16.mxu0 0
        %1984 = vmatpush1.bf16.msra.mxu0 0
        %1985 = vmatprep.subr.bf16.mxu0 0
        %1986 = vmatpush1.bf16.msra.mxu0 0
        %1987 = vmatprep.subr.bf16.mxu0 0
        %1988 = vmatpush1.bf16.msra.mxu0 0
        %1989 = vmatprep.subr.bf16.mxu0 0
        %1990 = vmatpush1.bf16.msra.mxu0 0
        %1991 = vmatprep.subr.bf16.mxu0 0
        %1992 = vmatpush1.bf16.msra.mxu0 0
        %1993 = vmatprep.subr.bf16.mxu0 0
        %1994 = vmatpush1.bf16.msra.mxu0 0
        %1995 = vmatprep.subr.bf16.mxu0 0
        %1996 = vmatpush1.bf16.msra.mxu0 0
        %1997 = vmatprep.subr.bf16.mxu0 0
        %1998 = vmatpush1.bf16.msra.mxu0 0
        %1999 = vmatprep.subr.bf16.mxu0 0
        %2000 = vmatpush1.bf16.msra.mxu0 0
        %2001 = vmatprep.subr.bf16.mxu0 0
        %2002 = vmatpush1.bf16.msra.mxu0 0
        %2003 = vmatprep.mubr.bf16.mxu0 0
        %2004 = vmatmul.mubr.bf16.gmra.mrb[0].mxu0 %v1966
        %v2005 = vpop.f32.mrb[0].mxu0
        %v2006 = vadd.f32 0.0, %v2005
        %v2007 = vpop.f32.mrb[0].mxu0
        %v2008 = vpop.f32.mrb[0].mxu0
        %v2009 = vpop.f32.mrb[0].mxu0
        %2010 = vdwg.mxu0
        %v2011 = vrcp.pop %v1961
        %v2012 = vmul.f32 %v2006, %v2011
        %v2013 = vpack.c.bf16 %v2012, %v2012
        %v2016 = vunpack.c.l.s4 1983009808
        %v2017 = vunpack.c.0.s8 %v2016
        %v2018 = vlaneseq
        %v2019 = vshrl.u32 %v2018, 7
        %v2020 = vsub.s32 %v2017, %v2019
        %v2021 = vrot.slane %v2013, %v2020
        %2022 = vrot.lane.b32.xlu0 %v2021, 24
        %v2023 = vpop.permute.xlu0 %2022
        %vm2025 = vcmask 222400
        %2026 = vst.msk [vmem:[%s189] sm:$0x3] %vm2025, %v2023
        %2027 = vrot.lane.b32.xlu0 %v1258, 100
        %v2028 = vpop.permute.xlu0 %2027
        %v2030 = vsel %vm1193, %v2028, 0
        %2032 = vmatprep.subr.bf16.mxu0 0
        %2033 = vmatpush1.bf16.xpose.msra.mxu0 %v1198
        %2034 = vmatprep.subr.bf16.mxu0 0
        %2035 = vmatpush1.bf16.xpose.msra.mxu0 0
        %2036 = vmatprep.subr.bf16.mxu0 0
        %2037 = vmatpush1.bf16.xpose.msra.mxu0 0
        %2038 = vmatprep.subr.bf16.mxu0 0
        %2039 = vmatpush1.bf16.xpose.msra.mxu0 0
        %2040 = vmatprep.subr.bf16.mxu0 0
        %2041 = vmatpush1.bf16.xpose.msra.mxu0 0
        %2042 = vmatprep.subr.bf16.mxu0 0
        %2043 = vmatpush1.bf16.xpose.msra.mxu0 0
        %2044 = vmatprep.subr.bf16.mxu0 0
        %2045 = vmatpush1.bf16.xpose.msra.mxu0 0
        %2046 = vmatprep.subr.bf16.mxu0 0
        %2047 = vmatpush1.bf16.xpose.msra.mxu0 0
        %2048 = vmatprep.subr.bf16.mxu0 0
        %2049 = vmatpush1.bf16.xpose.msra.mxu0 0
        %2050 = vmatprep.subr.bf16.mxu0 0
        %2051 = vmatpush1.bf16.xpose.msra.mxu0 0
        %2052 = vmatprep.subr.bf16.mxu0 0
        %2053 = vmatpush1.bf16.xpose.msra.mxu0 0
        %2054 = vmatprep.subr.bf16.mxu0 0
        %2055 = vmatpush1.bf16.xpose.msra.mxu0 0
        %2056 = vmatprep.subr.bf16.mxu0 0
        %2057 = vmatpush1.bf16.xpose.msra.mxu0 0
        %2058 = vmatprep.subr.bf16.mxu0 0
        %2059 = vmatpush1.bf16.xpose.msra.mxu0 0
        %2060 = vmatprep.subr.bf16.mxu0 0
        %2061 = vmatpush1.bf16.xpose.msra.mxu0 0
        %2062 = vmatprep.subr.bf16.mxu0 0
        %2063 = vmatpush1.bf16.xpose.msra.mxu0 0
        %2064 = vmatprep.mubr.bf16.mxu0 0
        %2065 = vmatmul.mubr.bf16.gmra.mrb[0].mxu0 %v2030
        %v2066 = vpop.f32.mrb[0].mxu0
        %v2067 = vadd.f32 0.0, %v2066
        %v2068 = vpop.f32.mrb[0].mxu0
        %v2069 = vpop.f32.mrb[0].mxu0
        %v2070 = vpop.f32.mrb[0].mxu0
        %2071 = vdwg.mxu0
        %v2072 = vsel %vm1240, %v2067, -inf
        %2073 = vmax.xlane.f32.xlu0 %v2072
        %v2074 = vpop.xlane.xlu0 %2073
        %v2075 = vsub.f32 %v2067, %v2074
        %v2076 = vmul.f32 %v2075, 1.442695
        %v2077 = vpow.pop %v2076
        %v2078 = vsel %vm1240, %v2077, 0.0
        %2079 = vadd.xlane.f32.xlu0 %v2078
        %v2080 = vpop.xlane.xlu0 %2079
        %v2081 = vpack.c.bf16 %v2077, %v2077
        %2082 = vrot.lane.b32.xlu0 %v1258, 36
        %v2083 = vpop.permute.xlu0 %2082
        %v2085 = vsel %vm1193, %v2081, 0
        %v2088 = vsel %vm1264, %v2083, 0
        %2090 = vmatprep.subr.bf16.mxu0 0
        %2091 = vmatpush1.bf16.msra.mxu0 %v2088
        %2092 = vmatprep.subr.bf16.mxu0 0
        %2093 = vmatpush1.bf16.msra.mxu0 0
        %2094 = vmatprep.subr.bf16.mxu0 0
        %2095 = vmatpush1.bf16.msra.mxu0 0
        %2096 = vmatprep.subr.bf16.mxu0 0
        %2097 = vmatpush1.bf16.msra.mxu0 0
        %2098 = vmatprep.subr.bf16.mxu0 0
        %2099 = vmatpush1.bf16.msra.mxu0 0
        %2100 = vmatprep.subr.bf16.mxu0 0
        %2101 = vmatpush1.bf16.msra.mxu0 0
        %2102 = vmatprep.subr.bf16.mxu0 0
        %2103 = vmatpush1.bf16.msra.mxu0 0
        %2104 = vmatprep.subr.bf16.mxu0 0
        %2105 = vmatpush1.bf16.msra.mxu0 0
        %2106 = vmatprep.subr.bf16.mxu0 0
        %2107 = vmatpush1.bf16.msra.mxu0 0
        %2108 = vmatprep.subr.bf16.mxu0 0
        %2109 = vmatpush1.bf16.msra.mxu0 0
        %2110 = vmatprep.subr.bf16.mxu0 0
        %2111 = vmatpush1.bf16.msra.mxu0 0
        %2112 = vmatprep.subr.bf16.mxu0 0
        %2113 = vmatpush1.bf16.msra.mxu0 0
        %2114 = vmatprep.subr.bf16.mxu0 0
        %2115 = vmatpush1.bf16.msra.mxu0 0
        %2116 = vmatprep.subr.bf16.mxu0 0
        %2117 = vmatpush1.bf16.msra.mxu0 0
        %2118 = vmatprep.subr.bf16.mxu0 0
        %2119 = vmatpush1.bf16.msra.mxu0 0
        %2120 = vmatprep.subr.bf16.mxu0 0
        %2121 = vmatpush1.bf16.msra.mxu0 0
        %2122 = vmatprep.mubr.bf16.mxu0 0
        %2123 = vmatmul.mubr.bf16.gmra.mrb[0].mxu0 %v2085
        %v2124 = vpop.f32.mrb[0].mxu0
        %v2125 = vadd.f32 0.0, %v2124
        %v2126 = vpop.f32.mrb[0].mxu0
        %v2127 = vpop.f32.mrb[0].mxu0
        %v2128 = vpop.f32.mrb[0].mxu0
        %2129 = vdwg.mxu0
        %v2130 = vrcp.pop %v2080
        %v2131 = vmul.f32 %v2125, %v2130
        %v2132 = vpack.c.bf16 %v2131, %v2131
        %v2135 = vunpack.c.l.s4 1983009808
        %v2136 = vunpack.c.0.s8 %v2135
        %v2137 = vlaneseq
        %v2138 = vshrl.u32 %v2137, 7
        %v2139 = vsub.s32 %v2136, %v2138
        %v2140 = vrot.slane %v2132, %v2139
        %2141 = vrot.lane.b32.xlu0 %v2140, 28
        %v2142 = vpop.permute.xlu0 %2141
        %vm2144 = vcmask 255200
        %2145 = vst.msk [vmem:[%s189] sm:$0x3] %vm2144, %v2142
      $region36: #{dmha_forward.4} parent=27 // pred_fallthru
        _
      %s2146 = smul.u32 %s17, 4
      %s2147 = sadd.s32 %s2146, %s18
      %p2148 = scmp.lt.s32.totalorder %s2147, 15
      %s2149 = scalar_select %p2148, %s2147, 15
      %s2150 = smul.addr %s2149, 2
      %s2151 = scalar_lea.vmem %s2, %s2150
      // Predicated region
      $region37: #{dmha_forward.4} parent=27 // pred_check
        %p2152 = pneg %p103
      $region38: #{dmha_forward.4} parent=27 // pred_check_branch
        %2154 = sbr.rel (%p2152) target = $region40
      $region39: #{dmha_forward.4} parent=27 // pred_region
        %s2155 = smul.u32 %s17, 4
        %s2156 = sadd.s32 %s2155, %s18
      $region40: #{dmha_forward.4} parent=27 // pred_fallthru
        _
    $region28: #{dmha_forward.4} parent=5 // pred_fallthru
      _
    %p2157 = scmp.le.s32.totalorder 2, %s8
    // Predicated region
    $region41: #{dmha_forward.4} parent=5 // pred_check
      %p2158 = pneg %p2157
    $region42: #{dmha_forward.4} parent=5 // pred_check_branch
      %2160 = sbr.rel (%p2158) target = $region44
    $region43: #{dmha_forward.4} parent=5 // pred_region
      %s2161 = ssub.s32 %s8, 2
      // Predicated region
      $region45: #{dmha_forward.4} parent=43 // pred_check
        %p2162 = pneg %p109
      $region46: #{dmha_forward.4} parent=43 // pred_check_branch
        %2164 = sbr.rel (%p2162) target = $region48
      $region47: #{dmha_forward.4} parent=43 // pred_region
        %s2165 = smul.u32 %s19, 4
        %s2166 = sadd.s32 %s2165, %s20
        %p2167 = scmp.lt.s32.totalorder %s2166, 15
        %s2168 = scalar_select %p2167, %s2166, 15
        %s2169 = smul.addr %s2168, 2
        %s2170 = scalar_lea.vmem %s2, %s2169
      $region48: #{dmha_forward.4} parent=43 // pred_fallthru
        _
    $region44: #{dmha_forward.4} parent=5 // pred_fallthru
      _
  $region6: #{dmha_forward.4} parent=0 // loop_footer
    %s12 = sadd.s32 1, %s8
  $region7: #{dmha_forward.4} parent=0 // loop_footer_branch
    %7 = sbr.rel target = $region3
  $region8: #{dmha_forward.4} parent=0 // loop_exit
    _

</llo_original>
